<compile_context>
chip_gen: v6e
topology: v6e:2x2x1
jax: 0.10.0
libtpu: 0.0.40
codegen_flags: <defaults>
</compile_context>

<pallas_src>
import functools

import jax
import jax.numpy as jnp
from jax import lax
from jax.experimental import pallas as pl
from jax.experimental.pallas import tpu as pltpu


def _mod_c(a, m):
    """a % m for a constant m (bit-and when m is a power of two)."""
    if m & (m - 1) == 0:
        return jnp.bitwise_and(a, m - 1)
    return a % m


def _div_c(a, m):
    """a // m for a constant m (shift when m is a power of two)."""
    if m & (m - 1) == 0:
        return jnp.right_shift(a, m.bit_length() - 1)
    return a // m


# ----------------------------------------------------------------------------
# Fused kernel: conv1 -> BN(batch stats) -> ReLU -> conv2 -> w*out1 + b -> ReLU
# ----------------------------------------------------------------------------
def _srb_fused_kernel(x_ref, w_ref, p_ref, o_ref, *, N, H, W, Cin, C1, C2, eps):
    # x_ref : (Cin, P)            f32   flattened input, P = N*H*W (lane axis)
    # w_ref : (C1+C2, K)          bf16  rows 0..C1-1  = conv1 weight (C1, 9*Cin)
    #                                   rows C1..     = conv2 weight (C2, 9*C1)
    # p_ref : (C2, 3)             f32   col0=gamma, col1=beta (first C1 rows), col2=b2
    # o_ref : (N*C1, H*W)         f32   row n*C1 + c  ->  output[n, c, :, :]
    HW = H * W
    npix = N * HW
    inv_n = 1.0 / npix

    # ---- per-tap validity masks, built in-kernel (emulate the zero padding) ---
    j = lax.broadcasted_iota(jnp.int32, (1, npix), 1)
    hh = _div_c(_mod_c(j, HW), W)          # spatial row of each flat pixel
    ww = _mod_c(j, W)                      # spatial col of each flat pixel
    masks = {}
    for kh in range(3):
        for kw in range(3):
            dh, dw = kh - 1, kw - 1
            if dh == 0 and dw == 0:
                continue                   # centre tap: always valid
            conds = []
            if dh < 0:
                conds.append(hh >= -dh)
            if dh > 0:
                conds.append(hh < H - dh)
            if dw < 0:
                conds.append(ww >= -dw)
            if dw > 0:
                conds.append(ww < W - dw)
            m = conds[0]
            for c in conds[1:]:
                m = m & c
            masks[(kh, kw)] = m            # (1, npix) bool

    w_all = w_ref[...]                     # (C1+C2, K) bf16
    x = x_ref[...]                         # (Cin, npix) f32

    def tap_at(src, kh, kw):
        """3x3 tap (dh, dw) of `src` in the flat (n, h, w) lane layout, as bf16."""
        dh, dw = kh - 1, kw - 1
        if dh == 0 and dw == 0:
            t = src
        else:
            d = dh * W + dw                # lane shift of the flat index
            rolled = pltpu.roll(src, shift=(-d) % npix, axis=1)  # r[j] = src[j+d]
            t = jnp.where(masks[(kh, kw)], rolled, 0.0)          # kill wrap-around
        return t.astype(jnp.bfloat16)

    # ---- conv1 (bias dropped: it cancels exactly in the BN mean subtraction) --
    acc1 = jnp.zeros((C1, npix), jnp.float32)
    for kh in range(3):
        for kw in range(3):
            t = kh * 3 + kw
            tap = tap_at(x, kh, kw)                              # (Cin, npix) bf16
            w1_t = w_all[:C1, t * Cin:(t + 1) * Cin]             # (C1, Cin) bf16
            acc1 = acc1 + jnp.dot(w1_t, tap,
                                  preferred_element_type=jnp.float32)

    # ---- BatchNorm2d, training-mode batch stats (biased var, one pass) + ReLU -
    s1 = jnp.sum(acc1, axis=1, keepdims=True)                    # (C1, 1)
    s2 = jnp.sum(acc1 * acc1, axis=1, keepdims=True)             # (C1, 1)
    mean = s1 * inv_n
    var = s2 * inv_n - mean * mean
    gamma = p_ref[:C1, 0:1]
    beta = p_ref[:C1, 1:2]
    scale = gamma * lax.rsqrt(var + eps)
    out1 = jnp.maximum((acc1 - mean) * scale + beta, 0.0)        # (C1, npix) f32

    # ---- conv2, split into the "w" and "b" output halves directly -------------
    acc_w = jnp.zeros((C1, npix), jnp.float32)
    acc_b = jnp.zeros((C1, npix), jnp.float32)
    for kh in range(3):
        for kw in range(3):
            t = kh * 3 + kw
            tap = tap_at(out1, kh, kw)                           # (C1, npix) bf16
            w2a_t = w_all[C1:2 * C1, t * C1:(t + 1) * C1]        # (C1, C1) bf16
            w2b_t = w_all[2 * C1:C1 + C2, t * C1:(t + 1) * C1]   # (C1, C1) bf16
            acc_w = acc_w + jnp.dot(w2a_t, tap,
                                    preferred_element_type=jnp.float32)
            acc_b = acc_b + jnp.dot(w2b_t, tap,
                                    preferred_element_type=jnp.float32)

    b2a = p_ref[:C1, 2:3]
    b2b = p_ref[C1:C2, 2:3]
    res = jnp.maximum((acc_w + b2a) * out1 + (acc_b + b2b), 0.0)  # (C1, npix)

    # ---- store as (N*C1, H*W): 128-aligned lane-block copies; wrapper just
    #      reshapes, no transpose ------------------------------------------------
    for n in range(N):
        o_ref[n * C1:(n + 1) * C1, :] = res[:, n * HW:(n + 1) * HW]


# ----------------------------------------------------------------------------
# Wrapper: tiny layout plumbing only (one transpose/reshape of the 4 KiB input,
# weight/param packing), one fused pallas_call, pure reshape of the output.
# ----------------------------------------------------------------------------
def srb_forward(x_nchw, params, eps=1e-5):
    w1, gamma, beta, w2, b2 = (params["w1"], params["gamma"], params["beta"],
                               params["w2"], params["b2"])
    # NOTE: params["b1"] is intentionally unused - a conv bias cancels exactly
    #       through the BatchNorm batch-mean subtraction.
    N, Cin, H, W = x_nchw.shape
    C1 = w1.shape[-1]
    C2 = w2.shape[-1]
    HW = H * W
    npix = N * HW
    assert HW % 128 == 0 and npix % 128 == 0, "pixel counts must be lane-aligned"

    # (N, Cin, H, W) -> (Cin, N*H*W); lane axis carries the flat (n, h, w) index.
    x_flat = x_nchw.transpose(1, 0, 2, 3).reshape(Cin, npix).astype(jnp.float32)

    # Pack both conv weights into one bf16 buffer (one DMA).
    K1, K2 = 9 * Cin, 9 * C1
    K = max(K1, K2)
    w1r = w1.reshape(K1, C1).T.astype(jnp.bfloat16)      # (C1, 9*Cin)
    w2r = w2.reshape(K2, C2).T.astype(jnp.bfloat16)      # (C2, 9*C1)
    wcat = jnp.zeros((C1 + C2, K), jnp.bfloat16)
    wcat = wcat.at[:C1, :K1].set(w1r).at[C1:, :K2].set(w2r)

    # Pack gamma / beta / conv2-bias into one small f32 buffer (one DMA).
    pvec = jnp.zeros((C2, 3), jnp.float32)
    pvec = pvec.at[:C1, 0].set(gamma).at[:C1, 1].set(beta).at[:, 2].set(b2)

    kernel = functools.partial(_srb_fused_kernel, N=N, H=H, W=W,
                               Cin=Cin, C1=C1, C2=C2, eps=eps)
    out_flat = pl.pallas_call(
        kernel,
        out_shape=jax.ShapeDtypeStruct((N * C1, HW), jnp.float32),
        grid_spec=pltpu.PrefetchScalarGridSpec(
            num_scalar_prefetch=0,
            grid=(1,),                     # whole (tiny) problem in one step
            in_specs=[
                pl.BlockSpec((Cin, npix), lambda i: (0, 0)),
                pl.BlockSpec((C1 + C2, K), lambda i: (0, 0)),
                pl.BlockSpec((C2, 3), lambda i: (0, 0)),
            ],
            out_specs=pl.BlockSpec((N * C1, HW), lambda i: (0, 0)),
        ),
        compiler_params=pltpu.CompilerParams(
            dimension_semantics=("arbitrary",)),
    )(x_flat, wcat, pvec)

    # (N*C1, H*W) -> (N, C1, H, W): pure reshape, no transpose.
    return out_flat.reshape(N, C1, H, W)


# ----------------------------------------------------------------------------
# Pure-XLA reference (same bf16-operand / f32-accumulate matmul precision).
# ----------------------------------------------------------------------------
def srb_reference(x_nchw, params, eps=1e-5):
    w1, b1, gamma, beta, w2, b2 = (params["w1"], params["b1"], params["gamma"],
                                   params["beta"], params["w2"], params["b2"])

    def conv3x3(x, w_hwio, bias):
        w_oihw = jnp.transpose(w_hwio, (3, 2, 0, 1))
        y = lax.conv_general_dilated(
            x.astype(jnp.bfloat16), w_oihw.astype(jnp.bfloat16),
            window_strides=(1, 1), padding=((1, 1), (1, 1)),
            dimension_numbers=("NCHW", "OIHW", "NCHW"),
            preferred_element_type=jnp.float32)
        return y + bias[None, :, None, None]

    y1 = conv3x3(x_nchw, w1, b1)
    mean = jnp.mean(y1, axis=(0, 2, 3), keepdims=True)
    var = jnp.var(y1, axis=(0, 2, 3), keepdims=True)       # biased, like PyTorch BN
    scale = gamma[None, :, None, None] * lax.rsqrt(var + eps)
    out1 = jax.nn.relu((y1 - mean) * scale + beta[None, :, None, None])
    out2 = conv3x3(out1, w2, b2)
    C1 = out1.shape[1]
    return jax.nn.relu(out2[:, :C1] * out1 + out2[:, C1:])


if __name__ == "__main__":
    # SRB(in_channel=4, out_channel=8) on an NCHW input of shape (2, 4, 16, 16).
    N, Cin, H, W = 2, 4, 16, 16
    Cout = 8
    C1 = Cout // 2

    key = jax.random.PRNGKey(0)
    ks = jax.random.split(key, 7)
    params = {
        "w1": jax.random.normal(ks[0], (3, 3, Cin, C1), jnp.float32) * 0.3,
        "b1": jax.random.normal(ks[1], (C1,), jnp.float32) * 0.1,
        "gamma": 1.0 + 0.1 * jax.random.normal(ks[2], (C1,), jnp.float32),
        "beta": 0.1 * jax.random.normal(ks[3], (C1,), jnp.float32),
        "w2": jax.random.normal(ks[4], (3, 3, C1, Cout), jnp.float32) * 0.3,
        "b2": jax.random.normal(ks[5], (Cout,), jnp.float32) * 0.1,
    }
    x = jax.random.normal(ks[6], (N, Cin, H, W), jnp.float32)

    out = jax.block_until_ready(srb_forward(x, params))
    ref = jax.block_until_ready(srb_reference(x, params))

    assert out.shape == (N, C1, H, W), out.shape
    assert bool(jnp.all(jnp.isfinite(out)))
    # Both paths use bf16 MXU operands with f32 accumulation; typical max-abs
    # difference is ~1e-5.  The tolerance covers rare bf16 re-rounding of the
    # intermediate activation between the two independent implementations.
    assert jnp.allclose(out, ref, rtol=5e-2, atol=5e-2), (
        float(jnp.max(jnp.abs(out - ref))))
    print("KERNEL_OK")
</pallas_src>

<mosaic_0001>
module attributes {stable_mosaic.version = 11 : i64} {
  func.func @_srb_fused_kernel(%arg0: i32, %arg1: memref<4x512xf32, #tpu.memory_space<vmem>>, %arg2: memref<12x36xbf16, #tpu.memory_space<vmem>>, %arg3: memref<8x3xf32, #tpu.memory_space<vmem>>, %arg4: memref<8x256xf32, #tpu.memory_space<vmem>>) attributes {dimension_semantics = [#tpu.dimension_semantics<arbitrary>], iteration_bounds = array<i64: 1>, scalar_prefetch = 0 : i64, scratch_operands = 0 : i64, tpu.core_type = #tpu.core_type<tc>, window_params = [{pipeline_mode = #tpu.pipeline_mode<synchronous>, transform_indices = @transform_0, window_bounds = array<i64: 4, 512>}, {pipeline_mode = #tpu.pipeline_mode<synchronous>, transform_indices = @transform_1, window_bounds = array<i64: 12, 36>}, {pipeline_mode = #tpu.pipeline_mode<synchronous>, transform_indices = @transform_2, window_bounds = array<i64: 8, 3>}, {pipeline_mode = #tpu.pipeline_mode<synchronous>, transform_indices = @transform_3, window_bounds = array<i64: 8, 256>}]} {
    %0 = tpu.iota {dimensions = array<i32: 1>} : vector<1x512xi32>
    %c255_i32 = arith.constant 255 : i32
    %1 = vector.broadcast %c255_i32 : i32 to vector<1x512xi32>
    %2 = arith.andi %0, %1 : vector<1x512xi32>
    %c4_i32 = arith.constant 4 : i32
    %3 = vector.broadcast %c4_i32 : i32 to vector<1x512xi32>
    %4 = arith.shrsi %2, %3 : vector<1x512xi32>
    %c15_i32 = arith.constant 15 : i32
    %5 = vector.broadcast %c15_i32 : i32 to vector<1x512xi32>
    %6 = arith.andi %0, %5 : vector<1x512xi32>
    %c1_i32 = arith.constant 1 : i32
    %7 = vector.broadcast %c1_i32 : i32 to vector<1x512xi32>
    %8 = arith.cmpi sge, %4, %7 : vector<1x512xi32>
    %c1_i32_0 = arith.constant 1 : i32
    %9 = vector.broadcast %c1_i32_0 : i32 to vector<1x512xi32>
    %10 = arith.cmpi sge, %6, %9 : vector<1x512xi32>
    %11 = arith.andi %8, %10 : vector<1x512xi1>
    %c1_i32_1 = arith.constant 1 : i32
    %12 = vector.broadcast %c1_i32_1 : i32 to vector<1x512xi32>
    %13 = arith.cmpi sge, %4, %12 : vector<1x512xi32>
    %c1_i32_2 = arith.constant 1 : i32
    %14 = vector.broadcast %c1_i32_2 : i32 to vector<1x512xi32>
    %15 = arith.cmpi sge, %4, %14 : vector<1x512xi32>
    %c15_i32_3 = arith.constant 15 : i32
    %16 = vector.broadcast %c15_i32_3 : i32 to vector<1x512xi32>
    %17 = arith.cmpi slt, %6, %16 : vector<1x512xi32>
    %18 = arith.andi %15, %17 : vector<1x512xi1>
    %c1_i32_4 = arith.constant 1 : i32
    %19 = vector.broadcast %c1_i32_4 : i32 to vector<1x512xi32>
    %20 = arith.cmpi sge, %6, %19 : vector<1x512xi32>
    %c15_i32_5 = arith.constant 15 : i32
    %21 = vector.broadcast %c15_i32_5 : i32 to vector<1x512xi32>
    %22 = arith.cmpi slt, %6, %21 : vector<1x512xi32>
    %c15_i32_6 = arith.constant 15 : i32
    %23 = vector.broadcast %c15_i32_6 : i32 to vector<1x512xi32>
    %24 = arith.cmpi slt, %4, %23 : vector<1x512xi32>
    %c1_i32_7 = arith.constant 1 : i32
    %25 = vector.broadcast %c1_i32_7 : i32 to vector<1x512xi32>
    %26 = arith.cmpi sge, %6, %25 : vector<1x512xi32>
    %27 = arith.andi %24, %26 : vector<1x512xi1>
    %c15_i32_8 = arith.constant 15 : i32
    %28 = vector.broadcast %c15_i32_8 : i32 to vector<1x512xi32>
    %29 = arith.cmpi slt, %4, %28 : vector<1x512xi32>
    %c15_i32_9 = arith.constant 15 : i32
    %30 = vector.broadcast %c15_i32_9 : i32 to vector<1x512xi32>
    %31 = arith.cmpi slt, %4, %30 : vector<1x512xi32>
    %c15_i32_10 = arith.constant 15 : i32
    %32 = vector.broadcast %c15_i32_10 : i32 to vector<1x512xi32>
    %33 = arith.cmpi slt, %6, %32 : vector<1x512xi32>
    %34 = arith.andi %31, %33 : vector<1x512xi1>
    %c0 = arith.constant 0 : index
    %c0_11 = arith.constant 0 : index
    %35 = vector.load %arg2[%c0, %c0_11] : memref<12x36xbf16, #tpu.memory_space<vmem>>, vector<12x36xbf16>
    %c0_12 = arith.constant 0 : index
    %c0_13 = arith.constant 0 : index
    %36 = vector.load %arg1[%c0_12, %c0_13] : memref<4x512xf32, #tpu.memory_space<vmem>>, vector<4x512xf32>
    %cst = arith.constant 0.000000e+00 : f32
    %37 = vector.broadcast %cst : f32 to vector<4x512xf32>
    %c17_i32 = arith.constant 17 : i32
    %38 = tpu.dynamic_rotate %36 by %c17_i32 dim 1 : vector<4x512xf32>, i32 -> vector<4x512xf32>
    %cst_14 = arith.constant 0.000000e+00 : f32
    %39 = vector.shape_cast %11 : vector<1x512xi1> to vector<1x512xi1>
    %40 = vector.broadcast %39 : vector<1x512xi1> to vector<4x512xi1>
    %41 = vector.broadcast %cst_14 : f32 to vector<4x512xf32>
    %42 = arith.select %40, %38, %41 : vector<4x512xi1>, vector<4x512xf32>
    %43 = arith.truncf %42 : vector<4x512xf32> to vector<4x512xbf16>
    %44 = vector.extract_strided_slice %35 {offsets = [0, 0], sizes = [4, 4], strides = [1, 1]} : vector<12x36xbf16> to vector<4x4xbf16>
    %cst_15 = arith.constant dense<0.000000e+00> : vector<4x512xf32>
    %45 = tpu.matmul %44, %43, %cst_15 {dimension_numbers = #tpu.dot_dimension_numbers<[1], [0], [0], [1], [0, 0, 1, 1], [], []>} : vector<4x4xbf16>, vector<4x512xbf16>, vector<4x512xf32> -> vector<4x512xf32>
    %46 = arith.addf %37, %45 : vector<4x512xf32>
    %c16_i32 = arith.constant 16 : i32
    %47 = tpu.dynamic_rotate %36 by %c16_i32 dim 1 : vector<4x512xf32>, i32 -> vector<4x512xf32>
    %cst_16 = arith.constant 0.000000e+00 : f32
    %48 = vector.shape_cast %13 : vector<1x512xi1> to vector<1x512xi1>
    %49 = vector.broadcast %48 : vector<1x512xi1> to vector<4x512xi1>
    %50 = vector.broadcast %cst_16 : f32 to vector<4x512xf32>
    %51 = arith.select %49, %47, %50 : vector<4x512xi1>, vector<4x512xf32>
    %52 = arith.truncf %51 : vector<4x512xf32> to vector<4x512xbf16>
    %53 = vector.extract_strided_slice %35 {offsets = [0, 4], sizes = [4, 4], strides = [1, 1]} : vector<12x36xbf16> to vector<4x4xbf16>
    %cst_17 = arith.constant dense<0.000000e+00> : vector<4x512xf32>
    %54 = tpu.matmul %53, %52, %cst_17 {dimension_numbers = #tpu.dot_dimension_numbers<[1], [0], [0], [1], [0, 0, 1, 1], [], []>} : vector<4x4xbf16>, vector<4x512xbf16>, vector<4x512xf32> -> vector<4x512xf32>
    %55 = arith.addf %46, %54 : vector<4x512xf32>
    %c15_i32_18 = arith.constant 15 : i32
    %56 = tpu.dynamic_rotate %36 by %c15_i32_18 dim 1 : vector<4x512xf32>, i32 -> vector<4x512xf32>
    %cst_19 = arith.constant 0.000000e+00 : f32
    %57 = vector.shape_cast %18 : vector<1x512xi1> to vector<1x512xi1>
    %58 = vector.broadcast %57 : vector<1x512xi1> to vector<4x512xi1>
    %59 = vector.broadcast %cst_19 : f32 to vector<4x512xf32>
    %60 = arith.select %58, %56, %59 : vector<4x512xi1>, vector<4x512xf32>
    %61 = arith.truncf %60 : vector<4x512xf32> to vector<4x512xbf16>
    %62 = vector.extract_strided_slice %35 {offsets = [0, 8], sizes = [4, 4], strides = [1, 1]} : vector<12x36xbf16> to vector<4x4xbf16>
    %cst_20 = arith.constant dense<0.000000e+00> : vector<4x512xf32>
    %63 = tpu.matmul %62, %61, %cst_20 {dimension_numbers = #tpu.dot_dimension_numbers<[1], [0], [0], [1], [0, 0, 1, 1], [], []>} : vector<4x4xbf16>, vector<4x512xbf16>, vector<4x512xf32> -> vector<4x512xf32>
    %64 = arith.addf %55, %63 : vector<4x512xf32>
    %c1_i32_21 = arith.constant 1 : i32
    %65 = tpu.dynamic_rotate %36 by %c1_i32_21 dim 1 : vector<4x512xf32>, i32 -> vector<4x512xf32>
    %cst_22 = arith.constant 0.000000e+00 : f32
    %66 = vector.shape_cast %20 : vector<1x512xi1> to vector<1x512xi1>
    %67 = vector.broadcast %66 : vector<1x512xi1> to vector<4x512xi1>
    %68 = vector.broadcast %cst_22 : f32 to vector<4x512xf32>
    %69 = arith.select %67, %65, %68 : vector<4x512xi1>, vector<4x512xf32>
    %70 = arith.truncf %69 : vector<4x512xf32> to vector<4x512xbf16>
    %71 = vector.extract_strided_slice %35 {offsets = [0, 12], sizes = [4, 4], strides = [1, 1]} : vector<12x36xbf16> to vector<4x4xbf16>
    %cst_23 = arith.constant dense<0.000000e+00> : vector<4x512xf32>
    %72 = tpu.matmul %71, %70, %cst_23 {dimension_numbers = #tpu.dot_dimension_numbers<[1], [0], [0], [1], [0, 0, 1, 1], [], []>} : vector<4x4xbf16>, vector<4x512xbf16>, vector<4x512xf32> -> vector<4x512xf32>
    %73 = arith.addf %64, %72 : vector<4x512xf32>
    %74 = arith.truncf %36 : vector<4x512xf32> to vector<4x512xbf16>
    %75 = vector.extract_strided_slice %35 {offsets = [0, 16], sizes = [4, 4], strides = [1, 1]} : vector<12x36xbf16> to vector<4x4xbf16>
    %cst_24 = arith.constant dense<0.000000e+00> : vector<4x512xf32>
    %76 = tpu.matmul %75, %74, %cst_24 {dimension_numbers = #tpu.dot_dimension_numbers<[1], [0], [0], [1], [0, 0, 1, 1], [], []>} : vector<4x4xbf16>, vector<4x512xbf16>, vector<4x512xf32> -> vector<4x512xf32>
    %77 = arith.addf %73, %76 : vector<4x512xf32>
    %c511_i32 = arith.constant 511 : i32
    %78 = tpu.dynamic_rotate %36 by %c511_i32 dim 1 : vector<4x512xf32>, i32 -> vector<4x512xf32>
    %cst_25 = arith.constant 0.000000e+00 : f32
    %79 = vector.shape_cast %22 : vector<1x512xi1> to vector<1x512xi1>
    %80 = vector.broadcast %79 : vector<1x512xi1> to vector<4x512xi1>
    %81 = vector.broadcast %cst_25 : f32 to vector<4x512xf32>
    %82 = arith.select %80, %78, %81 : vector<4x512xi1>, vector<4x512xf32>
    %83 = arith.truncf %82 : vector<4x512xf32> to vector<4x512xbf16>
    %84 = vector.extract_strided_slice %35 {offsets = [0, 20], sizes = [4, 4], strides = [1, 1]} : vector<12x36xbf16> to vector<4x4xbf16>
    %cst_26 = arith.constant dense<0.000000e+00> : vector<4x512xf32>
    %85 = tpu.matmul %84, %83, %cst_26 {dimension_numbers = #tpu.dot_dimension_numbers<[1], [0], [0], [1], [0, 0, 1, 1], [], []>} : vector<4x4xbf16>, vector<4x512xbf16>, vector<4x512xf32> -> vector<4x512xf32>
    %86 = arith.addf %77, %85 : vector<4x512xf32>
    %c497_i32 = arith.constant 497 : i32
    %87 = tpu.dynamic_rotate %36 by %c497_i32 dim 1 : vector<4x512xf32>, i32 -> vector<4x512xf32>
    %cst_27 = arith.constant 0.000000e+00 : f32
    %88 = vector.shape_cast %27 : vector<1x512xi1> to vector<1x512xi1>
    %89 = vector.broadcast %88 : vector<1x512xi1> to vector<4x512xi1>
    %90 = vector.broadcast %cst_27 : f32 to vector<4x512xf32>
    %91 = arith.select %89, %87, %90 : vector<4x512xi1>, vector<4x512xf32>
    %92 = arith.truncf %91 : vector<4x512xf32> to vector<4x512xbf16>
    %93 = vector.extract_strided_slice %35 {offsets = [0, 24], sizes = [4, 4], strides = [1, 1]} : vector<12x36xbf16> to vector<4x4xbf16>
    %cst_28 = arith.constant dense<0.000000e+00> : vector<4x512xf32>
    %94 = tpu.matmul %93, %92, %cst_28 {dimension_numbers = #tpu.dot_dimension_numbers<[1], [0], [0], [1], [0, 0, 1, 1], [], []>} : vector<4x4xbf16>, vector<4x512xbf16>, vector<4x512xf32> -> vector<4x512xf32>
    %95 = arith.addf %86, %94 : vector<4x512xf32>
    %c496_i32 = arith.constant 496 : i32
    %96 = tpu.dynamic_rotate %36 by %c496_i32 dim 1 : vector<4x512xf32>, i32 -> vector<4x512xf32>
    %cst_29 = arith.constant 0.000000e+00 : f32
    %97 = vector.shape_cast %29 : vector<1x512xi1> to vector<1x512xi1>
    %98 = vector.broadcast %97 : vector<1x512xi1> to vector<4x512xi1>
    %99 = vector.broadcast %cst_29 : f32 to vector<4x512xf32>
    %100 = arith.select %98, %96, %99 : vector<4x512xi1>, vector<4x512xf32>
    %101 = arith.truncf %100 : vector<4x512xf32> to vector<4x512xbf16>
    %102 = vector.extract_strided_slice %35 {offsets = [0, 28], sizes = [4, 4], strides = [1, 1]} : vector<12x36xbf16> to vector<4x4xbf16>
    %cst_30 = arith.constant dense<0.000000e+00> : vector<4x512xf32>
    %103 = tpu.matmul %102, %101, %cst_30 {dimension_numbers = #tpu.dot_dimension_numbers<[1], [0], [0], [1], [0, 0, 1, 1], [], []>} : vector<4x4xbf16>, vector<4x512xbf16>, vector<4x512xf32> -> vector<4x512xf32>
    %104 = arith.addf %95, %103 : vector<4x512xf32>
    %c495_i32 = arith.constant 495 : i32
    %105 = tpu.dynamic_rotate %36 by %c495_i32 dim 1 : vector<4x512xf32>, i32 -> vector<4x512xf32>
    %cst_31 = arith.constant 0.000000e+00 : f32
    %106 = vector.shape_cast %34 : vector<1x512xi1> to vector<1x512xi1>
    %107 = vector.broadcast %106 : vector<1x512xi1> to vector<4x512xi1>
    %108 = vector.broadcast %cst_31 : f32 to vector<4x512xf32>
    %109 = arith.select %107, %105, %108 : vector<4x512xi1>, vector<4x512xf32>
    %110 = arith.truncf %109 : vector<4x512xf32> to vector<4x512xbf16>
    %111 = vector.extract_strided_slice %35 {offsets = [0, 32], sizes = [4, 4], strides = [1, 1]} : vector<12x36xbf16> to vector<4x4xbf16>
    %cst_32 = arith.constant dense<0.000000e+00> : vector<4x512xf32>
    %112 = tpu.matmul %111, %110, %cst_32 {dimension_numbers = #tpu.dot_dimension_numbers<[1], [0], [0], [1], [0, 0, 1, 1], [], []>} : vector<4x4xbf16>, vector<4x512xbf16>, vector<4x512xf32> -> vector<4x512xf32>
    %113 = arith.addf %104, %112 : vector<4x512xf32>
    %cst_33 = arith.constant dense<0.000000e+00> : vector<4xf32>
    %114 = vector.multi_reduction <add>, %113, %cst_33 [1] : vector<4x512xf32> to vector<4xf32>
    %115 = vector.shape_cast %114 : vector<4xf32> to vector<4x1xf32>
    %116 = arith.mulf %113, %113 : vector<4x512xf32>
    %cst_34 = arith.constant dense<0.000000e+00> : vector<4xf32>
    %117 = vector.multi_reduction <add>, %116, %cst_34 [1] : vector<4x512xf32> to vector<4xf32>
    %118 = vector.shape_cast %117 : vector<4xf32> to vector<4x1xf32>
    %cst_35 = arith.constant 0.001953125 : f32
    %119 = vector.broadcast %cst_35 : f32 to vector<4x1xf32>
    %120 = arith.mulf %115, %119 : vector<4x1xf32>
    %cst_36 = arith.constant 0.001953125 : f32
    %121 = vector.broadcast %cst_36 : f32 to vector<4x1xf32>
    %122 = arith.mulf %118, %121 : vector<4x1xf32>
    %123 = arith.mulf %120, %120 : vector<4x1xf32>
    %124 = arith.subf %122, %123 : vector<4x1xf32>
    %c0_37 = arith.constant 0 : index
    %c0_38 = arith.constant 0 : index
    %125 = vector.load %arg3[%c0_37, %c0_38] : memref<8x3xf32, #tpu.memory_space<vmem>>, vector<4x1xf32>
    %c0_39 = arith.constant 0 : index
    %c1 = arith.constant 1 : index
    %126 = vector.load %arg3[%c0_39, %c1] : memref<8x3xf32, #tpu.memory_space<vmem>>, vector<4x1xf32>
    %cst_40 = arith.constant 9.99999974E-6 : f32
    %127 = vector.broadcast %cst_40 : f32 to vector<4x1xf32>
    %128 = arith.addf %124, %127 : vector<4x1xf32>
    %129 = math.rsqrt %128 : vector<4x1xf32>
    %130 = arith.mulf %125, %129 : vector<4x1xf32>
    %131 = vector.broadcast %120 : vector<4x1xf32> to vector<4x512xf32>
    %132 = arith.subf %113, %131 : vector<4x512xf32>
    %133 = vector.broadcast %130 : vector<4x1xf32> to vector<4x512xf32>
    %134 = arith.mulf %132, %133 : vector<4x512xf32>
    %135 = vector.broadcast %126 : vector<4x1xf32> to vector<4x512xf32>
    %136 = arith.addf %134, %135 : vector<4x512xf32>
    %cst_41 = arith.constant 0.000000e+00 : f32
    %137 = vector.broadcast %cst_41 : f32 to vector<4x512xf32>
    %138 = arith.maximumf %136, %137 : vector<4x512xf32>
    %cst_42 = arith.constant 0.000000e+00 : f32
    %139 = vector.broadcast %cst_42 : f32 to vector<4x512xf32>
    %cst_43 = arith.constant 0.000000e+00 : f32
    %140 = vector.broadcast %cst_43 : f32 to vector<4x512xf32>
    %c17_i32_44 = arith.constant 17 : i32
    %141 = tpu.dynamic_rotate %138 by %c17_i32_44 dim 1 : vector<4x512xf32>, i32 -> vector<4x512xf32>
    %cst_45 = arith.constant 0.000000e+00 : f32
    %142 = vector.shape_cast %11 : vector<1x512xi1> to vector<1x512xi1>
    %143 = vector.broadcast %142 : vector<1x512xi1> to vector<4x512xi1>
    %144 = vector.broadcast %cst_45 : f32 to vector<4x512xf32>
    %145 = arith.select %143, %141, %144 : vector<4x512xi1>, vector<4x512xf32>
    %146 = arith.truncf %145 : vector<4x512xf32> to vector<4x512xbf16>
    %147 = vector.extract_strided_slice %35 {offsets = [4, 0], sizes = [4, 4], strides = [1, 1]} : vector<12x36xbf16> to vector<4x4xbf16>
    %148 = vector.extract_strided_slice %35 {offsets = [8, 0], sizes = [4, 4], strides = [1, 1]} : vector<12x36xbf16> to vector<4x4xbf16>
    %cst_46 = arith.constant dense<0.000000e+00> : vector<4x512xf32>
    %149 = tpu.matmul %147, %146, %cst_46 {dimension_numbers = #tpu.dot_dimension_numbers<[1], [0], [0], [1], [0, 0, 1, 1], [], []>} : vector<4x4xbf16>, vector<4x512xbf16>, vector<4x512xf32> -> vector<4x512xf32>
    %150 = arith.addf %139, %149 : vector<4x512xf32>
    %cst_47 = arith.constant dense<0.000000e+00> : vector<4x512xf32>
    %151 = tpu.matmul %148, %146, %cst_47 {dimension_numbers = #tpu.dot_dimension_numbers<[1], [0], [0], [1], [0, 0, 1, 1], [], []>} : vector<4x4xbf16>, vector<4x512xbf16>, vector<4x512xf32> -> vector<4x512xf32>
    %152 = arith.addf %140, %151 : vector<4x512xf32>
    %c16_i32_48 = arith.constant 16 : i32
    %153 = tpu.dynamic_rotate %138 by %c16_i32_48 dim 1 : vector<4x512xf32>, i32 -> vector<4x512xf32>
    %cst_49 = arith.constant 0.000000e+00 : f32
    %154 = vector.shape_cast %13 : vector<1x512xi1> to vector<1x512xi1>
    %155 = vector.broadcast %154 : vector<1x512xi1> to vector<4x512xi1>
    %156 = vector.broadcast %cst_49 : f32 to vector<4x512xf32>
    %157 = arith.select %155, %153, %156 : vector<4x512xi1>, vector<4x512xf32>
    %158 = arith.truncf %157 : vector<4x512xf32> to vector<4x512xbf16>
    %159 = vector.extract_strided_slice %35 {offsets = [4, 4], sizes = [4, 4], strides = [1, 1]} : vector<12x36xbf16> to vector<4x4xbf16>
    %160 = vector.extract_strided_slice %35 {offsets = [8, 4], sizes = [4, 4], strides = [1, 1]} : vector<12x36xbf16> to vector<4x4xbf16>
    %cst_50 = arith.constant dense<0.000000e+00> : vector<4x512xf32>
    %161 = tpu.matmul %159, %158, %cst_50 {dimension_numbers = #tpu.dot_dimension_numbers<[1], [0], [0], [1], [0, 0, 1, 1], [], []>} : vector<4x4xbf16>, vector<4x512xbf16>, vector<4x512xf32> -> vector<4x512xf32>
    %162 = arith.addf %150, %161 : vector<4x512xf32>
    %cst_51 = arith.constant dense<0.000000e+00> : vector<4x512xf32>
    %163 = tpu.matmul %160, %158, %cst_51 {dimension_numbers = #tpu.dot_dimension_numbers<[1], [0], [0], [1], [0, 0, 1, 1], [], []>} : vector<4x4xbf16>, vector<4x512xbf16>, vector<4x512xf32> -> vector<4x512xf32>
    %164 = arith.addf %152, %163 : vector<4x512xf32>
    %c15_i32_52 = arith.constant 15 : i32
    %165 = tpu.dynamic_rotate %138 by %c15_i32_52 dim 1 : vector<4x512xf32>, i32 -> vector<4x512xf32>
    %cst_53 = arith.constant 0.000000e+00 : f32
    %166 = vector.shape_cast %18 : vector<1x512xi1> to vector<1x512xi1>
    %167 = vector.broadcast %166 : vector<1x512xi1> to vector<4x512xi1>
    %168 = vector.broadcast %cst_53 : f32 to vector<4x512xf32>
    %169 = arith.select %167, %165, %168 : vector<4x512xi1>, vector<4x512xf32>
    %170 = arith.truncf %169 : vector<4x512xf32> to vector<4x512xbf16>
    %171 = vector.extract_strided_slice %35 {offsets = [4, 8], sizes = [4, 4], strides = [1, 1]} : vector<12x36xbf16> to vector<4x4xbf16>
    %172 = vector.extract_strided_slice %35 {offsets = [8, 8], sizes = [4, 4], strides = [1, 1]} : vector<12x36xbf16> to vector<4x4xbf16>
    %cst_54 = arith.constant dense<0.000000e+00> : vector<4x512xf32>
    %173 = tpu.matmul %171, %170, %cst_54 {dimension_numbers = #tpu.dot_dimension_numbers<[1], [0], [0], [1], [0, 0, 1, 1], [], []>} : vector<4x4xbf16>, vector<4x512xbf16>, vector<4x512xf32> -> vector<4x512xf32>
    %174 = arith.addf %162, %173 : vector<4x512xf32>
    %cst_55 = arith.constant dense<0.000000e+00> : vector<4x512xf32>
    %175 = tpu.matmul %172, %170, %cst_55 {dimension_numbers = #tpu.dot_dimension_numbers<[1], [0], [0], [1], [0, 0, 1, 1], [], []>} : vector<4x4xbf16>, vector<4x512xbf16>, vector<4x512xf32> -> vector<4x512xf32>
    %176 = arith.addf %164, %175 : vector<4x512xf32>
    %c1_i32_56 = arith.constant 1 : i32
    %177 = tpu.dynamic_rotate %138 by %c1_i32_56 dim 1 : vector<4x512xf32>, i32 -> vector<4x512xf32>
    %cst_57 = arith.constant 0.000000e+00 : f32
    %178 = vector.shape_cast %20 : vector<1x512xi1> to vector<1x512xi1>
    %179 = vector.broadcast %178 : vector<1x512xi1> to vector<4x512xi1>
    %180 = vector.broadcast %cst_57 : f32 to vector<4x512xf32>
    %181 = arith.select %179, %177, %180 : vector<4x512xi1>, vector<4x512xf32>
    %182 = arith.truncf %181 : vector<4x512xf32> to vector<4x512xbf16>
    %183 = vector.extract_strided_slice %35 {offsets = [4, 12], sizes = [4, 4], strides = [1, 1]} : vector<12x36xbf16> to vector<4x4xbf16>
    %184 = vector.extract_strided_slice %35 {offsets = [8, 12], sizes = [4, 4], strides = [1, 1]} : vector<12x36xbf16> to vector<4x4xbf16>
    %cst_58 = arith.constant dense<0.000000e+00> : vector<4x512xf32>
    %185 = tpu.matmul %183, %182, %cst_58 {dimension_numbers = #tpu.dot_dimension_numbers<[1], [0], [0], [1], [0, 0, 1, 1], [], []>} : vector<4x4xbf16>, vector<4x512xbf16>, vector<4x512xf32> -> vector<4x512xf32>
    %186 = arith.addf %174, %185 : vector<4x512xf32>
    %cst_59 = arith.constant dense<0.000000e+00> : vector<4x512xf32>
    %187 = tpu.matmul %184, %182, %cst_59 {dimension_numbers = #tpu.dot_dimension_numbers<[1], [0], [0], [1], [0, 0, 1, 1], [], []>} : vector<4x4xbf16>, vector<4x512xbf16>, vector<4x512xf32> -> vector<4x512xf32>
    %188 = arith.addf %176, %187 : vector<4x512xf32>
    %189 = arith.truncf %138 : vector<4x512xf32> to vector<4x512xbf16>
    %190 = vector.extract_strided_slice %35 {offsets = [4, 16], sizes = [4, 4], strides = [1, 1]} : vector<12x36xbf16> to vector<4x4xbf16>
    %191 = vector.extract_strided_slice %35 {offsets = [8, 16], sizes = [4, 4], strides = [1, 1]} : vector<12x36xbf16> to vector<4x4xbf16>
    %cst_60 = arith.constant dense<0.000000e+00> : vector<4x512xf32>
    %192 = tpu.matmul %190, %189, %cst_60 {dimension_numbers = #tpu.dot_dimension_numbers<[1], [0], [0], [1], [0, 0, 1, 1], [], []>} : vector<4x4xbf16>, vector<4x512xbf16>, vector<4x512xf32> -> vector<4x512xf32>
    %193 = arith.addf %186, %192 : vector<4x512xf32>
    %cst_61 = arith.constant dense<0.000000e+00> : vector<4x512xf32>
    %194 = tpu.matmul %191, %189, %cst_61 {dimension_numbers = #tpu.dot_dimension_numbers<[1], [0], [0], [1], [0, 0, 1, 1], [], []>} : vector<4x4xbf16>, vector<4x512xbf16>, vector<4x512xf32> -> vector<4x512xf32>
    %195 = arith.addf %188, %194 : vector<4x512xf32>
    %c511_i32_62 = arith.constant 511 : i32
    %196 = tpu.dynamic_rotate %138 by %c511_i32_62 dim 1 : vector<4x512xf32>, i32 -> vector<4x512xf32>
    %cst_63 = arith.constant 0.000000e+00 : f32
    %197 = vector.shape_cast %22 : vector<1x512xi1> to vector<1x512xi1>
    %198 = vector.broadcast %197 : vector<1x512xi1> to vector<4x512xi1>
    %199 = vector.broadcast %cst_63 : f32 to vector<4x512xf32>
    %200 = arith.select %198, %196, %199 : vector<4x512xi1>, vector<4x512xf32>
    %201 = arith.truncf %200 : vector<4x512xf32> to vector<4x512xbf16>
    %202 = vector.extract_strided_slice %35 {offsets = [4, 20], sizes = [4, 4], strides = [1, 1]} : vector<12x36xbf16> to vector<4x4xbf16>
    %203 = vector.extract_strided_slice %35 {offsets = [8, 20], sizes = [4, 4], strides = [1, 1]} : vector<12x36xbf16> to vector<4x4xbf16>
    %cst_64 = arith.constant dense<0.000000e+00> : vector<4x512xf32>
    %204 = tpu.matmul %202, %201, %cst_64 {dimension_numbers = #tpu.dot_dimension_numbers<[1], [0], [0], [1], [0, 0, 1, 1], [], []>} : vector<4x4xbf16>, vector<4x512xbf16>, vector<4x512xf32> -> vector<4x512xf32>
    %205 = arith.addf %193, %204 : vector<4x512xf32>
    %cst_65 = arith.constant dense<0.000000e+00> : vector<4x512xf32>
    %206 = tpu.matmul %203, %201, %cst_65 {dimension_numbers = #tpu.dot_dimension_numbers<[1], [0], [0], [1], [0, 0, 1, 1], [], []>} : vector<4x4xbf16>, vector<4x512xbf16>, vector<4x512xf32> -> vector<4x512xf32>
    %207 = arith.addf %195, %206 : vector<4x512xf32>
    %c497_i32_66 = arith.constant 497 : i32
    %208 = tpu.dynamic_rotate %138 by %c497_i32_66 dim 1 : vector<4x512xf32>, i32 -> vector<4x512xf32>
    %cst_67 = arith.constant 0.000000e+00 : f32
    %209 = vector.shape_cast %27 : vector<1x512xi1> to vector<1x512xi1>
    %210 = vector.broadcast %209 : vector<1x512xi1> to vector<4x512xi1>
    %211 = vector.broadcast %cst_67 : f32 to vector<4x512xf32>
    %212 = arith.select %210, %208, %211 : vector<4x512xi1>, vector<4x512xf32>
    %213 = arith.truncf %212 : vector<4x512xf32> to vector<4x512xbf16>
    %214 = vector.extract_strided_slice %35 {offsets = [4, 24], sizes = [4, 4], strides = [1, 1]} : vector<12x36xbf16> to vector<4x4xbf16>
    %215 = vector.extract_strided_slice %35 {offsets = [8, 24], sizes = [4, 4], strides = [1, 1]} : vector<12x36xbf16> to vector<4x4xbf16>
    %cst_68 = arith.constant dense<0.000000e+00> : vector<4x512xf32>
    %216 = tpu.matmul %214, %213, %cst_68 {dimension_numbers = #tpu.dot_dimension_numbers<[1], [0], [0], [1], [0, 0, 1, 1], [], []>} : vector<4x4xbf16>, vector<4x512xbf16>, vector<4x512xf32> -> vector<4x512xf32>
    %217 = arith.addf %205, %216 : vector<4x512xf32>
    %cst_69 = arith.constant dense<0.000000e+00> : vector<4x512xf32>
    %218 = tpu.matmul %215, %213, %cst_69 {dimension_numbers = #tpu.dot_dimension_numbers<[1], [0], [0], [1], [0, 0, 1, 1], [], []>} : vector<4x4xbf16>, vector<4x512xbf16>, vector<4x512xf32> -> vector<4x512xf32>
    %219 = arith.addf %207, %218 : vector<4x512xf32>
    %c496_i32_70 = arith.constant 496 : i32
    %220 = tpu.dynamic_rotate %138 by %c496_i32_70 dim 1 : vector<4x512xf32>, i32 -> vector<4x512xf32>
    %cst_71 = arith.constant 0.000000e+00 : f32
    %221 = vector.shape_cast %29 : vector<1x512xi1> to vector<1x512xi1>
    %222 = vector.broadcast %221 : vector<1x512xi1> to vector<4x512xi1>
    %223 = vector.broadcast %cst_71 : f32 to vector<4x512xf32>
    %224 = arith.select %222, %220, %223 : vector<4x512xi1>, vector<4x512xf32>
    %225 = arith.truncf %224 : vector<4x512xf32> to vector<4x512xbf16>
    %226 = vector.extract_strided_slice %35 {offsets = [4, 28], sizes = [4, 4], strides = [1, 1]} : vector<12x36xbf16> to vector<4x4xbf16>
    %227 = vector.extract_strided_slice %35 {offsets = [8, 28], sizes = [4, 4], strides = [1, 1]} : vector<12x36xbf16> to vector<4x4xbf16>
    %cst_72 = arith.constant dense<0.000000e+00> : vector<4x512xf32>
    %228 = tpu.matmul %226, %225, %cst_72 {dimension_numbers = #tpu.dot_dimension_numbers<[1], [0], [0], [1], [0, 0, 1, 1], [], []>} : vector<4x4xbf16>, vector<4x512xbf16>, vector<4x512xf32> -> vector<4x512xf32>
    %229 = arith.addf %217, %228 : vector<4x512xf32>
    %cst_73 = arith.constant dense<0.000000e+00> : vector<4x512xf32>
    %230 = tpu.matmul %227, %225, %cst_73 {dimension_numbers = #tpu.dot_dimension_numbers<[1], [0], [0], [1], [0, 0, 1, 1], [], []>} : vector<4x4xbf16>, vector<4x512xbf16>, vector<4x512xf32> -> vector<4x512xf32>
    %231 = arith.addf %219, %230 : vector<4x512xf32>
    %c495_i32_74 = arith.constant 495 : i32
    %232 = tpu.dynamic_rotate %138 by %c495_i32_74 dim 1 : vector<4x512xf32>, i32 -> vector<4x512xf32>
    %cst_75 = arith.constant 0.000000e+00 : f32
    %233 = vector.shape_cast %34 : vector<1x512xi1> to vector<1x512xi1>
    %234 = vector.broadcast %233 : vector<1x512xi1> to vector<4x512xi1>
    %235 = vector.broadcast %cst_75 : f32 to vector<4x512xf32>
    %236 = arith.select %234, %232, %235 : vector<4x512xi1>, vector<4x512xf32>
    %237 = arith.truncf %236 : vector<4x512xf32> to vector<4x512xbf16>
    %238 = vector.extract_strided_slice %35 {offsets = [4, 32], sizes = [4, 4], strides = [1, 1]} : vector<12x36xbf16> to vector<4x4xbf16>
    %239 = vector.extract_strided_slice %35 {offsets = [8, 32], sizes = [4, 4], strides = [1, 1]} : vector<12x36xbf16> to vector<4x4xbf16>
    %cst_76 = arith.constant dense<0.000000e+00> : vector<4x512xf32>
    %240 = tpu.matmul %238, %237, %cst_76 {dimension_numbers = #tpu.dot_dimension_numbers<[1], [0], [0], [1], [0, 0, 1, 1], [], []>} : vector<4x4xbf16>, vector<4x512xbf16>, vector<4x512xf32> -> vector<4x512xf32>
    %241 = arith.addf %229, %240 : vector<4x512xf32>
    %cst_77 = arith.constant dense<0.000000e+00> : vector<4x512xf32>
    %242 = tpu.matmul %239, %237, %cst_77 {dimension_numbers = #tpu.dot_dimension_numbers<[1], [0], [0], [1], [0, 0, 1, 1], [], []>} : vector<4x4xbf16>, vector<4x512xbf16>, vector<4x512xf32> -> vector<4x512xf32>
    %243 = arith.addf %231, %242 : vector<4x512xf32>
    %c0_78 = arith.constant 0 : index
    %c2 = arith.constant 2 : index
    %244 = vector.load %arg3[%c0_78, %c2] : memref<8x3xf32, #tpu.memory_space<vmem>>, vector<4x1xf32>
    %c4 = arith.constant 4 : index
    %c2_79 = arith.constant 2 : index
    %245 = vector.load %arg3[%c4, %c2_79] : memref<8x3xf32, #tpu.memory_space<vmem>>, vector<4x1xf32>
    %246 = vector.broadcast %244 : vector<4x1xf32> to vector<4x512xf32>
    %247 = arith.addf %241, %246 : vector<4x512xf32>
    %248 = arith.mulf %247, %138 : vector<4x512xf32>
    %249 = vector.broadcast %245 : vector<4x1xf32> to vector<4x512xf32>
    %250 = arith.addf %243, %249 : vector<4x512xf32>
    %251 = arith.addf %248, %250 : vector<4x512xf32>
    %cst_80 = arith.constant 0.000000e+00 : f32
    %252 = vector.broadcast %cst_80 : f32 to vector<4x512xf32>
    %253 = arith.maximumf %251, %252 : vector<4x512xf32>
    %254 = vector.extract_strided_slice %253 {offsets = [0, 0], sizes = [4, 256], strides = [1, 1]} : vector<4x512xf32> to vector<4x256xf32>
    %c0_81 = arith.constant 0 : index
    %c0_82 = arith.constant 0 : index
    %255 = vector.load %arg4[%c0_81, %c0_82] : memref<8x256xf32, #tpu.memory_space<vmem>>, vector<4x256xf32>
    tpu.vector_store %arg4[%c0_81, %c0_82], %254 {strides = array<i32>} : memref<8x256xf32, #tpu.memory_space<vmem>>, vector<4x256xf32>,
    %256 = vector.extract_strided_slice %253 {offsets = [0, 256], sizes = [4, 256], strides = [1, 1]} : vector<4x512xf32> to vector<4x256xf32>
    %c4_83 = arith.constant 4 : index
    %c0_84 = arith.constant 0 : index
    %257 = vector.load %arg4[%c4_83, %c0_84] : memref<8x256xf32, #tpu.memory_space<vmem>>, vector<4x256xf32>
    tpu.vector_store %arg4[%c4_83, %c0_84], %256 {strides = array<i32>} : memref<8x256xf32, #tpu.memory_space<vmem>>, vector<4x256xf32>,
    return
  }
  func.func @transform_0(%arg0: i32) -> (i32, i32) {
    %c0_i32 = arith.constant 0 : i32
    %c0_i32_0 = arith.constant 0 : i32
    %c0_i32_1 = arith.constant 0 : i32
    return %c0_i32, %c0_i32_0 : i32, i32
  }
  func.func @transform_1(%arg0: i32) -> (i32, i32) {
    %c0_i32 = arith.constant 0 : i32
    %c0_i32_0 = arith.constant 0 : i32
    %c0_i32_1 = arith.constant 0 : i32
    return %c0_i32, %c0_i32_0 : i32, i32
  }
  func.func @transform_2(%arg0: i32) -> (i32, i32) {
    %c0_i32 = arith.constant 0 : i32
    %c0_i32_0 = arith.constant 0 : i32
    %c0_i32_1 = arith.constant 0 : i32
    return %c0_i32, %c0_i32_0 : i32, i32
  }
  func.func @transform_3(%arg0: i32) -> (i32, i32) {
    %c0_i32 = arith.constant 0 : i32
    %c0_i32_0 = arith.constant 0 : i32
    %c0_i32_1 = arith.constant 0 : i32
    return %c0_i32, %c0_i32_0 : i32, i32
  }
}

</mosaic_0001>

<llo_original>
// kernel: tpu_custom_call.1
$region0: #{tpu_custom_call.1}
  #allocation0 [shape = 'u32[]', space=smem, size = 0x4, offset = 0x4, fixed_abs, tag = 'smem constant byte address 0x4 - core index']
  #allocation1 [shape = 'u32[144,128]{1,0:T(1,128)}', space=vmem, size = 0x12000, scoped, tag = 'internal scratch']
  %s0 = inlined_call_operand.hbm [shape: f32[4,512], index: 0, kind: input, shape index: {}]
  %s1 = inlined_call_operand.vmem [shape: bf16[12,36], index: 1, kind: input, shape index: {}]
  %s2 = inlined_call_operand.vmem [shape: f32[8,3], index: 2, kind: input, shape index: {}]
  %s3 = inlined_call_operand.hbm [shape: f32[8,256], index: 3, kind: output, shape index: {}]
  %s4 = sld [smem:[#allocation0]]
  $region26: #{tpu_custom_call.1} parent=0
    _
  %s6 = ssub.s32 1, %s4
  %s7 = scalar_select 0, %s6, %s4
  $region1: #{tpu_custom_call.1} parent=0
    #allocation2 [shape = 'u8[8192]{0}', space=vmem, size = 0x2000, scoped, tag = 'input window, operand 0, single buffered']
    #allocation3 [shape = 's32[1]{0}', space=sflag, size = 0x4, scoped, tag = 'scoped memory for tpu_custom_call.1']
    #allocation4 [shape = 's32[1]{0}', space=sflag, size = 0x4, scoped, tag = 'scoped memory for tpu_custom_call.1']
    #allocation5 [shape = 'u8[8192]{0}', space=vmem, size = 0x2000, scoped, tag = 'output window, operand 0, single buffered']
    %8 = vsyncpa [#allocation3], 0
    %9 = vsyncpa [#allocation4], 0
    // Predicated region
    $region2: #{tpu_custom_call.1} parent=1 // pred_check
      _
    $region3: #{tpu_custom_call.1} parent=1 // pred_check_branch
      %11 = sbr.rel (0) target = $region5
    $region4: #{tpu_custom_call.1} parent=1 // pred_region
      %s13 = ssub.s32 256, 256
      %14 = vsyncadd [#allocation3], %s13
      %s16 = sshll.u32 [#allocation2], 4
      %s17 = int_to_ptr.vmem [resolvable:$true] %s16
      %19 = dma.hbm_to_vmem [thread:$0]  %s0, 256, %s17, [#allocation3]
    $region5: #{tpu_custom_call.1} parent=1 // pred_fallthru
      _
    // Predicated region
    $region6: #{tpu_custom_call.1} parent=1 // pred_check
      _
    $region7: #{tpu_custom_call.1} parent=1 // pred_check_branch
      %21 = sbr.rel (0) target = $region9
    $region8: #{tpu_custom_call.1} parent=1 // pred_region
      _
    $region9: #{tpu_custom_call.1} parent=1 // pred_fallthru
      _
    // Predicated region
    $region10: #{tpu_custom_call.1} parent=1 // pred_check
      _
    $region11: #{tpu_custom_call.1} parent=1 // pred_check_branch
      %23 = sbr.rel (0) target = $region13
    $region12: #{tpu_custom_call.1} parent=1 // pred_region
      _
    $region13: #{tpu_custom_call.1} parent=1 // pred_fallthru
      _
    // Predicated region
    $region14: #{tpu_custom_call.1} parent=1 // pred_check
      _
    $region15: #{tpu_custom_call.1} parent=1 // pred_check_branch
      %25 = sbr.rel (0) target = $region17
    $region16: #{tpu_custom_call.1} parent=1 // pred_region
      %26 = dma.done [#allocation3], 256
    $region17: #{tpu_custom_call.1} parent=1 // pred_fallthru
      _
    %v28 = vlaneseq
    %v29 = vand.u32 %v28, 127
    %v30 = vadd.s32 %v29, 128
    %v31 = vadd.s32 %v29, 256
    %v32 = vadd.s32 %v29, 384
    %v33 = vand.u32 %v29, 255
    %v34 = vand.u32 %v30, 255
    %v35 = vand.u32 %v31, 255
    %v36 = vand.u32 %v32, 255
    %v37 = vshra.s32 %v33, 4
    %v38 = vshra.s32 %v34, 4
    %v39 = vshra.s32 %v35, 4
    %v40 = vshra.s32 %v36, 4
    %v41 = vand.u32 %v29, 15
    %v42 = vand.u32 %v30, 15
    %v43 = vand.u32 %v31, 15
    %v44 = vand.u32 %v32, 15
    %vm45 = vcmp.ge.s32.totalorder %v37, 1
    %vm46 = vcmp.ge.s32.totalorder %v38, 1
    %vm47 = vcmp.ge.s32.totalorder %v39, 1
    %vm48 = vcmp.ge.s32.totalorder %v40, 1
    %vm49 = vcmp.ge.s32.totalorder %v41, 1
    %vm50 = vcmp.ge.s32.totalorder %v42, 1
    %vm51 = vcmp.ge.s32.totalorder %v43, 1
    %vm52 = vcmp.ge.s32.totalorder %v44, 1
    %vm53 = vmand %vm45, %vm49
    %vm54 = vmand %vm46, %vm50
    %vm55 = vmand %vm47, %vm51
    %vm56 = vmand %vm48, %vm52
    %vm57 = vcmp.lt.s32.totalorder %v41, 15
    %vm58 = vcmp.lt.s32.totalorder %v42, 15
    %vm59 = vcmp.lt.s32.totalorder %v43, 15
    %vm60 = vcmp.lt.s32.totalorder %v44, 15
    %vm61 = vmand %vm45, %vm57
    %vm62 = vmand %vm46, %vm58
    %vm63 = vmand %vm47, %vm59
    %vm64 = vmand %vm48, %vm60
    %vm65 = vcmp.lt.s32.totalorder %v37, 15
    %vm66 = vcmp.lt.s32.totalorder %v38, 15
    %vm67 = vcmp.lt.s32.totalorder %v39, 15
    %vm68 = vcmp.lt.s32.totalorder %v40, 15
    %vm69 = vmand %vm65, %vm49
    %vm70 = vmand %vm66, %vm50
    %vm71 = vmand %vm67, %vm51
    %vm72 = vmand %vm68, %vm52
    %vm73 = vmand %vm65, %vm57
    %vm74 = vmand %vm66, %vm58
    %vm75 = vmand %vm67, %vm59
    %vm76 = vmand %vm68, %vm60
    %v77 = vld [vmem:[%s1] sm:$0xf]
    %v78 = vld [vmem:[%s1 + $0x4] sm:$0x3]
    %v79 = vld [vmem:[#allocation2] sm:$0xff]
    %v80 = vld [vmem:[#allocation2 + $0x8] sm:$0xff]
    %v83 = vcombine.high %v79, %v79
    %v84 = vcombine.high %v80, %v80
    %87 = vrot.lane.b32.xlu0 %v79, 17
    %v88 = vpop.permute.xlu0 %87
    %89 = vrot.lane.b32.xlu0 %v83, 17
    %v90 = vpop.permute.xlu0 %89
    %91 = vrot.lane.b32.xlu0 %v80, 17
    %v92 = vpop.permute.xlu0 %91
    %93 = vrot.lane.b32.xlu0 %v84, 17
    %v94 = vpop.permute.xlu0 %93
    %vm95 = vcmp.lt.s32.totalorder %v29, 17
    %v96 = vsel %vm95, %v92, %v94
    %v97 = vsel %vm95, %v90, %v92
    %v98 = vsel %vm95, %v88, %v90
    %v99 = vsel %vm95, %v94, %v88
    %v100 = vsel %vm53, 1, 0
    %v101 = vsel %vm54, 1, 0
    %v102 = vsel %vm55, 1, 0
    %v103 = vsel %vm56, 1, 0
    %vm104 = vcmp.eq.s32.totalorder %v100, 1
    %vm105 = vcmp.eq.s32.totalorder %v101, 1
    %vm106 = vcmp.eq.s32.totalorder %v102, 1
    %vm107 = vcmp.eq.s32.totalorder %v103, 1
    %v108 = vsel %vm104, %v99, 0.0
    %v109 = vsel %vm105, %v98, 0.0
    %v110 = vsel %vm106, %v97, 0.0
    %v111 = vsel %vm107, %v96, 0.0
    %v112 = vpack.c.bf16 %v108, %v108
    %v113 = vpack.c.bf16 %v109, %v109
    %v114 = vpack.c.bf16 %v110, %v110
    %v115 = vpack.c.bf16 %v111, %v111
    %116 = vrot.lane.b32.xlu0 %v79, 16
    %v117 = vpop.permute.xlu0 %116
    %118 = vrot.lane.b32.xlu0 %v83, 16
    %v119 = vpop.permute.xlu0 %118
    %120 = vrot.lane.b32.xlu0 %v80, 16
    %v121 = vpop.permute.xlu0 %120
    %122 = vrot.lane.b32.xlu0 %v84, 16
    %v123 = vpop.permute.xlu0 %122
    %vm124 = vcmp.lt.s32.totalorder %v29, 16
    %v125 = vsel %vm124, %v121, %v123
    %v126 = vsel %vm124, %v119, %v121
    %v127 = vsel %vm124, %v117, %v119
    %v128 = vsel %vm124, %v123, %v117
    %v129 = vsel %vm45, 1, 0
    %v130 = vsel %vm46, 1, 0
    %v131 = vsel %vm47, 1, 0
    %v132 = vsel %vm48, 1, 0
    %vm133 = vcmp.eq.s32.totalorder %v129, 1
    %vm134 = vcmp.eq.s32.totalorder %v130, 1
    %vm135 = vcmp.eq.s32.totalorder %v131, 1
    %vm136 = vcmp.eq.s32.totalorder %v132, 1
    %v137 = vsel %vm133, %v128, 0.0
    %v138 = vsel %vm134, %v127, 0.0
    %v139 = vsel %vm135, %v126, 0.0
    %v140 = vsel %vm136, %v125, 0.0
    %v141 = vpack.c.bf16 %v137, %v137
    %v142 = vpack.c.bf16 %v138, %v138
    %v143 = vpack.c.bf16 %v139, %v139
    %v144 = vpack.c.bf16 %v140, %v140
    %v146 = vunpack.c.l.b16 %v77
    %v147 = vpack.c.b16 %v146, %v146
    %148 = vrot.lane.b32.xlu0 %v147, 124
    %v149 = vpop.permute.xlu0 %148
    %vm150 = vcmask 31744
    %v152 = vsel %vm150, %v149, 0
    %vm154 = vcmask 1041408
    %v156 = vsel %vm154, %v141, 0
    %v159 = vsel %vm154, %v142, 0
    %v162 = vsel %vm154, %v143, 0
    %v165 = vsel %vm154, %v144, 0
    %167 = vmatprep.subr.bf16.mxu0 0
    %168 = vmatpush1.bf16.msra.mxu0 0
    %169 = vmatprep.subr.bf16.mxu0 0
    %170 = vmatpush1.bf16.msra.mxu0 0
    %171 = vmatprep.subr.bf16.mxu0 0
    %172 = vmatpush1.bf16.msra.mxu0 0
    %173 = vmatprep.subr.bf16.mxu0 0
    %174 = vmatpush1.bf16.msra.mxu0 0
    %175 = vmatprep.subr.bf16.mxu0 0
    %176 = vmatpush1.bf16.msra.mxu0 0
    %177 = vmatprep.subr.bf16.mxu0 0
    %178 = vmatpush1.bf16.msra.mxu0 0
    %179 = vmatprep.subr.bf16.mxu0 0
    %180 = vmatpush1.bf16.msra.mxu0 0
    %181 = vmatprep.subr.bf16.mxu0 %v159
    %182 = vmatpush1.bf16.msra.mxu0 %v156
    %183 = vmatprep.subr.bf16.mxu0 0
    %184 = vmatpush2.bf16.msra.mxu0 0
    %185 = vmatprep.subr.bf16.mxu0 0
    %186 = vmatpush2.bf16.msra.mxu0 0
    %187 = vmatprep.subr.bf16.mxu0 0
    %188 = vmatpush2.bf16.msra.mxu0 0
    %189 = vmatprep.subr.bf16.mxu0 0
    %190 = vmatpush2.bf16.msra.mxu0 0
    %191 = vmatprep.subr.bf16.mxu0 0
    %192 = vmatpush2.bf16.msra.mxu0 0
    %193 = vmatprep.subr.bf16.mxu0 0
    %194 = vmatpush2.bf16.msra.mxu0 0
    %195 = vmatprep.subr.bf16.mxu0 0
    %196 = vmatpush2.bf16.msra.mxu0 0
    %197 = vmatprep.subr.bf16.mxu0 0
    %198 = vmatpush2.bf16.msra.mxu0 0
    %199 = vmatprep.mubr.bf16.mxu0 0
    %200 = vmatmul.mubr.bf16.gmra.mxu0 %v152
    %v201 = vpop.f32.mrf.mxu0
    %v202 = vadd.f32 0.0, %v201
    %v203 = vpop.f32.mrf.mxu0
    %v204 = vadd.f32 0.0, %v203
    %v205 = vpop.f32.mrf.mxu0
    %v206 = vpop.f32.mrf.mxu0
    %207 = vdwg.mxu0
    %208 = vmatprep.subr.bf16.mxu0 0
    %209 = vmatpush1.bf16.msra.mxu0 0
    %210 = vmatprep.subr.bf16.mxu0 0
    %211 = vmatpush1.bf16.msra.mxu0 0
    %212 = vmatprep.subr.bf16.mxu0 0
    %213 = vmatpush1.bf16.msra.mxu0 0
    %214 = vmatprep.subr.bf16.mxu0 0
    %215 = vmatpush1.bf16.msra.mxu0 0
    %216 = vmatprep.subr.bf16.mxu0 0
    %217 = vmatpush1.bf16.msra.mxu0 0
    %218 = vmatprep.subr.bf16.mxu0 0
    %219 = vmatpush1.bf16.msra.mxu0 0
    %220 = vmatprep.subr.bf16.mxu0 0
    %221 = vmatpush1.bf16.msra.mxu0 0
    %222 = vmatprep.subr.bf16.mxu0 %v165
    %223 = vmatpush1.bf16.msra.mxu0 %v162
    %224 = vmatprep.subr.bf16.mxu0 0
    %225 = vmatpush2.bf16.msra.mxu0 0
    %226 = vmatprep.subr.bf16.mxu0 0
    %227 = vmatpush2.bf16.msra.mxu0 0
    %228 = vmatprep.subr.bf16.mxu0 0
    %229 = vmatpush2.bf16.msra.mxu0 0
    %230 = vmatprep.subr.bf16.mxu0 0
    %231 = vmatpush2.bf16.msra.mxu0 0
    %232 = vmatprep.subr.bf16.mxu0 0
    %233 = vmatpush2.bf16.msra.mxu0 0
    %234 = vmatprep.subr.bf16.mxu0 0
    %235 = vmatpush2.bf16.msra.mxu0 0
    %236 = vmatprep.subr.bf16.mxu0 0
    %237 = vmatpush2.bf16.msra.mxu0 0
    %238 = vmatprep.subr.bf16.mxu0 0
    %239 = vmatpush2.bf16.msra.mxu0 0
    %240 = vmatprep.mubr.bf16.mxu0 0
    %241 = vmatmul.mubr.bf16.gmra.mxu0 %v152
    %v242 = vpop.f32.mrf.mxu0
    %v243 = vadd.f32 0.0, %v242
    %v244 = vpop.f32.mrf.mxu0
    %v245 = vadd.f32 0.0, %v244
    %v246 = vpop.f32.mrf.mxu0
    %v247 = vpop.f32.mrf.mxu0
    %248 = vdwg.mxu0
    %v250 = vsel %vm150, %v77, 0
    %v253 = vsel %vm154, %v112, 0
    %v256 = vsel %vm154, %v113, 0
    %v259 = vsel %vm154, %v114, 0
    %v262 = vsel %vm154, %v115, 0
    %264 = vmatprep.subr.bf16.mxu0 0
    %265 = vmatpush1.bf16.msra.mxu0 0
    %266 = vmatprep.subr.bf16.mxu0 0
    %267 = vmatpush1.bf16.msra.mxu0 0
    %268 = vmatprep.subr.bf16.mxu0 0
    %269 = vmatpush1.bf16.msra.mxu0 0
    %270 = vmatprep.subr.bf16.mxu0 0
    %271 = vmatpush1.bf16.msra.mxu0 0
    %272 = vmatprep.subr.bf16.mxu0 0
    %273 = vmatpush1.bf16.msra.mxu0 0
    %274 = vmatprep.subr.bf16.mxu0 0
    %275 = vmatpush1.bf16.msra.mxu0 0
    %276 = vmatprep.subr.bf16.mxu0 0
    %277 = vmatpush1.bf16.msra.mxu0 0
    %278 = vmatprep.subr.bf16.mxu0 %v256
    %279 = vmatpush1.bf16.msra.mxu0 %v253
    %280 = vmatprep.subr.bf16.mxu0 0
    %281 = vmatpush2.bf16.msra.mxu0 0
    %282 = vmatprep.subr.bf16.mxu0 0
    %283 = vmatpush2.bf16.msra.mxu0 0
    %284 = vmatprep.subr.bf16.mxu0 0
    %285 = vmatpush2.bf16.msra.mxu0 0
    %286 = vmatprep.subr.bf16.mxu0 0
    %287 = vmatpush2.bf16.msra.mxu0 0
    %288 = vmatprep.subr.bf16.mxu0 0
    %289 = vmatpush2.bf16.msra.mxu0 0
    %290 = vmatprep.subr.bf16.mxu0 0
    %291 = vmatpush2.bf16.msra.mxu0 0
    %292 = vmatprep.subr.bf16.mxu0 0
    %293 = vmatpush2.bf16.msra.mxu0 0
    %294 = vmatprep.subr.bf16.mxu0 0
    %295 = vmatpush2.bf16.msra.mxu0 0
    %296 = vmatprep.mubr.bf16.mxu0 0
    %297 = vmatmul.mubr.bf16.gmra.mxu0 %v250
    %v298 = vpop.f32.mrf.mxu0
    %v299 = vadd.f32 %v202, %v298
    %v300 = vpop.f32.mrf.mxu0
    %v301 = vadd.f32 %v204, %v300
    %v302 = vpop.f32.mrf.mxu0
    %v303 = vpop.f32.mrf.mxu0
    %304 = vdwg.mxu0
    %305 = vmatprep.subr.bf16.mxu0 0
    %306 = vmatpush1.bf16.msra.mxu0 0
    %307 = vmatprep.subr.bf16.mxu0 0
    %308 = vmatpush1.bf16.msra.mxu0 0
    %309 = vmatprep.subr.bf16.mxu0 0
    %310 = vmatpush1.bf16.msra.mxu0 0
    %311 = vmatprep.subr.bf16.mxu0 0
    %312 = vmatpush1.bf16.msra.mxu0 0
    %313 = vmatprep.subr.bf16.mxu0 0
    %314 = vmatpush1.bf16.msra.mxu0 0
    %315 = vmatprep.subr.bf16.mxu0 0
    %316 = vmatpush1.bf16.msra.mxu0 0
    %317 = vmatprep.subr.bf16.mxu0 0
    %318 = vmatpush1.bf16.msra.mxu0 0
    %319 = vmatprep.subr.bf16.mxu0 %v262
    %320 = vmatpush1.bf16.msra.mxu0 %v259
    %321 = vmatprep.subr.bf16.mxu0 0
    %322 = vmatpush2.bf16.msra.mxu0 0
    %323 = vmatprep.subr.bf16.mxu0 0
    %324 = vmatpush2.bf16.msra.mxu0 0
    %325 = vmatprep.subr.bf16.mxu0 0
    %326 = vmatpush2.bf16.msra.mxu0 0
    %327 = vmatprep.subr.bf16.mxu0 0
    %328 = vmatpush2.bf16.msra.mxu0 0
    %329 = vmatprep.subr.bf16.mxu0 0
    %330 = vmatpush2.bf16.msra.mxu0 0
    %331 = vmatprep.subr.bf16.mxu0 0
    %332 = vmatpush2.bf16.msra.mxu0 0
    %333 = vmatprep.subr.bf16.mxu0 0
    %334 = vmatpush2.bf16.msra.mxu0 0
    %335 = vmatprep.subr.bf16.mxu0 0
    %336 = vmatpush2.bf16.msra.mxu0 0
    %337 = vmatprep.mubr.bf16.mxu0 0
    %338 = vmatmul.mubr.bf16.gmra.mxu0 %v250
    %v339 = vpop.f32.mrf.mxu0
    %v340 = vadd.f32 %v243, %v339
    %v341 = vpop.f32.mrf.mxu0
    %v342 = vadd.f32 %v245, %v341
    %v343 = vpop.f32.mrf.mxu0
    %v344 = vpop.f32.mrf.mxu0
    %345 = vdwg.mxu0
    %346 = vrot.lane.b32.xlu0 %v79, 15
    %v347 = vpop.permute.xlu0 %346
    %348 = vrot.lane.b32.xlu0 %v83, 15
    %v349 = vpop.permute.xlu0 %348
    %350 = vrot.lane.b32.xlu0 %v80, 15
    %v351 = vpop.permute.xlu0 %350
    %352 = vrot.lane.b32.xlu0 %v84, 15
    %v353 = vpop.permute.xlu0 %352
    %vm354 = vcmp.lt.s32.totalorder %v29, 15
    %v355 = vsel %vm354, %v351, %v353
    %v356 = vsel %vm354, %v349, %v351
    %v357 = vsel %vm354, %v347, %v349
    %v358 = vsel %vm354, %v353, %v347
    %v359 = vsel %vm61, 1, 0
    %v360 = vsel %vm62, 1, 0
    %v361 = vsel %vm63, 1, 0
    %v362 = vsel %vm64, 1, 0
    %vm363 = vcmp.eq.s32.totalorder %v359, 1
    %vm364 = vcmp.eq.s32.totalorder %v360, 1
    %vm365 = vcmp.eq.s32.totalorder %v361, 1
    %vm366 = vcmp.eq.s32.totalorder %v362, 1
    %v367 = vsel %vm363, %v358, 0.0
    %v368 = vsel %vm364, %v357, 0.0
    %v369 = vsel %vm365, %v356, 0.0
    %v370 = vsel %vm366, %v355, 0.0
    %v371 = vpack.c.bf16 %v367, %v367
    %v372 = vpack.c.bf16 %v368, %v368
    %v373 = vpack.c.bf16 %v369, %v369
    %v374 = vpack.c.bf16 %v370, %v370
    %375 = vrot.lane.b32.xlu0 %v147, 120
    %v376 = vpop.permute.xlu0 %375
    %v378 = vsel %vm150, %v376, 0
    %v381 = vsel %vm154, %v371, 0
    %v384 = vsel %vm154, %v372, 0
    %v387 = vsel %vm154, %v373, 0
    %v390 = vsel %vm154, %v374, 0
    %392 = vmatprep.subr.bf16.mxu0 0
    %393 = vmatpush1.bf16.msra.mxu0 0
    %394 = vmatprep.subr.bf16.mxu0 0
    %395 = vmatpush1.bf16.msra.mxu0 0
    %396 = vmatprep.subr.bf16.mxu0 0
    %397 = vmatpush1.bf16.msra.mxu0 0
    %398 = vmatprep.subr.bf16.mxu0 0
    %399 = vmatpush1.bf16.msra.mxu0 0
    %400 = vmatprep.subr.bf16.mxu0 0
    %401 = vmatpush1.bf16.msra.mxu0 0
    %402 = vmatprep.subr.bf16.mxu0 0
    %403 = vmatpush1.bf16.msra.mxu0 0
    %404 = vmatprep.subr.bf16.mxu0 0
    %405 = vmatpush1.bf16.msra.mxu0 0
    %406 = vmatprep.subr.bf16.mxu0 %v384
    %407 = vmatpush1.bf16.msra.mxu0 %v381
    %408 = vmatprep.subr.bf16.mxu0 0
    %409 = vmatpush2.bf16.msra.mxu0 0
    %410 = vmatprep.subr.bf16.mxu0 0
    %411 = vmatpush2.bf16.msra.mxu0 0
    %412 = vmatprep.subr.bf16.mxu0 0
    %413 = vmatpush2.bf16.msra.mxu0 0
    %414 = vmatprep.subr.bf16.mxu0 0
    %415 = vmatpush2.bf16.msra.mxu0 0
    %416 = vmatprep.subr.bf16.mxu0 0
    %417 = vmatpush2.bf16.msra.mxu0 0
    %418 = vmatprep.subr.bf16.mxu0 0
    %419 = vmatpush2.bf16.msra.mxu0 0
    %420 = vmatprep.subr.bf16.mxu0 0
    %421 = vmatpush2.bf16.msra.mxu0 0
    %422 = vmatprep.subr.bf16.mxu0 0
    %423 = vmatpush2.bf16.msra.mxu0 0
    %424 = vmatprep.mubr.bf16.mxu0 0
    %425 = vmatmul.mubr.bf16.gmra.mxu0 %v378
    %v426 = vpop.f32.mrf.mxu0
    %v427 = vadd.f32 0.0, %v426
    %v428 = vpop.f32.mrf.mxu0
    %v429 = vadd.f32 0.0, %v428
    %v430 = vpop.f32.mrf.mxu0
    %v431 = vpop.f32.mrf.mxu0
    %432 = vdwg.mxu0
    %433 = vmatprep.subr.bf16.mxu0 0
    %434 = vmatpush1.bf16.msra.mxu0 0
    %435 = vmatprep.subr.bf16.mxu0 0
    %436 = vmatpush1.bf16.msra.mxu0 0
    %437 = vmatprep.subr.bf16.mxu0 0
    %438 = vmatpush1.bf16.msra.mxu0 0
    %439 = vmatprep.subr.bf16.mxu0 0
    %440 = vmatpush1.bf16.msra.mxu0 0
    %441 = vmatprep.subr.bf16.mxu0 0
    %442 = vmatpush1.bf16.msra.mxu0 0
    %443 = vmatprep.subr.bf16.mxu0 0
    %444 = vmatpush1.bf16.msra.mxu0 0
    %445 = vmatprep.subr.bf16.mxu0 0
    %446 = vmatpush1.bf16.msra.mxu0 0
    %447 = vmatprep.subr.bf16.mxu0 %v390
    %448 = vmatpush1.bf16.msra.mxu0 %v387
    %449 = vmatprep.subr.bf16.mxu0 0
    %450 = vmatpush2.bf16.msra.mxu0 0
    %451 = vmatprep.subr.bf16.mxu0 0
    %452 = vmatpush2.bf16.msra.mxu0 0
    %453 = vmatprep.subr.bf16.mxu0 0
    %454 = vmatpush2.bf16.msra.mxu0 0
    %455 = vmatprep.subr.bf16.mxu0 0
    %456 = vmatpush2.bf16.msra.mxu0 0
    %457 = vmatprep.subr.bf16.mxu0 0
    %458 = vmatpush2.bf16.msra.mxu0 0
    %459 = vmatprep.subr.bf16.mxu0 0
    %460 = vmatpush2.bf16.msra.mxu0 0
    %461 = vmatprep.subr.bf16.mxu0 0
    %462 = vmatpush2.bf16.msra.mxu0 0
    %463 = vmatprep.subr.bf16.mxu0 0
    %464 = vmatpush2.bf16.msra.mxu0 0
    %465 = vmatprep.mubr.bf16.mxu0 0
    %466 = vmatmul.mubr.bf16.gmra.mxu0 %v378
    %v467 = vpop.f32.mrf.mxu0
    %v468 = vadd.f32 0.0, %v467
    %v469 = vpop.f32.mrf.mxu0
    %v470 = vadd.f32 0.0, %v469
    %v471 = vpop.f32.mrf.mxu0
    %v472 = vpop.f32.mrf.mxu0
    %473 = vdwg.mxu0
    %v474 = vadd.f32 %v299, %v427
    %v475 = vadd.f32 %v301, %v429
    %v476 = vadd.f32 %v340, %v468
    %v477 = vadd.f32 %v342, %v470
    %478 = vrot.lane.b32.xlu0 %v79, 1
    %v479 = vpop.permute.xlu0 %478
    %480 = vrot.lane.b32.xlu0 %v83, 1
    %v481 = vpop.permute.xlu0 %480
    %482 = vrot.lane.b32.xlu0 %v80, 1
    %v483 = vpop.permute.xlu0 %482
    %484 = vrot.lane.b32.xlu0 %v84, 1
    %v485 = vpop.permute.xlu0 %484
    %vm486 = vcmp.lt.s32.totalorder %v29, 1
    %v487 = vsel %vm486, %v483, %v485
    %v488 = vsel %vm486, %v481, %v483
    %v489 = vsel %vm486, %v479, %v481
    %v490 = vsel %vm486, %v485, %v479
    %v491 = vsel %vm49, 1, 0
    %v492 = vsel %vm50, 1, 0
    %v493 = vsel %vm51, 1, 0
    %v494 = vsel %vm52, 1, 0
    %vm495 = vcmp.eq.s32.totalorder %v491, 1
    %vm496 = vcmp.eq.s32.totalorder %v492, 1
    %vm497 = vcmp.eq.s32.totalorder %v493, 1
    %vm498 = vcmp.eq.s32.totalorder %v494, 1
    %v499 = vsel %vm495, %v490, 0.0
    %v500 = vsel %vm496, %v489, 0.0
    %v501 = vsel %vm497, %v488, 0.0
    %v502 = vsel %vm498, %v487, 0.0
    %v503 = vpack.c.bf16 %v499, %v499
    %v504 = vpack.c.bf16 %v500, %v500
    %v505 = vpack.c.bf16 %v501, %v501
    %v506 = vpack.c.bf16 %v502, %v502
    %507 = vrot.lane.b32.xlu0 %v147, 116
    %v508 = vpop.permute.xlu0 %507
    %v510 = vsel %vm150, %v508, 0
    %v513 = vsel %vm154, %v503, 0
    %v516 = vsel %vm154, %v504, 0
    %v519 = vsel %vm154, %v505, 0
    %v522 = vsel %vm154, %v506, 0
    %524 = vmatprep.subr.bf16.mxu0 0
    %525 = vmatpush1.bf16.msra.mxu0 0
    %526 = vmatprep.subr.bf16.mxu0 0
    %527 = vmatpush1.bf16.msra.mxu0 0
    %528 = vmatprep.subr.bf16.mxu0 0
    %529 = vmatpush1.bf16.msra.mxu0 0
    %530 = vmatprep.subr.bf16.mxu0 0
    %531 = vmatpush1.bf16.msra.mxu0 0
    %532 = vmatprep.subr.bf16.mxu0 0
    %533 = vmatpush1.bf16.msra.mxu0 0
    %534 = vmatprep.subr.bf16.mxu0 0
    %535 = vmatpush1.bf16.msra.mxu0 0
    %536 = vmatprep.subr.bf16.mxu0 0
    %537 = vmatpush1.bf16.msra.mxu0 0
    %538 = vmatprep.subr.bf16.mxu0 %v516
    %539 = vmatpush1.bf16.msra.mxu0 %v513
    %540 = vmatprep.subr.bf16.mxu0 0
    %541 = vmatpush2.bf16.msra.mxu0 0
    %542 = vmatprep.subr.bf16.mxu0 0
    %543 = vmatpush2.bf16.msra.mxu0 0
    %544 = vmatprep.subr.bf16.mxu0 0
    %545 = vmatpush2.bf16.msra.mxu0 0
    %546 = vmatprep.subr.bf16.mxu0 0
    %547 = vmatpush2.bf16.msra.mxu0 0
    %548 = vmatprep.subr.bf16.mxu0 0
    %549 = vmatpush2.bf16.msra.mxu0 0
    %550 = vmatprep.subr.bf16.mxu0 0
    %551 = vmatpush2.bf16.msra.mxu0 0
    %552 = vmatprep.subr.bf16.mxu0 0
    %553 = vmatpush2.bf16.msra.mxu0 0
    %554 = vmatprep.subr.bf16.mxu0 0
    %555 = vmatpush2.bf16.msra.mxu0 0
    %556 = vmatprep.mubr.bf16.mxu0 0
    %557 = vmatmul.mubr.bf16.gmra.mxu0 %v510
    %v558 = vpop.f32.mrf.mxu0
    %v559 = vadd.f32 0.0, %v558
    %v560 = vpop.f32.mrf.mxu0
    %v561 = vadd.f32 0.0, %v560
    %v562 = vpop.f32.mrf.mxu0
    %v563 = vpop.f32.mrf.mxu0
    %564 = vdwg.mxu0
    %565 = vmatprep.subr.bf16.mxu0 0
    %566 = vmatpush1.bf16.msra.mxu0 0
    %567 = vmatprep.subr.bf16.mxu0 0
    %568 = vmatpush1.bf16.msra.mxu0 0
    %569 = vmatprep.subr.bf16.mxu0 0
    %570 = vmatpush1.bf16.msra.mxu0 0
    %571 = vmatprep.subr.bf16.mxu0 0
    %572 = vmatpush1.bf16.msra.mxu0 0
    %573 = vmatprep.subr.bf16.mxu0 0
    %574 = vmatpush1.bf16.msra.mxu0 0
    %575 = vmatprep.subr.bf16.mxu0 0
    %576 = vmatpush1.bf16.msra.mxu0 0
    %577 = vmatprep.subr.bf16.mxu0 0
    %578 = vmatpush1.bf16.msra.mxu0 0
    %579 = vmatprep.subr.bf16.mxu0 %v522
    %580 = vmatpush1.bf16.msra.mxu0 %v519
    %581 = vmatprep.subr.bf16.mxu0 0
    %582 = vmatpush2.bf16.msra.mxu0 0
    %583 = vmatprep.subr.bf16.mxu0 0
    %584 = vmatpush2.bf16.msra.mxu0 0
    %585 = vmatprep.subr.bf16.mxu0 0
    %586 = vmatpush2.bf16.msra.mxu0 0
    %587 = vmatprep.subr.bf16.mxu0 0
    %588 = vmatpush2.bf16.msra.mxu0 0
    %589 = vmatprep.subr.bf16.mxu0 0
    %590 = vmatpush2.bf16.msra.mxu0 0
    %591 = vmatprep.subr.bf16.mxu0 0
    %592 = vmatpush2.bf16.msra.mxu0 0
    %593 = vmatprep.subr.bf16.mxu0 0
    %594 = vmatpush2.bf16.msra.mxu0 0
    %595 = vmatprep.subr.bf16.mxu0 0
    %596 = vmatpush2.bf16.msra.mxu0 0
    %597 = vmatprep.mubr.bf16.mxu0 0
    %598 = vmatmul.mubr.bf16.gmra.mxu0 %v510
    %v599 = vpop.f32.mrf.mxu0
    %v600 = vadd.f32 0.0, %v599
    %v601 = vpop.f32.mrf.mxu0
    %v602 = vadd.f32 0.0, %v601
    %v603 = vpop.f32.mrf.mxu0
    %v604 = vpop.f32.mrf.mxu0
    %605 = vdwg.mxu0
    %v606 = vadd.f32 %v474, %v559
    %v607 = vadd.f32 %v475, %v561
    %v608 = vadd.f32 %v476, %v600
    %v609 = vadd.f32 %v477, %v602
    %v610 = vpack.c.bf16 %v79, %v79
    %v611 = vpack.c.bf16 %v83, %v83
    %v612 = vpack.c.bf16 %v80, %v80
    %v613 = vpack.c.bf16 %v84, %v84
    %614 = vrot.lane.b32.xlu0 %v147, 112
    %v615 = vpop.permute.xlu0 %614
    %v617 = vsel %vm150, %v615, 0
    %v620 = vsel %vm154, %v610, 0
    %v623 = vsel %vm154, %v611, 0
    %v626 = vsel %vm154, %v612, 0
    %v629 = vsel %vm154, %v613, 0
    %631 = vmatprep.subr.bf16.mxu0 0
    %632 = vmatpush1.bf16.msra.mxu0 0
    %633 = vmatprep.subr.bf16.mxu0 0
    %634 = vmatpush1.bf16.msra.mxu0 0
    %635 = vmatprep.subr.bf16.mxu0 0
    %636 = vmatpush1.bf16.msra.mxu0 0
    %637 = vmatprep.subr.bf16.mxu0 0
    %638 = vmatpush1.bf16.msra.mxu0 0
    %639 = vmatprep.subr.bf16.mxu0 0
    %640 = vmatpush1.bf16.msra.mxu0 0
    %641 = vmatprep.subr.bf16.mxu0 0
    %642 = vmatpush1.bf16.msra.mxu0 0
    %643 = vmatprep.subr.bf16.mxu0 0
    %644 = vmatpush1.bf16.msra.mxu0 0
    %645 = vmatprep.subr.bf16.mxu0 %v623
    %646 = vmatpush1.bf16.msra.mxu0 %v620
    %647 = vmatprep.subr.bf16.mxu0 0
    %648 = vmatpush2.bf16.msra.mxu0 0
    %649 = vmatprep.subr.bf16.mxu0 0
    %650 = vmatpush2.bf16.msra.mxu0 0
    %651 = vmatprep.subr.bf16.mxu0 0
    %652 = vmatpush2.bf16.msra.mxu0 0
    %653 = vmatprep.subr.bf16.mxu0 0
    %654 = vmatpush2.bf16.msra.mxu0 0
    %655 = vmatprep.subr.bf16.mxu0 0
    %656 = vmatpush2.bf16.msra.mxu0 0
    %657 = vmatprep.subr.bf16.mxu0 0
    %658 = vmatpush2.bf16.msra.mxu0 0
    %659 = vmatprep.subr.bf16.mxu0 0
    %660 = vmatpush2.bf16.msra.mxu0 0
    %661 = vmatprep.subr.bf16.mxu0 0
    %662 = vmatpush2.bf16.msra.mxu0 0
    %663 = vmatprep.mubr.bf16.mxu0 0
    %664 = vmatmul.mubr.bf16.gmra.mxu0 %v617
    %v665 = vpop.f32.mrf.mxu0
    %v666 = vadd.f32 0.0, %v665
    %v667 = vpop.f32.mrf.mxu0
    %v668 = vadd.f32 0.0, %v667
    %v669 = vpop.f32.mrf.mxu0
    %v670 = vpop.f32.mrf.mxu0
    %671 = vdwg.mxu0
    %672 = vmatprep.subr.bf16.mxu0 0
    %673 = vmatpush1.bf16.msra.mxu0 0
    %674 = vmatprep.subr.bf16.mxu0 0
    %675 = vmatpush1.bf16.msra.mxu0 0
    %676 = vmatprep.subr.bf16.mxu0 0
    %677 = vmatpush1.bf16.msra.mxu0 0
    %678 = vmatprep.subr.bf16.mxu0 0
    %679 = vmatpush1.bf16.msra.mxu0 0
    %680 = vmatprep.subr.bf16.mxu0 0
    %681 = vmatpush1.bf16.msra.mxu0 0
    %682 = vmatprep.subr.bf16.mxu0 0
    %683 = vmatpush1.bf16.msra.mxu0 0
    %684 = vmatprep.subr.bf16.mxu0 0
    %685 = vmatpush1.bf16.msra.mxu0 0
    %686 = vmatprep.subr.bf16.mxu0 %v629
    %687 = vmatpush1.bf16.msra.mxu0 %v626
    %688 = vmatprep.subr.bf16.mxu0 0
    %689 = vmatpush2.bf16.msra.mxu0 0
    %690 = vmatprep.subr.bf16.mxu0 0
    %691 = vmatpush2.bf16.msra.mxu0 0
    %692 = vmatprep.subr.bf16.mxu0 0
    %693 = vmatpush2.bf16.msra.mxu0 0
    %694 = vmatprep.subr.bf16.mxu0 0
    %695 = vmatpush2.bf16.msra.mxu0 0
    %696 = vmatprep.subr.bf16.mxu0 0
    %697 = vmatpush2.bf16.msra.mxu0 0
    %698 = vmatprep.subr.bf16.mxu0 0
    %699 = vmatpush2.bf16.msra.mxu0 0
    %700 = vmatprep.subr.bf16.mxu0 0
    %701 = vmatpush2.bf16.msra.mxu0 0
    %702 = vmatprep.subr.bf16.mxu0 0
    %703 = vmatpush2.bf16.msra.mxu0 0
    %704 = vmatprep.mubr.bf16.mxu0 0
    %705 = vmatmul.mubr.bf16.gmra.mxu0 %v617
    %v706 = vpop.f32.mrf.mxu0
    %v707 = vadd.f32 0.0, %v706
    %v708 = vpop.f32.mrf.mxu0
    %v709 = vadd.f32 0.0, %v708
    %v710 = vpop.f32.mrf.mxu0
    %v711 = vpop.f32.mrf.mxu0
    %712 = vdwg.mxu0
    %v713 = vadd.f32 %v606, %v666
    %v714 = vadd.f32 %v607, %v668
    %v715 = vadd.f32 %v608, %v707
    %v716 = vadd.f32 %v609, %v709
    %717 = vrot.lane.b32.xlu0 %v79, 127
    %v718 = vpop.permute.xlu0 %717
    %719 = vrot.lane.b32.xlu0 %v83, 127
    %v720 = vpop.permute.xlu0 %719
    %721 = vrot.lane.b32.xlu0 %v80, 127
    %v722 = vpop.permute.xlu0 %721
    %723 = vrot.lane.b32.xlu0 %v84, 127
    %v724 = vpop.permute.xlu0 %723
    %vm725 = vcmp.lt.s32.totalorder %v29, 127
    %v726 = vsel %vm725, %v722, %v724
    %v727 = vsel %vm725, %v720, %v722
    %v728 = vsel %vm725, %v718, %v720
    %v729 = vsel %vm725, %v724, %v718
    %v730 = vsel %vm57, 1, 0
    %v731 = vsel %vm58, 1, 0
    %v732 = vsel %vm59, 1, 0
    %v733 = vsel %vm60, 1, 0
    %vm734 = vcmp.eq.s32.totalorder %v730, 1
    %vm735 = vcmp.eq.s32.totalorder %v731, 1
    %vm736 = vcmp.eq.s32.totalorder %v732, 1
    %vm737 = vcmp.eq.s32.totalorder %v733, 1
    %v738 = vsel %vm734, %v728, 0.0
    %v739 = vsel %vm735, %v727, 0.0
    %v740 = vsel %vm736, %v726, 0.0
    %v741 = vsel %vm737, %v729, 0.0
    %v742 = vpack.c.bf16 %v738, %v738
    %v743 = vpack.c.bf16 %v739, %v739
    %v744 = vpack.c.bf16 %v740, %v740
    %v745 = vpack.c.bf16 %v741, %v741
    %746 = vrot.lane.b32.xlu0 %v147, 108
    %v747 = vpop.permute.xlu0 %746
    %v749 = vsel %vm150, %v747, 0
    %v752 = vsel %vm154, %v742, 0
    %v755 = vsel %vm154, %v743, 0
    %v758 = vsel %vm154, %v744, 0
    %v761 = vsel %vm154, %v745, 0
    %763 = vmatprep.subr.bf16.mxu0 0
    %764 = vmatpush1.bf16.msra.mxu0 0
    %765 = vmatprep.subr.bf16.mxu0 0
    %766 = vmatpush1.bf16.msra.mxu0 0
    %767 = vmatprep.subr.bf16.mxu0 0
    %768 = vmatpush1.bf16.msra.mxu0 0
    %769 = vmatprep.subr.bf16.mxu0 0
    %770 = vmatpush1.bf16.msra.mxu0 0
    %771 = vmatprep.subr.bf16.mxu0 0
    %772 = vmatpush1.bf16.msra.mxu0 0
    %773 = vmatprep.subr.bf16.mxu0 0
    %774 = vmatpush1.bf16.msra.mxu0 0
    %775 = vmatprep.subr.bf16.mxu0 0
    %776 = vmatpush1.bf16.msra.mxu0 0
    %777 = vmatprep.subr.bf16.mxu0 %v755
    %778 = vmatpush1.bf16.msra.mxu0 %v752
    %779 = vmatprep.subr.bf16.mxu0 0
    %780 = vmatpush2.bf16.msra.mxu0 0
    %781 = vmatprep.subr.bf16.mxu0 0
    %782 = vmatpush2.bf16.msra.mxu0 0
    %783 = vmatprep.subr.bf16.mxu0 0
    %784 = vmatpush2.bf16.msra.mxu0 0
    %785 = vmatprep.subr.bf16.mxu0 0
    %786 = vmatpush2.bf16.msra.mxu0 0
    %787 = vmatprep.subr.bf16.mxu0 0
    %788 = vmatpush2.bf16.msra.mxu0 0
    %789 = vmatprep.subr.bf16.mxu0 0
    %790 = vmatpush2.bf16.msra.mxu0 0
    %791 = vmatprep.subr.bf16.mxu0 0
    %792 = vmatpush2.bf16.msra.mxu0 0
    %793 = vmatprep.subr.bf16.mxu0 0
    %794 = vmatpush2.bf16.msra.mxu0 0
    %795 = vmatprep.mubr.bf16.mxu0 0
    %796 = vmatmul.mubr.bf16.gmra.mxu0 %v749
    %v797 = vpop.f32.mrf.mxu0
    %v798 = vadd.f32 0.0, %v797
    %v799 = vpop.f32.mrf.mxu0
    %v800 = vadd.f32 0.0, %v799
    %v801 = vpop.f32.mrf.mxu0
    %v802 = vpop.f32.mrf.mxu0
    %803 = vdwg.mxu0
    %804 = vmatprep.subr.bf16.mxu0 0
    %805 = vmatpush1.bf16.msra.mxu0 0
    %806 = vmatprep.subr.bf16.mxu0 0
    %807 = vmatpush1.bf16.msra.mxu0 0
    %808 = vmatprep.subr.bf16.mxu0 0
    %809 = vmatpush1.bf16.msra.mxu0 0
    %810 = vmatprep.subr.bf16.mxu0 0
    %811 = vmatpush1.bf16.msra.mxu0 0
    %812 = vmatprep.subr.bf16.mxu0 0
    %813 = vmatpush1.bf16.msra.mxu0 0
    %814 = vmatprep.subr.bf16.mxu0 0
    %815 = vmatpush1.bf16.msra.mxu0 0
    %816 = vmatprep.subr.bf16.mxu0 0
    %817 = vmatpush1.bf16.msra.mxu0 0
    %818 = vmatprep.subr.bf16.mxu0 %v761
    %819 = vmatpush1.bf16.msra.mxu0 %v758
    %820 = vmatprep.subr.bf16.mxu0 0
    %821 = vmatpush2.bf16.msra.mxu0 0
    %822 = vmatprep.subr.bf16.mxu0 0
    %823 = vmatpush2.bf16.msra.mxu0 0
    %824 = vmatprep.subr.bf16.mxu0 0
    %825 = vmatpush2.bf16.msra.mxu0 0
    %826 = vmatprep.subr.bf16.mxu0 0
    %827 = vmatpush2.bf16.msra.mxu0 0
    %828 = vmatprep.subr.bf16.mxu0 0
    %829 = vmatpush2.bf16.msra.mxu0 0
    %830 = vmatprep.subr.bf16.mxu0 0
    %831 = vmatpush2.bf16.msra.mxu0 0
    %832 = vmatprep.subr.bf16.mxu0 0
    %833 = vmatpush2.bf16.msra.mxu0 0
    %834 = vmatprep.subr.bf16.mxu0 0
    %835 = vmatpush2.bf16.msra.mxu0 0
    %836 = vmatprep.mubr.bf16.mxu0 0
    %837 = vmatmul.mubr.bf16.gmra.mxu0 %v749
    %v838 = vpop.f32.mrf.mxu0
    %v839 = vadd.f32 0.0, %v838
    %v840 = vpop.f32.mrf.mxu0
    %v841 = vadd.f32 0.0, %v840
    %v842 = vpop.f32.mrf.mxu0
    %v843 = vpop.f32.mrf.mxu0
    %844 = vdwg.mxu0
    %v845 = vadd.f32 %v713, %v798
    %v846 = vadd.f32 %v714, %v800
    %v847 = vadd.f32 %v715, %v839
    %v848 = vadd.f32 %v716, %v841
    %849 = vrot.lane.b32.xlu0 %v79, 113
    %v850 = vpop.permute.xlu0 %849
    %851 = vrot.lane.b32.xlu0 %v83, 113
    %v852 = vpop.permute.xlu0 %851
    %853 = vrot.lane.b32.xlu0 %v80, 113
    %v854 = vpop.permute.xlu0 %853
    %855 = vrot.lane.b32.xlu0 %v84, 113
    %v856 = vpop.permute.xlu0 %855
    %vm857 = vcmp.lt.s32.totalorder %v29, 113
    %v858 = vsel %vm857, %v854, %v856
    %v859 = vsel %vm857, %v852, %v854
    %v860 = vsel %vm857, %v850, %v852
    %v861 = vsel %vm857, %v856, %v850
    %v862 = vsel %vm69, 1, 0
    %v863 = vsel %vm70, 1, 0
    %v864 = vsel %vm71, 1, 0
    %v865 = vsel %vm72, 1, 0
    %vm866 = vcmp.eq.s32.totalorder %v862, 1
    %vm867 = vcmp.eq.s32.totalorder %v863, 1
    %vm868 = vcmp.eq.s32.totalorder %v864, 1
    %vm869 = vcmp.eq.s32.totalorder %v865, 1
    %v870 = vsel %vm866, %v860, 0.0
    %v871 = vsel %vm867, %v859, 0.0
    %v872 = vsel %vm868, %v858, 0.0
    %v873 = vsel %vm869, %v861, 0.0
    %v874 = vpack.c.bf16 %v870, %v870
    %v875 = vpack.c.bf16 %v871, %v871
    %v876 = vpack.c.bf16 %v872, %v872
    %v877 = vpack.c.bf16 %v873, %v873
    %878 = vrot.lane.b32.xlu0 %v147, 104
    %v879 = vpop.permute.xlu0 %878
    %v881 = vsel %vm150, %v879, 0
    %v884 = vsel %vm154, %v874, 0
    %v887 = vsel %vm154, %v875, 0
    %v890 = vsel %vm154, %v876, 0
    %v893 = vsel %vm154, %v877, 0
    %895 = vmatprep.subr.bf16.mxu0 0
    %896 = vmatpush1.bf16.msra.mxu0 0
    %897 = vmatprep.subr.bf16.mxu0 0
    %898 = vmatpush1.bf16.msra.mxu0 0
    %899 = vmatprep.subr.bf16.mxu0 0
    %900 = vmatpush1.bf16.msra.mxu0 0
    %901 = vmatprep.subr.bf16.mxu0 0
    %902 = vmatpush1.bf16.msra.mxu0 0
    %903 = vmatprep.subr.bf16.mxu0 0
    %904 = vmatpush1.bf16.msra.mxu0 0
    %905 = vmatprep.subr.bf16.mxu0 0
    %906 = vmatpush1.bf16.msra.mxu0 0
    %907 = vmatprep.subr.bf16.mxu0 0
    %908 = vmatpush1.bf16.msra.mxu0 0
    %909 = vmatprep.subr.bf16.mxu0 %v887
    %910 = vmatpush1.bf16.msra.mxu0 %v884
    %911 = vmatprep.subr.bf16.mxu0 0
    %912 = vmatpush2.bf16.msra.mxu0 0
    %913 = vmatprep.subr.bf16.mxu0 0
    %914 = vmatpush2.bf16.msra.mxu0 0
    %915 = vmatprep.subr.bf16.mxu0 0
    %916 = vmatpush2.bf16.msra.mxu0 0
    %917 = vmatprep.subr.bf16.mxu0 0
    %918 = vmatpush2.bf16.msra.mxu0 0
    %919 = vmatprep.subr.bf16.mxu0 0
    %920 = vmatpush2.bf16.msra.mxu0 0
    %921 = vmatprep.subr.bf16.mxu0 0
    %922 = vmatpush2.bf16.msra.mxu0 0
    %923 = vmatprep.subr.bf16.mxu0 0
    %924 = vmatpush2.bf16.msra.mxu0 0
    %925 = vmatprep.subr.bf16.mxu0 0
    %926 = vmatpush2.bf16.msra.mxu0 0
    %927 = vmatprep.mubr.bf16.mxu0 0
    %928 = vmatmul.mubr.bf16.gmra.mxu0 %v881
    %v929 = vpop.f32.mrf.mxu0
    %v930 = vadd.f32 0.0, %v929
    %v931 = vpop.f32.mrf.mxu0
    %v932 = vadd.f32 0.0, %v931
    %v933 = vpop.f32.mrf.mxu0
    %v934 = vpop.f32.mrf.mxu0
    %935 = vdwg.mxu0
    %936 = vmatprep.subr.bf16.mxu0 0
    %937 = vmatpush1.bf16.msra.mxu0 0
    %938 = vmatprep.subr.bf16.mxu0 0
    %939 = vmatpush1.bf16.msra.mxu0 0
    %940 = vmatprep.subr.bf16.mxu0 0
    %941 = vmatpush1.bf16.msra.mxu0 0
    %942 = vmatprep.subr.bf16.mxu0 0
    %943 = vmatpush1.bf16.msra.mxu0 0
    %944 = vmatprep.subr.bf16.mxu0 0
    %945 = vmatpush1.bf16.msra.mxu0 0
    %946 = vmatprep.subr.bf16.mxu0 0
    %947 = vmatpush1.bf16.msra.mxu0 0
    %948 = vmatprep.subr.bf16.mxu0 0
    %949 = vmatpush1.bf16.msra.mxu0 0
    %950 = vmatprep.subr.bf16.mxu0 %v893
    %951 = vmatpush1.bf16.msra.mxu0 %v890
    %952 = vmatprep.subr.bf16.mxu0 0
    %953 = vmatpush2.bf16.msra.mxu0 0
    %954 = vmatprep.subr.bf16.mxu0 0
    %955 = vmatpush2.bf16.msra.mxu0 0
    %956 = vmatprep.subr.bf16.mxu0 0
    %957 = vmatpush2.bf16.msra.mxu0 0
    %958 = vmatprep.subr.bf16.mxu0 0
    %959 = vmatpush2.bf16.msra.mxu0 0
    %960 = vmatprep.subr.bf16.mxu0 0
    %961 = vmatpush2.bf16.msra.mxu0 0
    %962 = vmatprep.subr.bf16.mxu0 0
    %963 = vmatpush2.bf16.msra.mxu0 0
    %964 = vmatprep.subr.bf16.mxu0 0
    %965 = vmatpush2.bf16.msra.mxu0 0
    %966 = vmatprep.subr.bf16.mxu0 0
    %967 = vmatpush2.bf16.msra.mxu0 0
    %968 = vmatprep.mubr.bf16.mxu0 0
    %969 = vmatmul.mubr.bf16.gmra.mxu0 %v881
    %v970 = vpop.f32.mrf.mxu0
    %v971 = vadd.f32 0.0, %v970
    %v972 = vpop.f32.mrf.mxu0
    %v973 = vadd.f32 0.0, %v972
    %v974 = vpop.f32.mrf.mxu0
    %v975 = vpop.f32.mrf.mxu0
    %976 = vdwg.mxu0
    %v977 = vadd.f32 %v845, %v930
    %v978 = vadd.f32 %v846, %v932
    %v979 = vadd.f32 %v847, %v971
    %v980 = vadd.f32 %v848, %v973
    %981 = vrot.lane.b32.xlu0 %v79, 112
    %v982 = vpop.permute.xlu0 %981
    %983 = vrot.lane.b32.xlu0 %v83, 112
    %v984 = vpop.permute.xlu0 %983
    %985 = vrot.lane.b32.xlu0 %v80, 112
    %v986 = vpop.permute.xlu0 %985
    %987 = vrot.lane.b32.xlu0 %v84, 112
    %v988 = vpop.permute.xlu0 %987
    %vm989 = vcmp.lt.s32.totalorder %v29, 112
    %v990 = vsel %vm989, %v986, %v988
    %v991 = vsel %vm989, %v984, %v986
    %v992 = vsel %vm989, %v982, %v984
    %v993 = vsel %vm989, %v988, %v982
    %v994 = vsel %vm65, 1, 0
    %v995 = vsel %vm66, 1, 0
    %v996 = vsel %vm67, 1, 0
    %v997 = vsel %vm68, 1, 0
    %vm998 = vcmp.eq.s32.totalorder %v994, 1
    %vm999 = vcmp.eq.s32.totalorder %v995, 1
    %vm1000 = vcmp.eq.s32.totalorder %v996, 1
    %vm1001 = vcmp.eq.s32.totalorder %v997, 1
    %v1002 = vsel %vm998, %v992, 0.0
    %v1003 = vsel %vm999, %v991, 0.0
    %v1004 = vsel %vm1000, %v990, 0.0
    %v1005 = vsel %vm1001, %v993, 0.0
    %v1006 = vpack.c.bf16 %v1002, %v1002
    %v1007 = vpack.c.bf16 %v1003, %v1003
    %v1008 = vpack.c.bf16 %v1004, %v1004
    %v1009 = vpack.c.bf16 %v1005, %v1005
    %1010 = vrot.lane.b32.xlu0 %v147, 100
    %v1011 = vpop.permute.xlu0 %1010
    %v1013 = vsel %vm150, %v1011, 0
    %v1016 = vsel %vm154, %v1006, 0
    %v1019 = vsel %vm154, %v1007, 0
    %v1022 = vsel %vm154, %v1008, 0
    %v1025 = vsel %vm154, %v1009, 0
    %1027 = vmatprep.subr.bf16.mxu0 0
    %1028 = vmatpush1.bf16.msra.mxu0 0
    %1029 = vmatprep.subr.bf16.mxu0 0
    %1030 = vmatpush1.bf16.msra.mxu0 0
    %1031 = vmatprep.subr.bf16.mxu0 0
    %1032 = vmatpush1.bf16.msra.mxu0 0
    %1033 = vmatprep.subr.bf16.mxu0 0
    %1034 = vmatpush1.bf16.msra.mxu0 0
    %1035 = vmatprep.subr.bf16.mxu0 0
    %1036 = vmatpush1.bf16.msra.mxu0 0
    %1037 = vmatprep.subr.bf16.mxu0 0
    %1038 = vmatpush1.bf16.msra.mxu0 0
    %1039 = vmatprep.subr.bf16.mxu0 0
    %1040 = vmatpush1.bf16.msra.mxu0 0
    %1041 = vmatprep.subr.bf16.mxu0 %v1019
    %1042 = vmatpush1.bf16.msra.mxu0 %v1016
    %1043 = vmatprep.subr.bf16.mxu0 0
    %1044 = vmatpush2.bf16.msra.mxu0 0
    %1045 = vmatprep.subr.bf16.mxu0 0
    %1046 = vmatpush2.bf16.msra.mxu0 0
    %1047 = vmatprep.subr.bf16.mxu0 0
    %1048 = vmatpush2.bf16.msra.mxu0 0
    %1049 = vmatprep.subr.bf16.mxu0 0
    %1050 = vmatpush2.bf16.msra.mxu0 0
    %1051 = vmatprep.subr.bf16.mxu0 0
    %1052 = vmatpush2.bf16.msra.mxu0 0
    %1053 = vmatprep.subr.bf16.mxu0 0
    %1054 = vmatpush2.bf16.msra.mxu0 0
    %1055 = vmatprep.subr.bf16.mxu0 0
    %1056 = vmatpush2.bf16.msra.mxu0 0
    %1057 = vmatprep.subr.bf16.mxu0 0
    %1058 = vmatpush2.bf16.msra.mxu0 0
    %1059 = vmatprep.mubr.bf16.mxu0 0
    %1060 = vmatmul.mubr.bf16.gmra.mxu0 %v1013
    %v1061 = vpop.f32.mrf.mxu0
    %v1062 = vadd.f32 0.0, %v1061
    %v1063 = vpop.f32.mrf.mxu0
    %v1064 = vadd.f32 0.0, %v1063
    %v1065 = vpop.f32.mrf.mxu0
    %v1066 = vpop.f32.mrf.mxu0
    %1067 = vdwg.mxu0
    %1068 = vmatprep.subr.bf16.mxu0 0
    %1069 = vmatpush1.bf16.msra.mxu0 0
    %1070 = vmatprep.subr.bf16.mxu0 0
    %1071 = vmatpush1.bf16.msra.mxu0 0
    %1072 = vmatprep.subr.bf16.mxu0 0
    %1073 = vmatpush1.bf16.msra.mxu0 0
    %1074 = vmatprep.subr.bf16.mxu0 0
    %1075 = vmatpush1.bf16.msra.mxu0 0
    %1076 = vmatprep.subr.bf16.mxu0 0
    %1077 = vmatpush1.bf16.msra.mxu0 0
    %1078 = vmatprep.subr.bf16.mxu0 0
    %1079 = vmatpush1.bf16.msra.mxu0 0
    %1080 = vmatprep.subr.bf16.mxu0 0
    %1081 = vmatpush1.bf16.msra.mxu0 0
    %1082 = vmatprep.subr.bf16.mxu0 %v1025
    %1083 = vmatpush1.bf16.msra.mxu0 %v1022
    %1084 = vmatprep.subr.bf16.mxu0 0
    %1085 = vmatpush2.bf16.msra.mxu0 0
    %1086 = vmatprep.subr.bf16.mxu0 0
    %1087 = vmatpush2.bf16.msra.mxu0 0
    %1088 = vmatprep.subr.bf16.mxu0 0
    %1089 = vmatpush2.bf16.msra.mxu0 0
    %1090 = vmatprep.subr.bf16.mxu0 0
    %1091 = vmatpush2.bf16.msra.mxu0 0
    %1092 = vmatprep.subr.bf16.mxu0 0
    %1093 = vmatpush2.bf16.msra.mxu0 0
    %1094 = vmatprep.subr.bf16.mxu0 0
    %1095 = vmatpush2.bf16.msra.mxu0 0
    %1096 = vmatprep.subr.bf16.mxu0 0
    %1097 = vmatpush2.bf16.msra.mxu0 0
    %1098 = vmatprep.subr.bf16.mxu0 0
    %1099 = vmatpush2.bf16.msra.mxu0 0
    %1100 = vmatprep.mubr.bf16.mxu0 0
    %1101 = vmatmul.mubr.bf16.gmra.mxu0 %v1013
    %v1102 = vpop.f32.mrf.mxu0
    %v1103 = vadd.f32 0.0, %v1102
    %v1104 = vpop.f32.mrf.mxu0
    %v1105 = vadd.f32 0.0, %v1104
    %v1106 = vpop.f32.mrf.mxu0
    %v1107 = vpop.f32.mrf.mxu0
    %1108 = vdwg.mxu0
    %v1109 = vadd.f32 %v977, %v1062
    %v1110 = vadd.f32 %v978, %v1064
    %v1111 = vadd.f32 %v979, %v1103
    %v1112 = vadd.f32 %v980, %v1105
    %1113 = vrot.lane.b32.xlu0 %v79, 111
    %v1114 = vpop.permute.xlu0 %1113
    %1115 = vrot.lane.b32.xlu0 %v83, 111
    %v1116 = vpop.permute.xlu0 %1115
    %1117 = vrot.lane.b32.xlu0 %v80, 111
    %v1118 = vpop.permute.xlu0 %1117
    %1119 = vrot.lane.b32.xlu0 %v84, 111
    %v1120 = vpop.permute.xlu0 %1119
    %vm1121 = vcmp.lt.s32.totalorder %v29, 111
    %v1122 = vsel %vm1121, %v1118, %v1120
    %v1123 = vsel %vm1121, %v1116, %v1118
    %v1124 = vsel %vm1121, %v1114, %v1116
    %v1125 = vsel %vm1121, %v1120, %v1114
    %v1126 = vsel %vm73, 1, 0
    %v1127 = vsel %vm74, 1, 0
    %v1128 = vsel %vm75, 1, 0
    %v1129 = vsel %vm76, 1, 0
    %vm1130 = vcmp.eq.s32.totalorder %v1126, 1
    %vm1131 = vcmp.eq.s32.totalorder %v1127, 1
    %vm1132 = vcmp.eq.s32.totalorder %v1128, 1
    %vm1133 = vcmp.eq.s32.totalorder %v1129, 1
    %v1134 = vsel %vm1130, %v1124, 0.0
    %v1135 = vsel %vm1131, %v1123, 0.0
    %v1136 = vsel %vm1132, %v1122, 0.0
    %v1137 = vsel %vm1133, %v1125, 0.0
    %v1138 = vpack.c.bf16 %v1134, %v1134
    %v1139 = vpack.c.bf16 %v1135, %v1135
    %v1140 = vpack.c.bf16 %v1136, %v1136
    %v1141 = vpack.c.bf16 %v1137, %v1137
    %1142 = vrot.lane.b32.xlu0 %v147, 96
    %v1143 = vpop.permute.xlu0 %1142
    %v1145 = vsel %vm150, %v1143, 0
    %v1148 = vsel %vm154, %v1138, 0
    %v1151 = vsel %vm154, %v1139, 0
    %v1154 = vsel %vm154, %v1140, 0
    %v1157 = vsel %vm154, %v1141, 0
    %1159 = vmatprep.subr.bf16.mxu0 0
    %1160 = vmatpush1.bf16.msra.mxu0 0
    %1161 = vmatprep.subr.bf16.mxu0 0
    %1162 = vmatpush1.bf16.msra.mxu0 0
    %1163 = vmatprep.subr.bf16.mxu0 0
    %1164 = vmatpush1.bf16.msra.mxu0 0
    %1165 = vmatprep.subr.bf16.mxu0 0
    %1166 = vmatpush1.bf16.msra.mxu0 0
    %1167 = vmatprep.subr.bf16.mxu0 0
    %1168 = vmatpush1.bf16.msra.mxu0 0
    %1169 = vmatprep.subr.bf16.mxu0 0
    %1170 = vmatpush1.bf16.msra.mxu0 0
    %1171 = vmatprep.subr.bf16.mxu0 0
    %1172 = vmatpush1.bf16.msra.mxu0 0
    %1173 = vmatprep.subr.bf16.mxu0 %v1151
    %1174 = vmatpush1.bf16.msra.mxu0 %v1148
    %1175 = vmatprep.subr.bf16.mxu0 0
    %1176 = vmatpush2.bf16.msra.mxu0 0
    %1177 = vmatprep.subr.bf16.mxu0 0
    %1178 = vmatpush2.bf16.msra.mxu0 0
    %1179 = vmatprep.subr.bf16.mxu0 0
    %1180 = vmatpush2.bf16.msra.mxu0 0
    %1181 = vmatprep.subr.bf16.mxu0 0
    %1182 = vmatpush2.bf16.msra.mxu0 0
    %1183 = vmatprep.subr.bf16.mxu0 0
    %1184 = vmatpush2.bf16.msra.mxu0 0
    %1185 = vmatprep.subr.bf16.mxu0 0
    %1186 = vmatpush2.bf16.msra.mxu0 0
    %1187 = vmatprep.subr.bf16.mxu0 0
    %1188 = vmatpush2.bf16.msra.mxu0 0
    %1189 = vmatprep.subr.bf16.mxu0 0
    %1190 = vmatpush2.bf16.msra.mxu0 0
    %1191 = vmatprep.mubr.bf16.mxu0 0
    %1192 = vmatmul.mubr.bf16.gmra.mxu0 %v1145
    %v1193 = vpop.f32.mrf.mxu0
    %v1194 = vadd.f32 0.0, %v1193
    %v1195 = vpop.f32.mrf.mxu0
    %v1196 = vadd.f32 0.0, %v1195
    %v1197 = vpop.f32.mrf.mxu0
    %v1198 = vpop.f32.mrf.mxu0
    %1199 = vdwg.mxu0
    %1200 = vmatprep.subr.bf16.mxu0 0
    %1201 = vmatpush1.bf16.msra.mxu0 0
    %1202 = vmatprep.subr.bf16.mxu0 0
    %1203 = vmatpush1.bf16.msra.mxu0 0
    %1204 = vmatprep.subr.bf16.mxu0 0
    %1205 = vmatpush1.bf16.msra.mxu0 0
    %1206 = vmatprep.subr.bf16.mxu0 0
    %1207 = vmatpush1.bf16.msra.mxu0 0
    %1208 = vmatprep.subr.bf16.mxu0 0
    %1209 = vmatpush1.bf16.msra.mxu0 0
    %1210 = vmatprep.subr.bf16.mxu0 0
    %1211 = vmatpush1.bf16.msra.mxu0 0
    %1212 = vmatprep.subr.bf16.mxu0 0
    %1213 = vmatpush1.bf16.msra.mxu0 0
    %1214 = vmatprep.subr.bf16.mxu0 %v1157
    %1215 = vmatpush1.bf16.msra.mxu0 %v1154
    %1216 = vmatprep.subr.bf16.mxu0 0
    %1217 = vmatpush2.bf16.msra.mxu0 0
    %1218 = vmatprep.subr.bf16.mxu0 0
    %1219 = vmatpush2.bf16.msra.mxu0 0
    %1220 = vmatprep.subr.bf16.mxu0 0
    %1221 = vmatpush2.bf16.msra.mxu0 0
    %1222 = vmatprep.subr.bf16.mxu0 0
    %1223 = vmatpush2.bf16.msra.mxu0 0
    %1224 = vmatprep.subr.bf16.mxu0 0
    %1225 = vmatpush2.bf16.msra.mxu0 0
    %1226 = vmatprep.subr.bf16.mxu0 0
    %1227 = vmatpush2.bf16.msra.mxu0 0
    %1228 = vmatprep.subr.bf16.mxu0 0
    %1229 = vmatpush2.bf16.msra.mxu0 0
    %1230 = vmatprep.subr.bf16.mxu0 0
    %1231 = vmatpush2.bf16.msra.mxu0 0
    %1232 = vmatprep.mubr.bf16.mxu0 0
    %1233 = vmatmul.mubr.bf16.gmra.mxu0 %v1145
    %v1234 = vpop.f32.mrf.mxu0
    %v1235 = vadd.f32 0.0, %v1234
    %v1236 = vpop.f32.mrf.mxu0
    %v1237 = vadd.f32 0.0, %v1236
    %v1238 = vpop.f32.mrf.mxu0
    %v1239 = vpop.f32.mrf.mxu0
    %1240 = vdwg.mxu0
    %v1241 = vadd.f32 %v1109, %v1194
    %v1242 = vadd.f32 %v1110, %v1196
    %v1243 = vadd.f32 %v1111, %v1235
    %v1244 = vadd.f32 %v1112, %v1237
    %vm1245 = vcmask 1043456
    %v1246 = vsel %vm1245, %v1241, 0.0
    %v1247 = vsel %vm1245, %v1242, 0.0
    %v1248 = vadd.f32 %v1246, %v1247
    %v1249 = vsel %vm1245, %v1243, 0.0
    %v1250 = vadd.f32 %v1248, %v1249
    %v1251 = vsel %vm1245, %v1244, 0.0
    %v1252 = vadd.f32 %v1250, %v1251
    %1253 = vadd.xlane.f32.xlu0 %v1252
    %v1254 = vpop.xlane.xlu0 %1253
    %v1255 = vmul.f32 %v1241, %v1241
    %v1256 = vmul.f32 %v1242, %v1242
    %v1257 = vmul.f32 %v1243, %v1243
    %v1258 = vmul.f32 %v1244, %v1244
    %v1259 = vsel %vm1245, %v1255, 0.0
    %v1260 = vsel %vm1245, %v1256, 0.0
    %v1261 = vadd.f32 %v1259, %v1260
    %v1262 = vsel %vm1245, %v1257, 0.0
    %v1263 = vadd.f32 %v1261, %v1262
    %v1264 = vsel %vm1245, %v1258, 0.0
    %v1265 = vadd.f32 %v1263, %v1264
    %1266 = vadd.xlane.f32.xlu0 %v1265
    %v1267 = vpop.xlane.xlu0 %1266
    %v1268 = vmul.f32 %v1254, 0.001953125
    %v1269 = vmul.f32 %v1267, 0.001953125
    %v1270 = vmul.f32 %v1268, %v1268
    %v1271 = vsub.f32 %v1269, %v1270
    %v1272 = vld [vmem:[%s2] sm:$0xf]
    %v1273 = vadd.f32 %v1271, 1e-05
    %v1274 = vrsqrt.pop %v1273
    %v1275 = vmul.f32 %v1272, %v1274
    %v1276 = vsub.f32 %v1241, %v1268
    %v1277 = vsub.f32 %v1242, %v1268
    %v1278 = vsub.f32 %v1243, %v1268
    %v1279 = vsub.f32 %v1244, %v1268
    %1281 = vset.pattern.permute.xlu0 0
    %1282 = vperm.xlu0 %1281, %v1275
    %v1283 = vpop.permute.xlu0 %1282
    %v1285 = vmul.f32 %v1276, %v1283
    %v1286 = vmul.f32 %v1277, %v1283
    %v1287 = vmul.f32 %v1278, %v1283
    %v1288 = vmul.f32 %v1279, %v1283
    %1290 = vset.pattern.permute.xlu0 1
    %1291 = vperm.xlu0 %1290, %v1272
    %v1292 = vpop.permute.xlu0 %1291
    %v1294 = vadd.f32 %v1285, %v1292
    %v1295 = vadd.f32 %v1286, %v1292
    %v1296 = vadd.f32 %v1287, %v1292
    %v1297 = vadd.f32 %v1288, %v1292
    %v1298 = vmax.f32 %v1294, 0.0
    %v1299 = vmax.f32 %v1295, 0.0
    %v1300 = vmax.f32 %v1296, 0.0
    %v1301 = vmax.f32 %v1297, 0.0
    %1302 = vrot.lane.b32.xlu0 %v1298, 17
    %v1303 = vpop.permute.xlu0 %1302
    %1304 = vrot.lane.b32.xlu0 %v1299, 17
    %v1305 = vpop.permute.xlu0 %1304
    %1306 = vrot.lane.b32.xlu0 %v1300, 17
    %v1307 = vpop.permute.xlu0 %1306
    %1308 = vrot.lane.b32.xlu0 %v1301, 17
    %v1309 = vpop.permute.xlu0 %1308
    %v1310 = vsel %vm95, %v1307, %v1309
    %v1311 = vsel %vm95, %v1305, %v1307
    %v1312 = vsel %vm95, %v1303, %v1305
    %v1313 = vsel %vm95, %v1309, %v1303
    %v1314 = vsel %vm104, %v1313, 0.0
    %v1315 = vsel %vm105, %v1312, 0.0
    %v1316 = vsel %vm106, %v1311, 0.0
    %v1317 = vsel %vm107, %v1310, 0.0
    %v1318 = vpack.c.bf16 %v1314, %v1314
    %v1319 = vpack.c.bf16 %v1315, %v1315
    %v1320 = vpack.c.bf16 %v1316, %v1316
    %v1321 = vpack.c.bf16 %v1317, %v1317
    %1322 = vrot.lane.b32.xlu0 %v1298, 16
    %v1323 = vpop.permute.xlu0 %1322
    %1324 = vrot.lane.b32.xlu0 %v1299, 16
    %v1325 = vpop.permute.xlu0 %1324
    %1326 = vrot.lane.b32.xlu0 %v1300, 16
    %v1327 = vpop.permute.xlu0 %1326
    %1328 = vrot.lane.b32.xlu0 %v1301, 16
    %v1329 = vpop.permute.xlu0 %1328
    %v1330 = vsel %vm124, %v1327, %v1329
    %v1331 = vsel %vm124, %v1325, %v1327
    %v1332 = vsel %vm124, %v1323, %v1325
    %v1333 = vsel %vm124, %v1329, %v1323
    %v1334 = vsel %vm133, %v1333, 0.0
    %v1335 = vsel %vm134, %v1332, 0.0
    %v1336 = vsel %vm135, %v1331, 0.0
    %v1337 = vsel %vm136, %v1330, 0.0
    %v1338 = vpack.c.bf16 %v1334, %v1334
    %v1339 = vpack.c.bf16 %v1335, %v1335
    %v1340 = vpack.c.bf16 %v1336, %v1336
    %v1341 = vpack.c.bf16 %v1337, %v1337
    %v1342 = vrot.slane %v147, 2
    %1343 = vrot.lane.b32.xlu0 %v1342, 124
    %v1344 = vpop.permute.xlu0 %1343
    %v1346 = vsel %vm150, %v1344, 0
    %v1349 = vsel %vm154, %v1338, 0
    %v1352 = vsel %vm154, %v1339, 0
    %v1355 = vsel %vm154, %v1340, 0
    %v1358 = vsel %vm154, %v1341, 0
    %1360 = vmatprep.subr.bf16.mxu0 0
    %1361 = vmatpush1.bf16.msra.mxu0 0
    %1362 = vmatprep.subr.bf16.mxu0 0
    %1363 = vmatpush1.bf16.msra.mxu0 0
    %1364 = vmatprep.subr.bf16.mxu0 0
    %1365 = vmatpush1.bf16.msra.mxu0 0
    %1366 = vmatprep.subr.bf16.mxu0 0
    %1367 = vmatpush1.bf16.msra.mxu0 0
    %1368 = vmatprep.subr.bf16.mxu0 0
    %1369 = vmatpush1.bf16.msra.mxu0 0
    %1370 = vmatprep.subr.bf16.mxu0 0
    %1371 = vmatpush1.bf16.msra.mxu0 0
    %1372 = vmatprep.subr.bf16.mxu0 0
    %1373 = vmatpush1.bf16.msra.mxu0 0
    %1374 = vmatprep.subr.bf16.mxu0 %v1352
    %1375 = vmatpush1.bf16.msra.mxu0 %v1349
    %1376 = vmatprep.subr.bf16.mxu0 0
    %1377 = vmatpush2.bf16.msra.mxu0 0
    %1378 = vmatprep.subr.bf16.mxu0 0
    %1379 = vmatpush2.bf16.msra.mxu0 0
    %1380 = vmatprep.subr.bf16.mxu0 0
    %1381 = vmatpush2.bf16.msra.mxu0 0
    %1382 = vmatprep.subr.bf16.mxu0 0
    %1383 = vmatpush2.bf16.msra.mxu0 0
    %1384 = vmatprep.subr.bf16.mxu0 0
    %1385 = vmatpush2.bf16.msra.mxu0 0
    %1386 = vmatprep.subr.bf16.mxu0 0
    %1387 = vmatpush2.bf16.msra.mxu0 0
    %1388 = vmatprep.subr.bf16.mxu0 0
    %1389 = vmatpush2.bf16.msra.mxu0 0
    %1390 = vmatprep.subr.bf16.mxu0 0
    %1391 = vmatpush2.bf16.msra.mxu0 0
    %1392 = vmatprep.mubr.bf16.mxu0 0
    %1393 = vmatmul.mubr.bf16.gmra.mxu0 %v1346
    %v1394 = vpop.f32.mrf.mxu0
    %v1395 = vadd.f32 0.0, %v1394
    %v1396 = vpop.f32.mrf.mxu0
    %v1397 = vadd.f32 0.0, %v1396
    %v1398 = vpop.f32.mrf.mxu0
    %v1399 = vpop.f32.mrf.mxu0
    %1400 = vdwg.mxu0
    %1401 = vmatprep.subr.bf16.mxu0 0
    %1402 = vmatpush1.bf16.msra.mxu0 0
    %1403 = vmatprep.subr.bf16.mxu0 0
    %1404 = vmatpush1.bf16.msra.mxu0 0
    %1405 = vmatprep.subr.bf16.mxu0 0
    %1406 = vmatpush1.bf16.msra.mxu0 0
    %1407 = vmatprep.subr.bf16.mxu0 0
    %1408 = vmatpush1.bf16.msra.mxu0 0
    %1409 = vmatprep.subr.bf16.mxu0 0
    %1410 = vmatpush1.bf16.msra.mxu0 0
    %1411 = vmatprep.subr.bf16.mxu0 0
    %1412 = vmatpush1.bf16.msra.mxu0 0
    %1413 = vmatprep.subr.bf16.mxu0 0
    %1414 = vmatpush1.bf16.msra.mxu0 0
    %1415 = vmatprep.subr.bf16.mxu0 %v1358
    %1416 = vmatpush1.bf16.msra.mxu0 %v1355
    %1417 = vmatprep.subr.bf16.mxu0 0
    %1418 = vmatpush2.bf16.msra.mxu0 0
    %1419 = vmatprep.subr.bf16.mxu0 0
    %1420 = vmatpush2.bf16.msra.mxu0 0
    %1421 = vmatprep.subr.bf16.mxu0 0
    %1422 = vmatpush2.bf16.msra.mxu0 0
    %1423 = vmatprep.subr.bf16.mxu0 0
    %1424 = vmatpush2.bf16.msra.mxu0 0
    %1425 = vmatprep.subr.bf16.mxu0 0
    %1426 = vmatpush2.bf16.msra.mxu0 0
    %1427 = vmatprep.subr.bf16.mxu0 0
    %1428 = vmatpush2.bf16.msra.mxu0 0
    %1429 = vmatprep.subr.bf16.mxu0 0
    %1430 = vmatpush2.bf16.msra.mxu0 0
    %1431 = vmatprep.subr.bf16.mxu0 0
    %1432 = vmatpush2.bf16.msra.mxu0 0
    %1433 = vmatprep.mubr.bf16.mxu0 0
    %1434 = vmatmul.mubr.bf16.gmra.mxu0 %v1346
    %v1435 = vpop.f32.mrf.mxu0
    %v1436 = vadd.f32 0.0, %v1435
    %v1437 = vpop.f32.mrf.mxu0
    %v1438 = vadd.f32 0.0, %v1437
    %v1439 = vpop.f32.mrf.mxu0
    %v1440 = vpop.f32.mrf.mxu0
    %1441 = vdwg.mxu0
    %v1443 = vsel %vm150, %v1342, 0
    %v1446 = vsel %vm154, %v1318, 0
    %v1449 = vsel %vm154, %v1319, 0
    %v1452 = vsel %vm154, %v1320, 0
    %v1455 = vsel %vm154, %v1321, 0
    %1457 = vmatprep.subr.bf16.mxu0 0
    %1458 = vmatpush1.bf16.msra.mxu0 0
    %1459 = vmatprep.subr.bf16.mxu0 0
    %1460 = vmatpush1.bf16.msra.mxu0 0
    %1461 = vmatprep.subr.bf16.mxu0 0
    %1462 = vmatpush1.bf16.msra.mxu0 0
    %1463 = vmatprep.subr.bf16.mxu0 0
    %1464 = vmatpush1.bf16.msra.mxu0 0
    %1465 = vmatprep.subr.bf16.mxu0 0
    %1466 = vmatpush1.bf16.msra.mxu0 0
    %1467 = vmatprep.subr.bf16.mxu0 0
    %1468 = vmatpush1.bf16.msra.mxu0 0
    %1469 = vmatprep.subr.bf16.mxu0 0
    %1470 = vmatpush1.bf16.msra.mxu0 0
    %1471 = vmatprep.subr.bf16.mxu0 %v1449
    %1472 = vmatpush1.bf16.msra.mxu0 %v1446
    %1473 = vmatprep.subr.bf16.mxu0 0
    %1474 = vmatpush2.bf16.msra.mxu0 0
    %1475 = vmatprep.subr.bf16.mxu0 0
    %1476 = vmatpush2.bf16.msra.mxu0 0
    %1477 = vmatprep.subr.bf16.mxu0 0
    %1478 = vmatpush2.bf16.msra.mxu0 0
    %1479 = vmatprep.subr.bf16.mxu0 0
    %1480 = vmatpush2.bf16.msra.mxu0 0
    %1481 = vmatprep.subr.bf16.mxu0 0
    %1482 = vmatpush2.bf16.msra.mxu0 0
    %1483 = vmatprep.subr.bf16.mxu0 0
    %1484 = vmatpush2.bf16.msra.mxu0 0
    %1485 = vmatprep.subr.bf16.mxu0 0
    %1486 = vmatpush2.bf16.msra.mxu0 0
    %1487 = vmatprep.subr.bf16.mxu0 0
    %1488 = vmatpush2.bf16.msra.mxu0 0
    %1489 = vmatprep.mubr.bf16.mxu0 0
    %1490 = vmatmul.mubr.bf16.gmra.mxu0 %v1443
    %v1491 = vpop.f32.mrf.mxu0
    %v1492 = vadd.f32 %v1395, %v1491
    %v1493 = vpop.f32.mrf.mxu0
    %v1494 = vadd.f32 %v1397, %v1493
    %v1495 = vpop.f32.mrf.mxu0
    %v1496 = vpop.f32.mrf.mxu0
    %1497 = vdwg.mxu0
    %1498 = vmatprep.subr.bf16.mxu0 0
    %1499 = vmatpush1.bf16.msra.mxu0 0
    %1500 = vmatprep.subr.bf16.mxu0 0
    %1501 = vmatpush1.bf16.msra.mxu0 0
    %1502 = vmatprep.subr.bf16.mxu0 0
    %1503 = vmatpush1.bf16.msra.mxu0 0
    %1504 = vmatprep.subr.bf16.mxu0 0
    %1505 = vmatpush1.bf16.msra.mxu0 0
    %1506 = vmatprep.subr.bf16.mxu0 0
    %1507 = vmatpush1.bf16.msra.mxu0 0
    %1508 = vmatprep.subr.bf16.mxu0 0
    %1509 = vmatpush1.bf16.msra.mxu0 0
    %1510 = vmatprep.subr.bf16.mxu0 0
    %1511 = vmatpush1.bf16.msra.mxu0 0
    %1512 = vmatprep.subr.bf16.mxu0 %v1455
    %1513 = vmatpush1.bf16.msra.mxu0 %v1452
    %1514 = vmatprep.subr.bf16.mxu0 0
    %1515 = vmatpush2.bf16.msra.mxu0 0
    %1516 = vmatprep.subr.bf16.mxu0 0
    %1517 = vmatpush2.bf16.msra.mxu0 0
    %1518 = vmatprep.subr.bf16.mxu0 0
    %1519 = vmatpush2.bf16.msra.mxu0 0
    %1520 = vmatprep.subr.bf16.mxu0 0
    %1521 = vmatpush2.bf16.msra.mxu0 0
    %1522 = vmatprep.subr.bf16.mxu0 0
    %1523 = vmatpush2.bf16.msra.mxu0 0
    %1524 = vmatprep.subr.bf16.mxu0 0
    %1525 = vmatpush2.bf16.msra.mxu0 0
    %1526 = vmatprep.subr.bf16.mxu0 0
    %1527 = vmatpush2.bf16.msra.mxu0 0
    %1528 = vmatprep.subr.bf16.mxu0 0
    %1529 = vmatpush2.bf16.msra.mxu0 0
    %1530 = vmatprep.mubr.bf16.mxu0 0
    %1531 = vmatmul.mubr.bf16.gmra.mxu0 %v1443
    %v1532 = vpop.f32.mrf.mxu0
    %v1533 = vadd.f32 %v1436, %v1532
    %v1534 = vpop.f32.mrf.mxu0
    %v1535 = vadd.f32 %v1438, %v1534
    %v1536 = vpop.f32.mrf.mxu0
    %v1537 = vpop.f32.mrf.mxu0
    %1538 = vdwg.mxu0
    %v1540 = vunpack.c.l.b16 %v78
    %v1541 = vpack.c.b16 %v1540, %v1540
    %1542 = vrot.lane.b32.xlu0 %v1541, 124
    %v1543 = vpop.permute.xlu0 %1542
    %v1545 = vsel %vm150, %v1543, 0
    %1547 = vmatprep.subr.bf16.mxu0 0
    %1548 = vmatpush1.bf16.msra.mxu0 0
    %1549 = vmatprep.subr.bf16.mxu0 0
    %1550 = vmatpush1.bf16.msra.mxu0 0
    %1551 = vmatprep.subr.bf16.mxu0 0
    %1552 = vmatpush1.bf16.msra.mxu0 0
    %1553 = vmatprep.subr.bf16.mxu0 0
    %1554 = vmatpush1.bf16.msra.mxu0 0
    %1555 = vmatprep.subr.bf16.mxu0 0
    %1556 = vmatpush1.bf16.msra.mxu0 0
    %1557 = vmatprep.subr.bf16.mxu0 0
    %1558 = vmatpush1.bf16.msra.mxu0 0
    %1559 = vmatprep.subr.bf16.mxu0 0
    %1560 = vmatpush1.bf16.msra.mxu0 0
    %1561 = vmatprep.subr.bf16.mxu0 %v1352
    %1562 = vmatpush1.bf16.msra.mxu0 %v1349
    %1563 = vmatprep.subr.bf16.mxu0 0
    %1564 = vmatpush2.bf16.msra.mxu0 0
    %1565 = vmatprep.subr.bf16.mxu0 0
    %1566 = vmatpush2.bf16.msra.mxu0 0
    %1567 = vmatprep.subr.bf16.mxu0 0
    %1568 = vmatpush2.bf16.msra.mxu0 0
    %1569 = vmatprep.subr.bf16.mxu0 0
    %1570 = vmatpush2.bf16.msra.mxu0 0
    %1571 = vmatprep.subr.bf16.mxu0 0
    %1572 = vmatpush2.bf16.msra.mxu0 0
    %1573 = vmatprep.subr.bf16.mxu0 0
    %1574 = vmatpush2.bf16.msra.mxu0 0
    %1575 = vmatprep.subr.bf16.mxu0 0
    %1576 = vmatpush2.bf16.msra.mxu0 0
    %1577 = vmatprep.subr.bf16.mxu0 0
    %1578 = vmatpush2.bf16.msra.mxu0 0
    %1579 = vmatprep.mubr.bf16.mxu0 0
    %1580 = vmatmul.mubr.bf16.gmra.mxu0 %v1545
    %v1581 = vpop.f32.mrf.mxu0
    %v1582 = vadd.f32 0.0, %v1581
    %v1583 = vpop.f32.mrf.mxu0
    %v1584 = vadd.f32 0.0, %v1583
    %v1585 = vpop.f32.mrf.mxu0
    %v1586 = vpop.f32.mrf.mxu0
    %1587 = vdwg.mxu0
    %1588 = vmatprep.subr.bf16.mxu0 0
    %1589 = vmatpush1.bf16.msra.mxu0 0
    %1590 = vmatprep.subr.bf16.mxu0 0
    %1591 = vmatpush1.bf16.msra.mxu0 0
    %1592 = vmatprep.subr.bf16.mxu0 0
    %1593 = vmatpush1.bf16.msra.mxu0 0
    %1594 = vmatprep.subr.bf16.mxu0 0
    %1595 = vmatpush1.bf16.msra.mxu0 0
    %1596 = vmatprep.subr.bf16.mxu0 0
    %1597 = vmatpush1.bf16.msra.mxu0 0
    %1598 = vmatprep.subr.bf16.mxu0 0
    %1599 = vmatpush1.bf16.msra.mxu0 0
    %1600 = vmatprep.subr.bf16.mxu0 0
    %1601 = vmatpush1.bf16.msra.mxu0 0
    %1602 = vmatprep.subr.bf16.mxu0 %v1358
    %1603 = vmatpush1.bf16.msra.mxu0 %v1355
    %1604 = vmatprep.subr.bf16.mxu0 0
    %1605 = vmatpush2.bf16.msra.mxu0 0
    %1606 = vmatprep.subr.bf16.mxu0 0
    %1607 = vmatpush2.bf16.msra.mxu0 0
    %1608 = vmatprep.subr.bf16.mxu0 0
    %1609 = vmatpush2.bf16.msra.mxu0 0
    %1610 = vmatprep.subr.bf16.mxu0 0
    %1611 = vmatpush2.bf16.msra.mxu0 0
    %1612 = vmatprep.subr.bf16.mxu0 0
    %1613 = vmatpush2.bf16.msra.mxu0 0
    %1614 = vmatprep.subr.bf16.mxu0 0
    %1615 = vmatpush2.bf16.msra.mxu0 0
    %1616 = vmatprep.subr.bf16.mxu0 0
    %1617 = vmatpush2.bf16.msra.mxu0 0
    %1618 = vmatprep.subr.bf16.mxu0 0
    %1619 = vmatpush2.bf16.msra.mxu0 0
    %1620 = vmatprep.mubr.bf16.mxu0 0
    %1621 = vmatmul.mubr.bf16.gmra.mxu0 %v1545
    %v1622 = vpop.f32.mrf.mxu0
    %v1623 = vadd.f32 0.0, %v1622
    %v1624 = vpop.f32.mrf.mxu0
    %v1625 = vadd.f32 0.0, %v1624
    %v1626 = vpop.f32.mrf.mxu0
    %v1627 = vpop.f32.mrf.mxu0
    %1628 = vdwg.mxu0
    %v1630 = vsel %vm150, %v78, 0
    %1632 = vmatprep.subr.bf16.mxu0 0
    %1633 = vmatpush1.bf16.msra.mxu0 0
    %1634 = vmatprep.subr.bf16.mxu0 0
    %1635 = vmatpush1.bf16.msra.mxu0 0
    %1636 = vmatprep.subr.bf16.mxu0 0
    %1637 = vmatpush1.bf16.msra.mxu0 0
    %1638 = vmatprep.subr.bf16.mxu0 0
    %1639 = vmatpush1.bf16.msra.mxu0 0
    %1640 = vmatprep.subr.bf16.mxu0 0
    %1641 = vmatpush1.bf16.msra.mxu0 0
    %1642 = vmatprep.subr.bf16.mxu0 0
    %1643 = vmatpush1.bf16.msra.mxu0 0
    %1644 = vmatprep.subr.bf16.mxu0 0
    %1645 = vmatpush1.bf16.msra.mxu0 0
    %1646 = vmatprep.subr.bf16.mxu0 %v1449
    %1647 = vmatpush1.bf16.msra.mxu0 %v1446
    %1648 = vmatprep.subr.bf16.mxu0 0
    %1649 = vmatpush2.bf16.msra.mxu0 0
    %1650 = vmatprep.subr.bf16.mxu0 0
    %1651 = vmatpush2.bf16.msra.mxu0 0
    %1652 = vmatprep.subr.bf16.mxu0 0
    %1653 = vmatpush2.bf16.msra.mxu0 0
    %1654 = vmatprep.subr.bf16.mxu0 0
    %1655 = vmatpush2.bf16.msra.mxu0 0
    %1656 = vmatprep.subr.bf16.mxu0 0
    %1657 = vmatpush2.bf16.msra.mxu0 0
    %1658 = vmatprep.subr.bf16.mxu0 0
    %1659 = vmatpush2.bf16.msra.mxu0 0
    %1660 = vmatprep.subr.bf16.mxu0 0
    %1661 = vmatpush2.bf16.msra.mxu0 0
    %1662 = vmatprep.subr.bf16.mxu0 0
    %1663 = vmatpush2.bf16.msra.mxu0 0
    %1664 = vmatprep.mubr.bf16.mxu0 0
    %1665 = vmatmul.mubr.bf16.gmra.mxu0 %v1630
    %v1666 = vpop.f32.mrf.mxu0
    %v1667 = vadd.f32 %v1582, %v1666
    %v1668 = vpop.f32.mrf.mxu0
    %v1669 = vadd.f32 %v1584, %v1668
    %v1670 = vpop.f32.mrf.mxu0
    %v1671 = vpop.f32.mrf.mxu0
    %1672 = vdwg.mxu0
    %1673 = vmatprep.subr.bf16.mxu0 0
    %1674 = vmatpush1.bf16.msra.mxu0 0
    %1675 = vmatprep.subr.bf16.mxu0 0
    %1676 = vmatpush1.bf16.msra.mxu0 0
    %1677 = vmatprep.subr.bf16.mxu0 0
    %1678 = vmatpush1.bf16.msra.mxu0 0
    %1679 = vmatprep.subr.bf16.mxu0 0
    %1680 = vmatpush1.bf16.msra.mxu0 0
    %1681 = vmatprep.subr.bf16.mxu0 0
    %1682 = vmatpush1.bf16.msra.mxu0 0
    %1683 = vmatprep.subr.bf16.mxu0 0
    %1684 = vmatpush1.bf16.msra.mxu0 0
    %1685 = vmatprep.subr.bf16.mxu0 0
    %1686 = vmatpush1.bf16.msra.mxu0 0
    %1687 = vmatprep.subr.bf16.mxu0 %v1455
    %1688 = vmatpush1.bf16.msra.mxu0 %v1452
    %1689 = vmatprep.subr.bf16.mxu0 0
    %1690 = vmatpush2.bf16.msra.mxu0 0
    %1691 = vmatprep.subr.bf16.mxu0 0
    %1692 = vmatpush2.bf16.msra.mxu0 0
    %1693 = vmatprep.subr.bf16.mxu0 0
    %1694 = vmatpush2.bf16.msra.mxu0 0
    %1695 = vmatprep.subr.bf16.mxu0 0
    %1696 = vmatpush2.bf16.msra.mxu0 0
    %1697 = vmatprep.subr.bf16.mxu0 0
    %1698 = vmatpush2.bf16.msra.mxu0 0
    %1699 = vmatprep.subr.bf16.mxu0 0
    %1700 = vmatpush2.bf16.msra.mxu0 0
    %1701 = vmatprep.subr.bf16.mxu0 0
    %1702 = vmatpush2.bf16.msra.mxu0 0
    %1703 = vmatprep.subr.bf16.mxu0 0
    %1704 = vmatpush2.bf16.msra.mxu0 0
    %1705 = vmatprep.mubr.bf16.mxu0 0
    %1706 = vmatmul.mubr.bf16.gmra.mxu0 %v1630
    %v1707 = vpop.f32.mrf.mxu0
    %v1708 = vadd.f32 %v1623, %v1707
    %v1709 = vpop.f32.mrf.mxu0
    %v1710 = vadd.f32 %v1625, %v1709
    %v1711 = vpop.f32.mrf.mxu0
    %v1712 = vpop.f32.mrf.mxu0
    %1713 = vdwg.mxu0
    %1714 = vrot.lane.b32.xlu0 %v1298, 15
    %v1715 = vpop.permute.xlu0 %1714
    %1716 = vrot.lane.b32.xlu0 %v1299, 15
    %v1717 = vpop.permute.xlu0 %1716
    %1718 = vrot.lane.b32.xlu0 %v1300, 15
    %v1719 = vpop.permute.xlu0 %1718
    %1720 = vrot.lane.b32.xlu0 %v1301, 15
    %v1721 = vpop.permute.xlu0 %1720
    %v1722 = vsel %vm354, %v1719, %v1721
    %v1723 = vsel %vm354, %v1717, %v1719
    %v1724 = vsel %vm354, %v1715, %v1717
    %v1725 = vsel %vm354, %v1721, %v1715
    %v1726 = vsel %vm363, %v1725, 0.0
    %v1727 = vsel %vm364, %v1724, 0.0
    %v1728 = vsel %vm365, %v1723, 0.0
    %v1729 = vsel %vm366, %v1722, 0.0
    %v1730 = vpack.c.bf16 %v1726, %v1726
    %v1731 = vpack.c.bf16 %v1727, %v1727
    %v1732 = vpack.c.bf16 %v1728, %v1728
    %v1733 = vpack.c.bf16 %v1729, %v1729
    %1734 = vrot.lane.b32.xlu0 %v1342, 120
    %v1735 = vpop.permute.xlu0 %1734
    %v1737 = vsel %vm150, %v1735, 0
    %v1740 = vsel %vm154, %v1730, 0
    %v1743 = vsel %vm154, %v1731, 0
    %v1746 = vsel %vm154, %v1732, 0
    %v1749 = vsel %vm154, %v1733, 0
    %1751 = vmatprep.subr.bf16.mxu0 0
    %1752 = vmatpush1.bf16.msra.mxu0 0
    %1753 = vmatprep.subr.bf16.mxu0 0
    %1754 = vmatpush1.bf16.msra.mxu0 0
    %1755 = vmatprep.subr.bf16.mxu0 0
    %1756 = vmatpush1.bf16.msra.mxu0 0
    %1757 = vmatprep.subr.bf16.mxu0 0
    %1758 = vmatpush1.bf16.msra.mxu0 0
    %1759 = vmatprep.subr.bf16.mxu0 0
    %1760 = vmatpush1.bf16.msra.mxu0 0
    %1761 = vmatprep.subr.bf16.mxu0 0
    %1762 = vmatpush1.bf16.msra.mxu0 0
    %1763 = vmatprep.subr.bf16.mxu0 0
    %1764 = vmatpush1.bf16.msra.mxu0 0
    %1765 = vmatprep.subr.bf16.mxu0 %v1743
    %1766 = vmatpush1.bf16.msra.mxu0 %v1740
    %1767 = vmatprep.subr.bf16.mxu0 0
    %1768 = vmatpush2.bf16.msra.mxu0 0
    %1769 = vmatprep.subr.bf16.mxu0 0
    %1770 = vmatpush2.bf16.msra.mxu0 0
    %1771 = vmatprep.subr.bf16.mxu0 0
    %1772 = vmatpush2.bf16.msra.mxu0 0
    %1773 = vmatprep.subr.bf16.mxu0 0
    %1774 = vmatpush2.bf16.msra.mxu0 0
    %1775 = vmatprep.subr.bf16.mxu0 0
    %1776 = vmatpush2.bf16.msra.mxu0 0
    %1777 = vmatprep.subr.bf16.mxu0 0
    %1778 = vmatpush2.bf16.msra.mxu0 0
    %1779 = vmatprep.subr.bf16.mxu0 0
    %1780 = vmatpush2.bf16.msra.mxu0 0
    %1781 = vmatprep.subr.bf16.mxu0 0
    %1782 = vmatpush2.bf16.msra.mxu0 0
    %1783 = vmatprep.mubr.bf16.mxu0 0
    %1784 = vmatmul.mubr.bf16.gmra.mxu0 %v1737
    %v1785 = vpop.f32.mrf.mxu0
    %v1786 = vadd.f32 0.0, %v1785
    %v1787 = vpop.f32.mrf.mxu0
    %v1788 = vadd.f32 0.0, %v1787
    %v1789 = vpop.f32.mrf.mxu0
    %v1790 = vpop.f32.mrf.mxu0
    %1791 = vdwg.mxu0
    %1792 = vmatprep.subr.bf16.mxu0 0
    %1793 = vmatpush1.bf16.msra.mxu0 0
    %1794 = vmatprep.subr.bf16.mxu0 0
    %1795 = vmatpush1.bf16.msra.mxu0 0
    %1796 = vmatprep.subr.bf16.mxu0 0
    %1797 = vmatpush1.bf16.msra.mxu0 0
    %1798 = vmatprep.subr.bf16.mxu0 0
    %1799 = vmatpush1.bf16.msra.mxu0 0
    %1800 = vmatprep.subr.bf16.mxu0 0
    %1801 = vmatpush1.bf16.msra.mxu0 0
    %1802 = vmatprep.subr.bf16.mxu0 0
    %1803 = vmatpush1.bf16.msra.mxu0 0
    %1804 = vmatprep.subr.bf16.mxu0 0
    %1805 = vmatpush1.bf16.msra.mxu0 0
    %1806 = vmatprep.subr.bf16.mxu0 %v1749
    %1807 = vmatpush1.bf16.msra.mxu0 %v1746
    %1808 = vmatprep.subr.bf16.mxu0 0
    %1809 = vmatpush2.bf16.msra.mxu0 0
    %1810 = vmatprep.subr.bf16.mxu0 0
    %1811 = vmatpush2.bf16.msra.mxu0 0
    %1812 = vmatprep.subr.bf16.mxu0 0
    %1813 = vmatpush2.bf16.msra.mxu0 0
    %1814 = vmatprep.subr.bf16.mxu0 0
    %1815 = vmatpush2.bf16.msra.mxu0 0
    %1816 = vmatprep.subr.bf16.mxu0 0
    %1817 = vmatpush2.bf16.msra.mxu0 0
    %1818 = vmatprep.subr.bf16.mxu0 0
    %1819 = vmatpush2.bf16.msra.mxu0 0
    %1820 = vmatprep.subr.bf16.mxu0 0
    %1821 = vmatpush2.bf16.msra.mxu0 0
    %1822 = vmatprep.subr.bf16.mxu0 0
    %1823 = vmatpush2.bf16.msra.mxu0 0
    %1824 = vmatprep.mubr.bf16.mxu0 0
    %1825 = vmatmul.mubr.bf16.gmra.mxu0 %v1737
    %v1826 = vpop.f32.mrf.mxu0
    %v1827 = vadd.f32 0.0, %v1826
    %v1828 = vpop.f32.mrf.mxu0
    %v1829 = vadd.f32 0.0, %v1828
    %v1830 = vpop.f32.mrf.mxu0
    %v1831 = vpop.f32.mrf.mxu0
    %1832 = vdwg.mxu0
    %v1833 = vadd.f32 %v1492, %v1786
    %v1834 = vadd.f32 %v1494, %v1788
    %v1835 = vadd.f32 %v1533, %v1827
    %v1836 = vadd.f32 %v1535, %v1829
    %1837 = vrot.lane.b32.xlu0 %v1541, 120
    %v1838 = vpop.permute.xlu0 %1837
    %v1840 = vsel %vm150, %v1838, 0
    %1842 = vmatprep.subr.bf16.mxu0 0
    %1843 = vmatpush1.bf16.msra.mxu0 0
    %1844 = vmatprep.subr.bf16.mxu0 0
    %1845 = vmatpush1.bf16.msra.mxu0 0
    %1846 = vmatprep.subr.bf16.mxu0 0
    %1847 = vmatpush1.bf16.msra.mxu0 0
    %1848 = vmatprep.subr.bf16.mxu0 0
    %1849 = vmatpush1.bf16.msra.mxu0 0
    %1850 = vmatprep.subr.bf16.mxu0 0
    %1851 = vmatpush1.bf16.msra.mxu0 0
    %1852 = vmatprep.subr.bf16.mxu0 0
    %1853 = vmatpush1.bf16.msra.mxu0 0
    %1854 = vmatprep.subr.bf16.mxu0 0
    %1855 = vmatpush1.bf16.msra.mxu0 0
    %1856 = vmatprep.subr.bf16.mxu0 %v1743
    %1857 = vmatpush1.bf16.msra.mxu0 %v1740
    %1858 = vmatprep.subr.bf16.mxu0 0
    %1859 = vmatpush2.bf16.msra.mxu0 0
    %1860 = vmatprep.subr.bf16.mxu0 0
    %1861 = vmatpush2.bf16.msra.mxu0 0
    %1862 = vmatprep.subr.bf16.mxu0 0
    %1863 = vmatpush2.bf16.msra.mxu0 0
    %1864 = vmatprep.subr.bf16.mxu0 0
    %1865 = vmatpush2.bf16.msra.mxu0 0
    %1866 = vmatprep.subr.bf16.mxu0 0
    %1867 = vmatpush2.bf16.msra.mxu0 0
    %1868 = vmatprep.subr.bf16.mxu0 0
    %1869 = vmatpush2.bf16.msra.mxu0 0
    %1870 = vmatprep.subr.bf16.mxu0 0
    %1871 = vmatpush2.bf16.msra.mxu0 0
    %1872 = vmatprep.subr.bf16.mxu0 0
    %1873 = vmatpush2.bf16.msra.mxu0 0
    %1874 = vmatprep.mubr.bf16.mxu0 0
    %1875 = vmatmul.mubr.bf16.gmra.mxu0 %v1840
    %v1876 = vpop.f32.mrf.mxu0
    %v1877 = vadd.f32 0.0, %v1876
    %v1878 = vpop.f32.mrf.mxu0
    %v1879 = vadd.f32 0.0, %v1878
    %v1880 = vpop.f32.mrf.mxu0
    %v1881 = vpop.f32.mrf.mxu0
    %1882 = vdwg.mxu0
    %1883 = vmatprep.subr.bf16.mxu0 0
    %1884 = vmatpush1.bf16.msra.mxu0 0
    %1885 = vmatprep.subr.bf16.mxu0 0
    %1886 = vmatpush1.bf16.msra.mxu0 0
    %1887 = vmatprep.subr.bf16.mxu0 0
    %1888 = vmatpush1.bf16.msra.mxu0 0
    %1889 = vmatprep.subr.bf16.mxu0 0
    %1890 = vmatpush1.bf16.msra.mxu0 0
    %1891 = vmatprep.subr.bf16.mxu0 0
    %1892 = vmatpush1.bf16.msra.mxu0 0
    %1893 = vmatprep.subr.bf16.mxu0 0
    %1894 = vmatpush1.bf16.msra.mxu0 0
    %1895 = vmatprep.subr.bf16.mxu0 0
    %1896 = vmatpush1.bf16.msra.mxu0 0
    %1897 = vmatprep.subr.bf16.mxu0 %v1749
    %1898 = vmatpush1.bf16.msra.mxu0 %v1746
    %1899 = vmatprep.subr.bf16.mxu0 0
    %1900 = vmatpush2.bf16.msra.mxu0 0
    %1901 = vmatprep.subr.bf16.mxu0 0
    %1902 = vmatpush2.bf16.msra.mxu0 0
    %1903 = vmatprep.subr.bf16.mxu0 0
    %1904 = vmatpush2.bf16.msra.mxu0 0
    %1905 = vmatprep.subr.bf16.mxu0 0
    %1906 = vmatpush2.bf16.msra.mxu0 0
    %1907 = vmatprep.subr.bf16.mxu0 0
    %1908 = vmatpush2.bf16.msra.mxu0 0
    %1909 = vmatprep.subr.bf16.mxu0 0
    %1910 = vmatpush2.bf16.msra.mxu0 0
    %1911 = vmatprep.subr.bf16.mxu0 0
    %1912 = vmatpush2.bf16.msra.mxu0 0
    %1913 = vmatprep.subr.bf16.mxu0 0
    %1914 = vmatpush2.bf16.msra.mxu0 0
    %1915 = vmatprep.mubr.bf16.mxu0 0
    %1916 = vmatmul.mubr.bf16.gmra.mxu0 %v1840
    %v1917 = vpop.f32.mrf.mxu0
    %v1918 = vadd.f32 0.0, %v1917
    %v1919 = vpop.f32.mrf.mxu0
    %v1920 = vadd.f32 0.0, %v1919
    %v1921 = vpop.f32.mrf.mxu0
    %v1922 = vpop.f32.mrf.mxu0
    %1923 = vdwg.mxu0
    %v1924 = vadd.f32 %v1667, %v1877
    %v1925 = vadd.f32 %v1669, %v1879
    %v1926 = vadd.f32 %v1708, %v1918
    %v1927 = vadd.f32 %v1710, %v1920
    %1928 = vrot.lane.b32.xlu0 %v1298, 1
    %v1929 = vpop.permute.xlu0 %1928
    %1930 = vrot.lane.b32.xlu0 %v1299, 1
    %v1931 = vpop.permute.xlu0 %1930
    %1932 = vrot.lane.b32.xlu0 %v1300, 1
    %v1933 = vpop.permute.xlu0 %1932
    %1934 = vrot.lane.b32.xlu0 %v1301, 1
    %v1935 = vpop.permute.xlu0 %1934
    %v1936 = vsel %vm486, %v1933, %v1935
    %v1937 = vsel %vm486, %v1931, %v1933
    %v1938 = vsel %vm486, %v1929, %v1931
    %v1939 = vsel %vm486, %v1935, %v1929
    %v1940 = vsel %vm495, %v1939, 0.0
    %v1941 = vsel %vm496, %v1938, 0.0
    %v1942 = vsel %vm497, %v1937, 0.0
    %v1943 = vsel %vm498, %v1936, 0.0
    %v1944 = vpack.c.bf16 %v1940, %v1940
    %v1945 = vpack.c.bf16 %v1941, %v1941
    %v1946 = vpack.c.bf16 %v1942, %v1942
    %v1947 = vpack.c.bf16 %v1943, %v1943
    %1948 = vrot.lane.b32.xlu0 %v1342, 116
    %v1949 = vpop.permute.xlu0 %1948
    %v1951 = vsel %vm150, %v1949, 0
    %v1954 = vsel %vm154, %v1944, 0
    %v1957 = vsel %vm154, %v1945, 0
    %v1960 = vsel %vm154, %v1946, 0
    %v1963 = vsel %vm154, %v1947, 0
    %1965 = vmatprep.subr.bf16.mxu0 0
    %1966 = vmatpush1.bf16.msra.mxu0 0
    %1967 = vmatprep.subr.bf16.mxu0 0
    %1968 = vmatpush1.bf16.msra.mxu0 0
    %1969 = vmatprep.subr.bf16.mxu0 0
    %1970 = vmatpush1.bf16.msra.mxu0 0
    %1971 = vmatprep.subr.bf16.mxu0 0
    %1972 = vmatpush1.bf16.msra.mxu0 0
    %1973 = vmatprep.subr.bf16.mxu0 0
    %1974 = vmatpush1.bf16.msra.mxu0 0
    %1975 = vmatprep.subr.bf16.mxu0 0
    %1976 = vmatpush1.bf16.msra.mxu0 0
    %1977 = vmatprep.subr.bf16.mxu0 0
    %1978 = vmatpush1.bf16.msra.mxu0 0
    %1979 = vmatprep.subr.bf16.mxu0 %v1957
    %1980 = vmatpush1.bf16.msra.mxu0 %v1954
    %1981 = vmatprep.subr.bf16.mxu0 0
    %1982 = vmatpush2.bf16.msra.mxu0 0
    %1983 = vmatprep.subr.bf16.mxu0 0
    %1984 = vmatpush2.bf16.msra.mxu0 0
    %1985 = vmatprep.subr.bf16.mxu0 0
    %1986 = vmatpush2.bf16.msra.mxu0 0
    %1987 = vmatprep.subr.bf16.mxu0 0
    %1988 = vmatpush2.bf16.msra.mxu0 0
    %1989 = vmatprep.subr.bf16.mxu0 0
    %1990 = vmatpush2.bf16.msra.mxu0 0
    %1991 = vmatprep.subr.bf16.mxu0 0
    %1992 = vmatpush2.bf16.msra.mxu0 0
    %1993 = vmatprep.subr.bf16.mxu0 0
    %1994 = vmatpush2.bf16.msra.mxu0 0
    %1995 = vmatprep.subr.bf16.mxu0 0
    %1996 = vmatpush2.bf16.msra.mxu0 0
    %1997 = vmatprep.mubr.bf16.mxu0 0
    %1998 = vmatmul.mubr.bf16.gmra.mxu0 %v1951
    %v1999 = vpop.f32.mrf.mxu0
    %v2000 = vadd.f32 0.0, %v1999
    %v2001 = vpop.f32.mrf.mxu0
    %v2002 = vadd.f32 0.0, %v2001
    %v2003 = vpop.f32.mrf.mxu0
    %v2004 = vpop.f32.mrf.mxu0
    %2005 = vdwg.mxu0
    %2006 = vmatprep.subr.bf16.mxu0 0
    %2007 = vmatpush1.bf16.msra.mxu0 0
    %2008 = vmatprep.subr.bf16.mxu0 0
    %2009 = vmatpush1.bf16.msra.mxu0 0
    %2010 = vmatprep.subr.bf16.mxu0 0
    %2011 = vmatpush1.bf16.msra.mxu0 0
    %2012 = vmatprep.subr.bf16.mxu0 0
    %2013 = vmatpush1.bf16.msra.mxu0 0
    %2014 = vmatprep.subr.bf16.mxu0 0
    %2015 = vmatpush1.bf16.msra.mxu0 0
    %2016 = vmatprep.subr.bf16.mxu0 0
    %2017 = vmatpush1.bf16.msra.mxu0 0
    %2018 = vmatprep.subr.bf16.mxu0 0
    %2019 = vmatpush1.bf16.msra.mxu0 0
    %2020 = vmatprep.subr.bf16.mxu0 %v1963
    %2021 = vmatpush1.bf16.msra.mxu0 %v1960
    %2022 = vmatprep.subr.bf16.mxu0 0
    %2023 = vmatpush2.bf16.msra.mxu0 0
    %2024 = vmatprep.subr.bf16.mxu0 0
    %2025 = vmatpush2.bf16.msra.mxu0 0
    %2026 = vmatprep.subr.bf16.mxu0 0
    %2027 = vmatpush2.bf16.msra.mxu0 0
    %2028 = vmatprep.subr.bf16.mxu0 0
    %2029 = vmatpush2.bf16.msra.mxu0 0
    %2030 = vmatprep.subr.bf16.mxu0 0
    %2031 = vmatpush2.bf16.msra.mxu0 0
    %2032 = vmatprep.subr.bf16.mxu0 0
    %2033 = vmatpush2.bf16.msra.mxu0 0
    %2034 = vmatprep.subr.bf16.mxu0 0
    %2035 = vmatpush2.bf16.msra.mxu0 0
    %2036 = vmatprep.subr.bf16.mxu0 0
    %2037 = vmatpush2.bf16.msra.mxu0 0
    %2038 = vmatprep.mubr.bf16.mxu0 0
    %2039 = vmatmul.mubr.bf16.gmra.mxu0 %v1951
    %v2040 = vpop.f32.mrf.mxu0
    %v2041 = vadd.f32 0.0, %v2040
    %v2042 = vpop.f32.mrf.mxu0
    %v2043 = vadd.f32 0.0, %v2042
    %v2044 = vpop.f32.mrf.mxu0
    %v2045 = vpop.f32.mrf.mxu0
    %2046 = vdwg.mxu0
    %v2047 = vadd.f32 %v1833, %v2000
    %v2048 = vadd.f32 %v1834, %v2002
    %v2049 = vadd.f32 %v1835, %v2041
    %v2050 = vadd.f32 %v1836, %v2043
    %2051 = vrot.lane.b32.xlu0 %v1541, 116
    %v2052 = vpop.permute.xlu0 %2051
    %v2054 = vsel %vm150, %v2052, 0
    %2056 = vmatprep.subr.bf16.mxu0 0
    %2057 = vmatpush1.bf16.msra.mxu0 0
    %2058 = vmatprep.subr.bf16.mxu0 0
    %2059 = vmatpush1.bf16.msra.mxu0 0
    %2060 = vmatprep.subr.bf16.mxu0 0
    %2061 = vmatpush1.bf16.msra.mxu0 0
    %2062 = vmatprep.subr.bf16.mxu0 0
    %2063 = vmatpush1.bf16.msra.mxu0 0
    %2064 = vmatprep.subr.bf16.mxu0 0
    %2065 = vmatpush1.bf16.msra.mxu0 0
    %2066 = vmatprep.subr.bf16.mxu0 0
    %2067 = vmatpush1.bf16.msra.mxu0 0
    %2068 = vmatprep.subr.bf16.mxu0 0
    %2069 = vmatpush1.bf16.msra.mxu0 0
    %2070 = vmatprep.subr.bf16.mxu0 %v1957
    %2071 = vmatpush1.bf16.msra.mxu0 %v1954
    %2072 = vmatprep.subr.bf16.mxu0 0
    %2073 = vmatpush2.bf16.msra.mxu0 0
    %2074 = vmatprep.subr.bf16.mxu0 0
    %2075 = vmatpush2.bf16.msra.mxu0 0
    %2076 = vmatprep.subr.bf16.mxu0 0
    %2077 = vmatpush2.bf16.msra.mxu0 0
    %2078 = vmatprep.subr.bf16.mxu0 0
    %2079 = vmatpush2.bf16.msra.mxu0 0
    %2080 = vmatprep.subr.bf16.mxu0 0
    %2081 = vmatpush2.bf16.msra.mxu0 0
    %2082 = vmatprep.subr.bf16.mxu0 0
    %2083 = vmatpush2.bf16.msra.mxu0 0
    %2084 = vmatprep.subr.bf16.mxu0 0
    %2085 = vmatpush2.bf16.msra.mxu0 0
    %2086 = vmatprep.subr.bf16.mxu0 0
    %2087 = vmatpush2.bf16.msra.mxu0 0
    %2088 = vmatprep.mubr.bf16.mxu0 0
    %2089 = vmatmul.mubr.bf16.gmra.mxu0 %v2054
    %v2090 = vpop.f32.mrf.mxu0
    %v2091 = vadd.f32 0.0, %v2090
    %v2092 = vpop.f32.mrf.mxu0
    %v2093 = vadd.f32 0.0, %v2092
    %v2094 = vpop.f32.mrf.mxu0
    %v2095 = vpop.f32.mrf.mxu0
    %2096 = vdwg.mxu0
    %2097 = vmatprep.subr.bf16.mxu0 0
    %2098 = vmatpush1.bf16.msra.mxu0 0
    %2099 = vmatprep.subr.bf16.mxu0 0
    %2100 = vmatpush1.bf16.msra.mxu0 0
    %2101 = vmatprep.subr.bf16.mxu0 0
    %2102 = vmatpush1.bf16.msra.mxu0 0
    %2103 = vmatprep.subr.bf16.mxu0 0
    %2104 = vmatpush1.bf16.msra.mxu0 0
    %2105 = vmatprep.subr.bf16.mxu0 0
    %2106 = vmatpush1.bf16.msra.mxu0 0
    %2107 = vmatprep.subr.bf16.mxu0 0
    %2108 = vmatpush1.bf16.msra.mxu0 0
    %2109 = vmatprep.subr.bf16.mxu0 0
    %2110 = vmatpush1.bf16.msra.mxu0 0
    %2111 = vmatprep.subr.bf16.mxu0 %v1963
    %2112 = vmatpush1.bf16.msra.mxu0 %v1960
    %2113 = vmatprep.subr.bf16.mxu0 0
    %2114 = vmatpush2.bf16.msra.mxu0 0
    %2115 = vmatprep.subr.bf16.mxu0 0
    %2116 = vmatpush2.bf16.msra.mxu0 0
    %2117 = vmatprep.subr.bf16.mxu0 0
    %2118 = vmatpush2.bf16.msra.mxu0 0
    %2119 = vmatprep.subr.bf16.mxu0 0
    %2120 = vmatpush2.bf16.msra.mxu0 0
    %2121 = vmatprep.subr.bf16.mxu0 0
    %2122 = vmatpush2.bf16.msra.mxu0 0
    %2123 = vmatprep.subr.bf16.mxu0 0
    %2124 = vmatpush2.bf16.msra.mxu0 0
    %2125 = vmatprep.subr.bf16.mxu0 0
    %2126 = vmatpush2.bf16.msra.mxu0 0
    %2127 = vmatprep.subr.bf16.mxu0 0
    %2128 = vmatpush2.bf16.msra.mxu0 0
    %2129 = vmatprep.mubr.bf16.mxu0 0
    %2130 = vmatmul.mubr.bf16.gmra.mxu0 %v2054
    %v2131 = vpop.f32.mrf.mxu0
    %v2132 = vadd.f32 0.0, %v2131
    %v2133 = vpop.f32.mrf.mxu0
    %v2134 = vadd.f32 0.0, %v2133
    %v2135 = vpop.f32.mrf.mxu0
    %v2136 = vpop.f32.mrf.mxu0
    %2137 = vdwg.mxu0
    %v2138 = vadd.f32 %v1924, %v2091
    %v2139 = vadd.f32 %v1925, %v2093
    %v2140 = vadd.f32 %v1926, %v2132
    %v2141 = vadd.f32 %v1927, %v2134
    %v2142 = vpack.c.bf16 %v1298, %v1298
    %v2143 = vpack.c.bf16 %v1299, %v1299
    %v2144 = vpack.c.bf16 %v1300, %v1300
    %v2145 = vpack.c.bf16 %v1301, %v1301
    %2146 = vrot.lane.b32.xlu0 %v1342, 112
    %v2147 = vpop.permute.xlu0 %2146
    %v2149 = vsel %vm150, %v2147, 0
    %v2152 = vsel %vm154, %v2142, 0
    %v2155 = vsel %vm154, %v2143, 0
    %v2158 = vsel %vm154, %v2144, 0
    %v2161 = vsel %vm154, %v2145, 0
    %2163 = vmatprep.subr.bf16.mxu0 0
    %2164 = vmatpush1.bf16.msra.mxu0 0
    %2165 = vmatprep.subr.bf16.mxu0 0
    %2166 = vmatpush1.bf16.msra.mxu0 0
    %2167 = vmatprep.subr.bf16.mxu0 0
    %2168 = vmatpush1.bf16.msra.mxu0 0
    %2169 = vmatprep.subr.bf16.mxu0 0
    %2170 = vmatpush1.bf16.msra.mxu0 0
    %2171 = vmatprep.subr.bf16.mxu0 0
    %2172 = vmatpush1.bf16.msra.mxu0 0
    %2173 = vmatprep.subr.bf16.mxu0 0
    %2174 = vmatpush1.bf16.msra.mxu0 0
    %2175 = vmatprep.subr.bf16.mxu0 0
    %2176 = vmatpush1.bf16.msra.mxu0 0
    %2177 = vmatprep.subr.bf16.mxu0 %v2155
    %2178 = vmatpush1.bf16.msra.mxu0 %v2152
    %2179 = vmatprep.subr.bf16.mxu0 0
    %2180 = vmatpush2.bf16.msra.mxu0 0
    %2181 = vmatprep.subr.bf16.mxu0 0
    %2182 = vmatpush2.bf16.msra.mxu0 0
    %2183 = vmatprep.subr.bf16.mxu0 0
    %2184 = vmatpush2.bf16.msra.mxu0 0
    %2185 = vmatprep.subr.bf16.mxu0 0
    %2186 = vmatpush2.bf16.msra.mxu0 0
    %2187 = vmatprep.subr.bf16.mxu0 0
    %2188 = vmatpush2.bf16.msra.mxu0 0
    %2189 = vmatprep.subr.bf16.mxu0 0
    %2190 = vmatpush2.bf16.msra.mxu0 0
    %2191 = vmatprep.subr.bf16.mxu0 0
    %2192 = vmatpush2.bf16.msra.mxu0 0
    %2193 = vmatprep.subr.bf16.mxu0 0
    %2194 = vmatpush2.bf16.msra.mxu0 0
    %2195 = vmatprep.mubr.bf16.mxu0 0
    %2196 = vmatmul.mubr.bf16.gmra.mxu0 %v2149
    %v2197 = vpop.f32.mrf.mxu0
    %v2198 = vadd.f32 0.0, %v2197
    %v2199 = vpop.f32.mrf.mxu0
    %v2200 = vadd.f32 0.0, %v2199
    %v2201 = vpop.f32.mrf.mxu0
    %v2202 = vpop.f32.mrf.mxu0
    %2203 = vdwg.mxu0
    %2204 = vmatprep.subr.bf16.mxu0 0
    %2205 = vmatpush1.bf16.msra.mxu0 0
    %2206 = vmatprep.subr.bf16.mxu0 0
    %2207 = vmatpush1.bf16.msra.mxu0 0
    %2208 = vmatprep.subr.bf16.mxu0 0
    %2209 = vmatpush1.bf16.msra.mxu0 0
    %2210 = vmatprep.subr.bf16.mxu0 0
    %2211 = vmatpush1.bf16.msra.mxu0 0
    %2212 = vmatprep.subr.bf16.mxu0 0
    %2213 = vmatpush1.bf16.msra.mxu0 0
    %2214 = vmatprep.subr.bf16.mxu0 0
    %2215 = vmatpush1.bf16.msra.mxu0 0
    %2216 = vmatprep.subr.bf16.mxu0 0
    %2217 = vmatpush1.bf16.msra.mxu0 0
    %2218 = vmatprep.subr.bf16.mxu0 %v2161
    %2219 = vmatpush1.bf16.msra.mxu0 %v2158
    %2220 = vmatprep.subr.bf16.mxu0 0
    %2221 = vmatpush2.bf16.msra.mxu0 0
    %2222 = vmatprep.subr.bf16.mxu0 0
    %2223 = vmatpush2.bf16.msra.mxu0 0
    %2224 = vmatprep.subr.bf16.mxu0 0
    %2225 = vmatpush2.bf16.msra.mxu0 0
    %2226 = vmatprep.subr.bf16.mxu0 0
    %2227 = vmatpush2.bf16.msra.mxu0 0
    %2228 = vmatprep.subr.bf16.mxu0 0
    %2229 = vmatpush2.bf16.msra.mxu0 0
    %2230 = vmatprep.subr.bf16.mxu0 0
    %2231 = vmatpush2.bf16.msra.mxu0 0
    %2232 = vmatprep.subr.bf16.mxu0 0
    %2233 = vmatpush2.bf16.msra.mxu0 0
    %2234 = vmatprep.subr.bf16.mxu0 0
    %2235 = vmatpush2.bf16.msra.mxu0 0
    %2236 = vmatprep.mubr.bf16.mxu0 0
    %2237 = vmatmul.mubr.bf16.gmra.mxu0 %v2149
    %v2238 = vpop.f32.mrf.mxu0
    %v2239 = vadd.f32 0.0, %v2238
    %v2240 = vpop.f32.mrf.mxu0
    %v2241 = vadd.f32 0.0, %v2240
    %v2242 = vpop.f32.mrf.mxu0
    %v2243 = vpop.f32.mrf.mxu0
    %2244 = vdwg.mxu0
    %v2245 = vadd.f32 %v2047, %v2198
    %v2246 = vadd.f32 %v2048, %v2200
    %v2247 = vadd.f32 %v2049, %v2239
    %v2248 = vadd.f32 %v2050, %v2241
    %2249 = vrot.lane.b32.xlu0 %v1541, 112
    %v2250 = vpop.permute.xlu0 %2249
    %v2252 = vsel %vm150, %v2250, 0
    %2254 = vmatprep.subr.bf16.mxu0 0
    %2255 = vmatpush1.bf16.msra.mxu0 0
    %2256 = vmatprep.subr.bf16.mxu0 0
    %2257 = vmatpush1.bf16.msra.mxu0 0
    %2258 = vmatprep.subr.bf16.mxu0 0
    %2259 = vmatpush1.bf16.msra.mxu0 0
    %2260 = vmatprep.subr.bf16.mxu0 0
    %2261 = vmatpush1.bf16.msra.mxu0 0
    %2262 = vmatprep.subr.bf16.mxu0 0
    %2263 = vmatpush1.bf16.msra.mxu0 0
    %2264 = vmatprep.subr.bf16.mxu0 0
    %2265 = vmatpush1.bf16.msra.mxu0 0
    %2266 = vmatprep.subr.bf16.mxu0 0
    %2267 = vmatpush1.bf16.msra.mxu0 0
    %2268 = vmatprep.subr.bf16.mxu0 %v2155
    %2269 = vmatpush1.bf16.msra.mxu0 %v2152
    %2270 = vmatprep.subr.bf16.mxu0 0
    %2271 = vmatpush2.bf16.msra.mxu0 0
    %2272 = vmatprep.subr.bf16.mxu0 0
    %2273 = vmatpush2.bf16.msra.mxu0 0
    %2274 = vmatprep.subr.bf16.mxu0 0
    %2275 = vmatpush2.bf16.msra.mxu0 0
    %2276 = vmatprep.subr.bf16.mxu0 0
    %2277 = vmatpush2.bf16.msra.mxu0 0
    %2278 = vmatprep.subr.bf16.mxu0 0
    %2279 = vmatpush2.bf16.msra.mxu0 0
    %2280 = vmatprep.subr.bf16.mxu0 0
    %2281 = vmatpush2.bf16.msra.mxu0 0
    %2282 = vmatprep.subr.bf16.mxu0 0
    %2283 = vmatpush2.bf16.msra.mxu0 0
    %2284 = vmatprep.subr.bf16.mxu0 0
    %2285 = vmatpush2.bf16.msra.mxu0 0
    %2286 = vmatprep.mubr.bf16.mxu0 0
    %2287 = vmatmul.mubr.bf16.gmra.mxu0 %v2252
    %v2288 = vpop.f32.mrf.mxu0
    %v2289 = vadd.f32 0.0, %v2288
    %v2290 = vpop.f32.mrf.mxu0
    %v2291 = vadd.f32 0.0, %v2290
    %v2292 = vpop.f32.mrf.mxu0
    %v2293 = vpop.f32.mrf.mxu0
    %2294 = vdwg.mxu0
    %2295 = vmatprep.subr.bf16.mxu0 0
    %2296 = vmatpush1.bf16.msra.mxu0 0
    %2297 = vmatprep.subr.bf16.mxu0 0
    %2298 = vmatpush1.bf16.msra.mxu0 0
    %2299 = vmatprep.subr.bf16.mxu0 0
    %2300 = vmatpush1.bf16.msra.mxu0 0
    %2301 = vmatprep.subr.bf16.mxu0 0
    %2302 = vmatpush1.bf16.msra.mxu0 0
    %2303 = vmatprep.subr.bf16.mxu0 0
    %2304 = vmatpush1.bf16.msra.mxu0 0
    %2305 = vmatprep.subr.bf16.mxu0 0
    %2306 = vmatpush1.bf16.msra.mxu0 0
    %2307 = vmatprep.subr.bf16.mxu0 0
    %2308 = vmatpush1.bf16.msra.mxu0 0
    %2309 = vmatprep.subr.bf16.mxu0 %v2161
    %2310 = vmatpush1.bf16.msra.mxu0 %v2158
    %2311 = vmatprep.subr.bf16.mxu0 0
    %2312 = vmatpush2.bf16.msra.mxu0 0
    %2313 = vmatprep.subr.bf16.mxu0 0
    %2314 = vmatpush2.bf16.msra.mxu0 0
    %2315 = vmatprep.subr.bf16.mxu0 0
    %2316 = vmatpush2.bf16.msra.mxu0 0
    %2317 = vmatprep.subr.bf16.mxu0 0
    %2318 = vmatpush2.bf16.msra.mxu0 0
    %2319 = vmatprep.subr.bf16.mxu0 0
    %2320 = vmatpush2.bf16.msra.mxu0 0
    %2321 = vmatprep.subr.bf16.mxu0 0
    %2322 = vmatpush2.bf16.msra.mxu0 0
    %2323 = vmatprep.subr.bf16.mxu0 0
    %2324 = vmatpush2.bf16.msra.mxu0 0
    %2325 = vmatprep.subr.bf16.mxu0 0
    %2326 = vmatpush2.bf16.msra.mxu0 0
    %2327 = vmatprep.mubr.bf16.mxu0 0
    %2328 = vmatmul.mubr.bf16.gmra.mxu0 %v2252
    %v2329 = vpop.f32.mrf.mxu0
    %v2330 = vadd.f32 0.0, %v2329
    %v2331 = vpop.f32.mrf.mxu0
    %v2332 = vadd.f32 0.0, %v2331
    %v2333 = vpop.f32.mrf.mxu0
    %v2334 = vpop.f32.mrf.mxu0
    %2335 = vdwg.mxu0
    %v2336 = vadd.f32 %v2138, %v2289
    %v2337 = vadd.f32 %v2139, %v2291
    %v2338 = vadd.f32 %v2140, %v2330
    %v2339 = vadd.f32 %v2141, %v2332
    %2340 = vrot.lane.b32.xlu0 %v1298, 127
    %v2341 = vpop.permute.xlu0 %2340
    %2342 = vrot.lane.b32.xlu0 %v1299, 127
    %v2343 = vpop.permute.xlu0 %2342
    %2344 = vrot.lane.b32.xlu0 %v1300, 127
    %v2345 = vpop.permute.xlu0 %2344
    %2346 = vrot.lane.b32.xlu0 %v1301, 127
    %v2347 = vpop.permute.xlu0 %2346
    %v2348 = vsel %vm725, %v2345, %v2347
    %v2349 = vsel %vm725, %v2343, %v2345
    %v2350 = vsel %vm725, %v2341, %v2343
    %v2351 = vsel %vm725, %v2347, %v2341
    %v2352 = vsel %vm734, %v2350, 0.0
    %v2353 = vsel %vm735, %v2349, 0.0
    %v2354 = vsel %vm736, %v2348, 0.0
    %v2355 = vsel %vm737, %v2351, 0.0
    %v2356 = vpack.c.bf16 %v2352, %v2352
    %v2357 = vpack.c.bf16 %v2353, %v2353
    %v2358 = vpack.c.bf16 %v2354, %v2354
    %v2359 = vpack.c.bf16 %v2355, %v2355
    %2360 = vrot.lane.b32.xlu0 %v1342, 108
    %v2361 = vpop.permute.xlu0 %2360
    %v2363 = vsel %vm150, %v2361, 0
    %v2366 = vsel %vm154, %v2356, 0
    %v2369 = vsel %vm154, %v2357, 0
    %v2372 = vsel %vm154, %v2358, 0
    %v2375 = vsel %vm154, %v2359, 0
    %2377 = vmatprep.subr.bf16.mxu0 0
    %2378 = vmatpush1.bf16.msra.mxu0 0
    %2379 = vmatprep.subr.bf16.mxu0 0
    %2380 = vmatpush1.bf16.msra.mxu0 0
    %2381 = vmatprep.subr.bf16.mxu0 0
    %2382 = vmatpush1.bf16.msra.mxu0 0
    %2383 = vmatprep.subr.bf16.mxu0 0
    %2384 = vmatpush1.bf16.msra.mxu0 0
    %2385 = vmatprep.subr.bf16.mxu0 0
    %2386 = vmatpush1.bf16.msra.mxu0 0
    %2387 = vmatprep.subr.bf16.mxu0 0
    %2388 = vmatpush1.bf16.msra.mxu0 0
    %2389 = vmatprep.subr.bf16.mxu0 0
    %2390 = vmatpush1.bf16.msra.mxu0 0
    %2391 = vmatprep.subr.bf16.mxu0 %v2369
    %2392 = vmatpush1.bf16.msra.mxu0 %v2366
    %2393 = vmatprep.subr.bf16.mxu0 0
    %2394 = vmatpush2.bf16.msra.mxu0 0
    %2395 = vmatprep.subr.bf16.mxu0 0
    %2396 = vmatpush2.bf16.msra.mxu0 0
    %2397 = vmatprep.subr.bf16.mxu0 0
    %2398 = vmatpush2.bf16.msra.mxu0 0
    %2399 = vmatprep.subr.bf16.mxu0 0
    %2400 = vmatpush2.bf16.msra.mxu0 0
    %2401 = vmatprep.subr.bf16.mxu0 0
    %2402 = vmatpush2.bf16.msra.mxu0 0
    %2403 = vmatprep.subr.bf16.mxu0 0
    %2404 = vmatpush2.bf16.msra.mxu0 0
    %2405 = vmatprep.subr.bf16.mxu0 0
    %2406 = vmatpush2.bf16.msra.mxu0 0
    %2407 = vmatprep.subr.bf16.mxu0 0
    %2408 = vmatpush2.bf16.msra.mxu0 0
    %2409 = vmatprep.mubr.bf16.mxu0 0
    %2410 = vmatmul.mubr.bf16.gmra.mxu0 %v2363
    %v2411 = vpop.f32.mrf.mxu0
    %v2412 = vadd.f32 0.0, %v2411
    %v2413 = vpop.f32.mrf.mxu0
    %v2414 = vadd.f32 0.0, %v2413
    %v2415 = vpop.f32.mrf.mxu0
    %v2416 = vpop.f32.mrf.mxu0
    %2417 = vdwg.mxu0
    %2418 = vmatprep.subr.bf16.mxu0 0
    %2419 = vmatpush1.bf16.msra.mxu0 0
    %2420 = vmatprep.subr.bf16.mxu0 0
    %2421 = vmatpush1.bf16.msra.mxu0 0
    %2422 = vmatprep.subr.bf16.mxu0 0
    %2423 = vmatpush1.bf16.msra.mxu0 0
    %2424 = vmatprep.subr.bf16.mxu0 0
    %2425 = vmatpush1.bf16.msra.mxu0 0
    %2426 = vmatprep.subr.bf16.mxu0 0
    %2427 = vmatpush1.bf16.msra.mxu0 0
    %2428 = vmatprep.subr.bf16.mxu0 0
    %2429 = vmatpush1.bf16.msra.mxu0 0
    %2430 = vmatprep.subr.bf16.mxu0 0
    %2431 = vmatpush1.bf16.msra.mxu0 0
    %2432 = vmatprep.subr.bf16.mxu0 %v2375
    %2433 = vmatpush1.bf16.msra.mxu0 %v2372
    %2434 = vmatprep.subr.bf16.mxu0 0
    %2435 = vmatpush2.bf16.msra.mxu0 0
    %2436 = vmatprep.subr.bf16.mxu0 0
    %2437 = vmatpush2.bf16.msra.mxu0 0
    %2438 = vmatprep.subr.bf16.mxu0 0
    %2439 = vmatpush2.bf16.msra.mxu0 0
    %2440 = vmatprep.subr.bf16.mxu0 0
    %2441 = vmatpush2.bf16.msra.mxu0 0
    %2442 = vmatprep.subr.bf16.mxu0 0
    %2443 = vmatpush2.bf16.msra.mxu0 0
    %2444 = vmatprep.subr.bf16.mxu0 0
    %2445 = vmatpush2.bf16.msra.mxu0 0
    %2446 = vmatprep.subr.bf16.mxu0 0
    %2447 = vmatpush2.bf16.msra.mxu0 0
    %2448 = vmatprep.subr.bf16.mxu0 0
    %2449 = vmatpush2.bf16.msra.mxu0 0
    %2450 = vmatprep.mubr.bf16.mxu0 0
    %2451 = vmatmul.mubr.bf16.gmra.mxu0 %v2363
    %v2452 = vpop.f32.mrf.mxu0
    %v2453 = vadd.f32 0.0, %v2452
    %v2454 = vpop.f32.mrf.mxu0
    %v2455 = vadd.f32 0.0, %v2454
    %v2456 = vpop.f32.mrf.mxu0
    %v2457 = vpop.f32.mrf.mxu0
    %2458 = vdwg.mxu0
    %v2459 = vadd.f32 %v2245, %v2412
    %v2460 = vadd.f32 %v2246, %v2414
    %v2461 = vadd.f32 %v2247, %v2453
    %v2462 = vadd.f32 %v2248, %v2455
    %2463 = vrot.lane.b32.xlu0 %v1541, 108
    %v2464 = vpop.permute.xlu0 %2463
    %v2466 = vsel %vm150, %v2464, 0
    %2468 = vmatprep.subr.bf16.mxu0 0
    %2469 = vmatpush1.bf16.msra.mxu0 0
    %2470 = vmatprep.subr.bf16.mxu0 0
    %2471 = vmatpush1.bf16.msra.mxu0 0
    %2472 = vmatprep.subr.bf16.mxu0 0
    %2473 = vmatpush1.bf16.msra.mxu0 0
    %2474 = vmatprep.subr.bf16.mxu0 0
    %2475 = vmatpush1.bf16.msra.mxu0 0
    %2476 = vmatprep.subr.bf16.mxu0 0
    %2477 = vmatpush1.bf16.msra.mxu0 0
    %2478 = vmatprep.subr.bf16.mxu0 0
    %2479 = vmatpush1.bf16.msra.mxu0 0
    %2480 = vmatprep.subr.bf16.mxu0 0
    %2481 = vmatpush1.bf16.msra.mxu0 0
    %2482 = vmatprep.subr.bf16.mxu0 %v2369
    %2483 = vmatpush1.bf16.msra.mxu0 %v2366
    %2484 = vmatprep.subr.bf16.mxu0 0
    %2485 = vmatpush2.bf16.msra.mxu0 0
    %2486 = vmatprep.subr.bf16.mxu0 0
    %2487 = vmatpush2.bf16.msra.mxu0 0
    %2488 = vmatprep.subr.bf16.mxu0 0
    %2489 = vmatpush2.bf16.msra.mxu0 0
    %2490 = vmatprep.subr.bf16.mxu0 0
    %2491 = vmatpush2.bf16.msra.mxu0 0
    %2492 = vmatprep.subr.bf16.mxu0 0
    %2493 = vmatpush2.bf16.msra.mxu0 0
    %2494 = vmatprep.subr.bf16.mxu0 0
    %2495 = vmatpush2.bf16.msra.mxu0 0
    %2496 = vmatprep.subr.bf16.mxu0 0
    %2497 = vmatpush2.bf16.msra.mxu0 0
    %2498 = vmatprep.subr.bf16.mxu0 0
    %2499 = vmatpush2.bf16.msra.mxu0 0
    %2500 = vmatprep.mubr.bf16.mxu0 0
    %2501 = vmatmul.mubr.bf16.gmra.mxu0 %v2466
    %v2502 = vpop.f32.mrf.mxu0
    %v2503 = vadd.f32 0.0, %v2502
    %v2504 = vpop.f32.mrf.mxu0
    %v2505 = vadd.f32 0.0, %v2504
    %v2506 = vpop.f32.mrf.mxu0
    %v2507 = vpop.f32.mrf.mxu0
    %2508 = vdwg.mxu0
    %2509 = vmatprep.subr.bf16.mxu0 0
    %2510 = vmatpush1.bf16.msra.mxu0 0
    %2511 = vmatprep.subr.bf16.mxu0 0
    %2512 = vmatpush1.bf16.msra.mxu0 0
    %2513 = vmatprep.subr.bf16.mxu0 0
    %2514 = vmatpush1.bf16.msra.mxu0 0
    %2515 = vmatprep.subr.bf16.mxu0 0
    %2516 = vmatpush1.bf16.msra.mxu0 0
    %2517 = vmatprep.subr.bf16.mxu0 0
    %2518 = vmatpush1.bf16.msra.mxu0 0
    %2519 = vmatprep.subr.bf16.mxu0 0
    %2520 = vmatpush1.bf16.msra.mxu0 0
    %2521 = vmatprep.subr.bf16.mxu0 0
    %2522 = vmatpush1.bf16.msra.mxu0 0
    %2523 = vmatprep.subr.bf16.mxu0 %v2375
    %2524 = vmatpush1.bf16.msra.mxu0 %v2372
    %2525 = vmatprep.subr.bf16.mxu0 0
    %2526 = vmatpush2.bf16.msra.mxu0 0
    %2527 = vmatprep.subr.bf16.mxu0 0
    %2528 = vmatpush2.bf16.msra.mxu0 0
    %2529 = vmatprep.subr.bf16.mxu0 0
    %2530 = vmatpush2.bf16.msra.mxu0 0
    %2531 = vmatprep.subr.bf16.mxu0 0
    %2532 = vmatpush2.bf16.msra.mxu0 0
    %2533 = vmatprep.subr.bf16.mxu0 0
    %2534 = vmatpush2.bf16.msra.mxu0 0
    %2535 = vmatprep.subr.bf16.mxu0 0
    %2536 = vmatpush2.bf16.msra.mxu0 0
    %2537 = vmatprep.subr.bf16.mxu0 0
    %2538 = vmatpush2.bf16.msra.mxu0 0
    %2539 = vmatprep.subr.bf16.mxu0 0
    %2540 = vmatpush2.bf16.msra.mxu0 0
    %2541 = vmatprep.mubr.bf16.mxu0 0
    %2542 = vmatmul.mubr.bf16.gmra.mxu0 %v2466
    %v2543 = vpop.f32.mrf.mxu0
    %v2544 = vadd.f32 0.0, %v2543
    %v2545 = vpop.f32.mrf.mxu0
    %v2546 = vadd.f32 0.0, %v2545
    %v2547 = vpop.f32.mrf.mxu0
    %v2548 = vpop.f32.mrf.mxu0
    %2549 = vdwg.mxu0
    %v2550 = vadd.f32 %v2336, %v2503
    %v2551 = vadd.f32 %v2337, %v2505
    %v2552 = vadd.f32 %v2338, %v2544
    %v2553 = vadd.f32 %v2339, %v2546
    %2554 = vrot.lane.b32.xlu0 %v1298, 113
    %v2555 = vpop.permute.xlu0 %2554
    %2556 = vrot.lane.b32.xlu0 %v1299, 113
    %v2557 = vpop.permute.xlu0 %2556
    %2558 = vrot.lane.b32.xlu0 %v1300, 113
    %v2559 = vpop.permute.xlu0 %2558
    %2560 = vrot.lane.b32.xlu0 %v1301, 113
    %v2561 = vpop.permute.xlu0 %2560
    %v2562 = vsel %vm857, %v2559, %v2561
    %v2563 = vsel %vm857, %v2557, %v2559
    %v2564 = vsel %vm857, %v2555, %v2557
    %v2565 = vsel %vm857, %v2561, %v2555
    %v2566 = vsel %vm866, %v2564, 0.0
    %v2567 = vsel %vm867, %v2563, 0.0
    %v2568 = vsel %vm868, %v2562, 0.0
    %v2569 = vsel %vm869, %v2565, 0.0
    %v2570 = vpack.c.bf16 %v2566, %v2566
    %v2571 = vpack.c.bf16 %v2567, %v2567
    %v2572 = vpack.c.bf16 %v2568, %v2568
    %v2573 = vpack.c.bf16 %v2569, %v2569
    %2574 = vrot.lane.b32.xlu0 %v1342, 104
    %v2575 = vpop.permute.xlu0 %2574
    %v2577 = vsel %vm150, %v2575, 0
    %v2580 = vsel %vm154, %v2570, 0
    %v2583 = vsel %vm154, %v2571, 0
    %v2586 = vsel %vm154, %v2572, 0
    %v2589 = vsel %vm154, %v2573, 0
    %2591 = vmatprep.subr.bf16.mxu0 0
    %2592 = vmatpush1.bf16.msra.mxu0 0
    %2593 = vmatprep.subr.bf16.mxu0 0
    %2594 = vmatpush1.bf16.msra.mxu0 0
    %2595 = vmatprep.subr.bf16.mxu0 0
    %2596 = vmatpush1.bf16.msra.mxu0 0
    %2597 = vmatprep.subr.bf16.mxu0 0
    %2598 = vmatpush1.bf16.msra.mxu0 0
    %2599 = vmatprep.subr.bf16.mxu0 0
    %2600 = vmatpush1.bf16.msra.mxu0 0
    %2601 = vmatprep.subr.bf16.mxu0 0
    %2602 = vmatpush1.bf16.msra.mxu0 0
    %2603 = vmatprep.subr.bf16.mxu0 0
    %2604 = vmatpush1.bf16.msra.mxu0 0
    %2605 = vmatprep.subr.bf16.mxu0 %v2583
    %2606 = vmatpush1.bf16.msra.mxu0 %v2580
    %2607 = vmatprep.subr.bf16.mxu0 0
    %2608 = vmatpush2.bf16.msra.mxu0 0
    %2609 = vmatprep.subr.bf16.mxu0 0
    %2610 = vmatpush2.bf16.msra.mxu0 0
    %2611 = vmatprep.subr.bf16.mxu0 0
    %2612 = vmatpush2.bf16.msra.mxu0 0
    %2613 = vmatprep.subr.bf16.mxu0 0
    %2614 = vmatpush2.bf16.msra.mxu0 0
    %2615 = vmatprep.subr.bf16.mxu0 0
    %2616 = vmatpush2.bf16.msra.mxu0 0
    %2617 = vmatprep.subr.bf16.mxu0 0
    %2618 = vmatpush2.bf16.msra.mxu0 0
    %2619 = vmatprep.subr.bf16.mxu0 0
    %2620 = vmatpush2.bf16.msra.mxu0 0
    %2621 = vmatprep.subr.bf16.mxu0 0
    %2622 = vmatpush2.bf16.msra.mxu0 0
    %2623 = vmatprep.mubr.bf16.mxu0 0
    %2624 = vmatmul.mubr.bf16.gmra.mxu0 %v2577
    %v2625 = vpop.f32.mrf.mxu0
    %v2626 = vadd.f32 0.0, %v2625
    %v2627 = vpop.f32.mrf.mxu0
    %v2628 = vadd.f32 0.0, %v2627
    %v2629 = vpop.f32.mrf.mxu0
    %v2630 = vpop.f32.mrf.mxu0
    %2631 = vdwg.mxu0
    %2632 = vmatprep.subr.bf16.mxu0 0
    %2633 = vmatpush1.bf16.msra.mxu0 0
    %2634 = vmatprep.subr.bf16.mxu0 0
    %2635 = vmatpush1.bf16.msra.mxu0 0
    %2636 = vmatprep.subr.bf16.mxu0 0
    %2637 = vmatpush1.bf16.msra.mxu0 0
    %2638 = vmatprep.subr.bf16.mxu0 0
    %2639 = vmatpush1.bf16.msra.mxu0 0
    %2640 = vmatprep.subr.bf16.mxu0 0
    %2641 = vmatpush1.bf16.msra.mxu0 0
    %2642 = vmatprep.subr.bf16.mxu0 0
    %2643 = vmatpush1.bf16.msra.mxu0 0
    %2644 = vmatprep.subr.bf16.mxu0 0
    %2645 = vmatpush1.bf16.msra.mxu0 0
    %2646 = vmatprep.subr.bf16.mxu0 %v2589
    %2647 = vmatpush1.bf16.msra.mxu0 %v2586
    %2648 = vmatprep.subr.bf16.mxu0 0
    %2649 = vmatpush2.bf16.msra.mxu0 0
    %2650 = vmatprep.subr.bf16.mxu0 0
    %2651 = vmatpush2.bf16.msra.mxu0 0
    %2652 = vmatprep.subr.bf16.mxu0 0
    %2653 = vmatpush2.bf16.msra.mxu0 0
    %2654 = vmatprep.subr.bf16.mxu0 0
    %2655 = vmatpush2.bf16.msra.mxu0 0
    %2656 = vmatprep.subr.bf16.mxu0 0
    %2657 = vmatpush2.bf16.msra.mxu0 0
    %2658 = vmatprep.subr.bf16.mxu0 0
    %2659 = vmatpush2.bf16.msra.mxu0 0
    %2660 = vmatprep.subr.bf16.mxu0 0
    %2661 = vmatpush2.bf16.msra.mxu0 0
    %2662 = vmatprep.subr.bf16.mxu0 0
    %2663 = vmatpush2.bf16.msra.mxu0 0
    %2664 = vmatprep.mubr.bf16.mxu0 0
    %2665 = vmatmul.mubr.bf16.gmra.mxu0 %v2577
    %v2666 = vpop.f32.mrf.mxu0
    %v2667 = vadd.f32 0.0, %v2666
    %v2668 = vpop.f32.mrf.mxu0
    %v2669 = vadd.f32 0.0, %v2668
    %v2670 = vpop.f32.mrf.mxu0
    %v2671 = vpop.f32.mrf.mxu0
    %2672 = vdwg.mxu0
    %v2673 = vadd.f32 %v2459, %v2626
    %v2674 = vadd.f32 %v2460, %v2628
    %v2675 = vadd.f32 %v2461, %v2667
    %v2676 = vadd.f32 %v2462, %v2669
    %2677 = vrot.lane.b32.xlu0 %v1541, 104
    %v2678 = vpop.permute.xlu0 %2677
    %v2680 = vsel %vm150, %v2678, 0
    %2682 = vmatprep.subr.bf16.mxu0 0
    %2683 = vmatpush1.bf16.msra.mxu0 0
    %2684 = vmatprep.subr.bf16.mxu0 0
    %2685 = vmatpush1.bf16.msra.mxu0 0
    %2686 = vmatprep.subr.bf16.mxu0 0
    %2687 = vmatpush1.bf16.msra.mxu0 0
    %2688 = vmatprep.subr.bf16.mxu0 0
    %2689 = vmatpush1.bf16.msra.mxu0 0
    %2690 = vmatprep.subr.bf16.mxu0 0
    %2691 = vmatpush1.bf16.msra.mxu0 0
    %2692 = vmatprep.subr.bf16.mxu0 0
    %2693 = vmatpush1.bf16.msra.mxu0 0
    %2694 = vmatprep.subr.bf16.mxu0 0
    %2695 = vmatpush1.bf16.msra.mxu0 0
    %2696 = vmatprep.subr.bf16.mxu0 %v2583
    %2697 = vmatpush1.bf16.msra.mxu0 %v2580
    %2698 = vmatprep.subr.bf16.mxu0 0
    %2699 = vmatpush2.bf16.msra.mxu0 0
    %2700 = vmatprep.subr.bf16.mxu0 0
    %2701 = vmatpush2.bf16.msra.mxu0 0
    %2702 = vmatprep.subr.bf16.mxu0 0
    %2703 = vmatpush2.bf16.msra.mxu0 0
    %2704 = vmatprep.subr.bf16.mxu0 0
    %2705 = vmatpush2.bf16.msra.mxu0 0
    %2706 = vmatprep.subr.bf16.mxu0 0
    %2707 = vmatpush2.bf16.msra.mxu0 0
    %2708 = vmatprep.subr.bf16.mxu0 0
    %2709 = vmatpush2.bf16.msra.mxu0 0
    %2710 = vmatprep.subr.bf16.mxu0 0
    %2711 = vmatpush2.bf16.msra.mxu0 0
    %2712 = vmatprep.subr.bf16.mxu0 0
    %2713 = vmatpush2.bf16.msra.mxu0 0
    %2714 = vmatprep.mubr.bf16.mxu0 0
    %2715 = vmatmul.mubr.bf16.gmra.mxu0 %v2680
    %v2716 = vpop.f32.mrf.mxu0
    %v2717 = vadd.f32 0.0, %v2716
    %v2718 = vpop.f32.mrf.mxu0
    %v2719 = vadd.f32 0.0, %v2718
    %v2720 = vpop.f32.mrf.mxu0
    %v2721 = vpop.f32.mrf.mxu0
    %2722 = vdwg.mxu0
    %2723 = vmatprep.subr.bf16.mxu0 0
    %2724 = vmatpush1.bf16.msra.mxu0 0
    %2725 = vmatprep.subr.bf16.mxu0 0
    %2726 = vmatpush1.bf16.msra.mxu0 0
    %2727 = vmatprep.subr.bf16.mxu0 0
    %2728 = vmatpush1.bf16.msra.mxu0 0
    %2729 = vmatprep.subr.bf16.mxu0 0
    %2730 = vmatpush1.bf16.msra.mxu0 0
    %2731 = vmatprep.subr.bf16.mxu0 0
    %2732 = vmatpush1.bf16.msra.mxu0 0
    %2733 = vmatprep.subr.bf16.mxu0 0
    %2734 = vmatpush1.bf16.msra.mxu0 0
    %2735 = vmatprep.subr.bf16.mxu0 0
    %2736 = vmatpush1.bf16.msra.mxu0 0
    %2737 = vmatprep.subr.bf16.mxu0 %v2589
    %2738 = vmatpush1.bf16.msra.mxu0 %v2586
    %2739 = vmatprep.subr.bf16.mxu0 0
    %2740 = vmatpush2.bf16.msra.mxu0 0
    %2741 = vmatprep.subr.bf16.mxu0 0
    %2742 = vmatpush2.bf16.msra.mxu0 0
    %2743 = vmatprep.subr.bf16.mxu0 0
    %2744 = vmatpush2.bf16.msra.mxu0 0
    %2745 = vmatprep.subr.bf16.mxu0 0
    %2746 = vmatpush2.bf16.msra.mxu0 0
    %2747 = vmatprep.subr.bf16.mxu0 0
    %2748 = vmatpush2.bf16.msra.mxu0 0
    %2749 = vmatprep.subr.bf16.mxu0 0
    %2750 = vmatpush2.bf16.msra.mxu0 0
    %2751 = vmatprep.subr.bf16.mxu0 0
    %2752 = vmatpush2.bf16.msra.mxu0 0
    %2753 = vmatprep.subr.bf16.mxu0 0
    %2754 = vmatpush2.bf16.msra.mxu0 0
    %2755 = vmatprep.mubr.bf16.mxu0 0
    %2756 = vmatmul.mubr.bf16.gmra.mxu0 %v2680
    %v2757 = vpop.f32.mrf.mxu0
    %v2758 = vadd.f32 0.0, %v2757
    %v2759 = vpop.f32.mrf.mxu0
    %v2760 = vadd.f32 0.0, %v2759
    %v2761 = vpop.f32.mrf.mxu0
    %v2762 = vpop.f32.mrf.mxu0
    %2763 = vdwg.mxu0
    %v2764 = vadd.f32 %v2550, %v2717
    %v2765 = vadd.f32 %v2551, %v2719
    %v2766 = vadd.f32 %v2552, %v2758
    %v2767 = vadd.f32 %v2553, %v2760
    %2768 = vrot.lane.b32.xlu0 %v1298, 112
    %v2769 = vpop.permute.xlu0 %2768
    %2770 = vrot.lane.b32.xlu0 %v1299, 112
    %v2771 = vpop.permute.xlu0 %2770
    %2772 = vrot.lane.b32.xlu0 %v1300, 112
    %v2773 = vpop.permute.xlu0 %2772
    %2774 = vrot.lane.b32.xlu0 %v1301, 112
    %v2775 = vpop.permute.xlu0 %2774
    %v2776 = vsel %vm989, %v2773, %v2775
    %v2777 = vsel %vm989, %v2771, %v2773
    %v2778 = vsel %vm989, %v2769, %v2771
    %v2779 = vsel %vm989, %v2775, %v2769
    %v2780 = vsel %vm998, %v2778, 0.0
    %v2781 = vsel %vm999, %v2777, 0.0
    %v2782 = vsel %vm1000, %v2776, 0.0
    %v2783 = vsel %vm1001, %v2779, 0.0
    %v2784 = vpack.c.bf16 %v2780, %v2780
    %v2785 = vpack.c.bf16 %v2781, %v2781
    %v2786 = vpack.c.bf16 %v2782, %v2782
    %v2787 = vpack.c.bf16 %v2783, %v2783
    %2788 = vrot.lane.b32.xlu0 %v1342, 100
    %v2789 = vpop.permute.xlu0 %2788
    %v2791 = vsel %vm150, %v2789, 0
    %v2794 = vsel %vm154, %v2784, 0
    %v2797 = vsel %vm154, %v2785, 0
    %v2800 = vsel %vm154, %v2786, 0
    %v2803 = vsel %vm154, %v2787, 0
    %2805 = vmatprep.subr.bf16.mxu0 0
    %2806 = vmatpush1.bf16.msra.mxu0 0
    %2807 = vmatprep.subr.bf16.mxu0 0
    %2808 = vmatpush1.bf16.msra.mxu0 0
    %2809 = vmatprep.subr.bf16.mxu0 0
    %2810 = vmatpush1.bf16.msra.mxu0 0
    %2811 = vmatprep.subr.bf16.mxu0 0
    %2812 = vmatpush1.bf16.msra.mxu0 0
    %2813 = vmatprep.subr.bf16.mxu0 0
    %2814 = vmatpush1.bf16.msra.mxu0 0
    %2815 = vmatprep.subr.bf16.mxu0 0
    %2816 = vmatpush1.bf16.msra.mxu0 0
    %2817 = vmatprep.subr.bf16.mxu0 0
    %2818 = vmatpush1.bf16.msra.mxu0 0
    %2819 = vmatprep.subr.bf16.mxu0 %v2797
    %2820 = vmatpush1.bf16.msra.mxu0 %v2794
    %2821 = vmatprep.subr.bf16.mxu0 0
    %2822 = vmatpush2.bf16.msra.mxu0 0
    %2823 = vmatprep.subr.bf16.mxu0 0
    %2824 = vmatpush2.bf16.msra.mxu0 0
    %2825 = vmatprep.subr.bf16.mxu0 0
    %2826 = vmatpush2.bf16.msra.mxu0 0
    %2827 = vmatprep.subr.bf16.mxu0 0
    %2828 = vmatpush2.bf16.msra.mxu0 0
    %2829 = vmatprep.subr.bf16.mxu0 0
    %2830 = vmatpush2.bf16.msra.mxu0 0
    %2831 = vmatprep.subr.bf16.mxu0 0
    %2832 = vmatpush2.bf16.msra.mxu0 0
    %2833 = vmatprep.subr.bf16.mxu0 0
    %2834 = vmatpush2.bf16.msra.mxu0 0
    %2835 = vmatprep.subr.bf16.mxu0 0
    %2836 = vmatpush2.bf16.msra.mxu0 0
    %2837 = vmatprep.mubr.bf16.mxu0 0
    %2838 = vmatmul.mubr.bf16.gmra.mxu0 %v2791
    %v2839 = vpop.f32.mrf.mxu0
    %v2840 = vadd.f32 0.0, %v2839
    %v2841 = vpop.f32.mrf.mxu0
    %v2842 = vadd.f32 0.0, %v2841
    %v2843 = vpop.f32.mrf.mxu0
    %v2844 = vpop.f32.mrf.mxu0
    %2845 = vdwg.mxu0
    %2846 = vmatprep.subr.bf16.mxu0 0
    %2847 = vmatpush1.bf16.msra.mxu0 0
    %2848 = vmatprep.subr.bf16.mxu0 0
    %2849 = vmatpush1.bf16.msra.mxu0 0
    %2850 = vmatprep.subr.bf16.mxu0 0
    %2851 = vmatpush1.bf16.msra.mxu0 0
    %2852 = vmatprep.subr.bf16.mxu0 0
    %2853 = vmatpush1.bf16.msra.mxu0 0
    %2854 = vmatprep.subr.bf16.mxu0 0
    %2855 = vmatpush1.bf16.msra.mxu0 0
    %2856 = vmatprep.subr.bf16.mxu0 0
    %2857 = vmatpush1.bf16.msra.mxu0 0
    %2858 = vmatprep.subr.bf16.mxu0 0
    %2859 = vmatpush1.bf16.msra.mxu0 0
    %2860 = vmatprep.subr.bf16.mxu0 %v2803
    %2861 = vmatpush1.bf16.msra.mxu0 %v2800
    %2862 = vmatprep.subr.bf16.mxu0 0
    %2863 = vmatpush2.bf16.msra.mxu0 0
    %2864 = vmatprep.subr.bf16.mxu0 0
    %2865 = vmatpush2.bf16.msra.mxu0 0
    %2866 = vmatprep.subr.bf16.mxu0 0
    %2867 = vmatpush2.bf16.msra.mxu0 0
    %2868 = vmatprep.subr.bf16.mxu0 0
    %2869 = vmatpush2.bf16.msra.mxu0 0
    %2870 = vmatprep.subr.bf16.mxu0 0
    %2871 = vmatpush2.bf16.msra.mxu0 0
    %2872 = vmatprep.subr.bf16.mxu0 0
    %2873 = vmatpush2.bf16.msra.mxu0 0
    %2874 = vmatprep.subr.bf16.mxu0 0
    %2875 = vmatpush2.bf16.msra.mxu0 0
    %2876 = vmatprep.subr.bf16.mxu0 0
    %2877 = vmatpush2.bf16.msra.mxu0 0
    %2878 = vmatprep.mubr.bf16.mxu0 0
    %2879 = vmatmul.mubr.bf16.gmra.mxu0 %v2791
    %v2880 = vpop.f32.mrf.mxu0
    %v2881 = vadd.f32 0.0, %v2880
    %v2882 = vpop.f32.mrf.mxu0
    %v2883 = vadd.f32 0.0, %v2882
    %v2884 = vpop.f32.mrf.mxu0
    %v2885 = vpop.f32.mrf.mxu0
    %2886 = vdwg.mxu0
    %v2887 = vadd.f32 %v2673, %v2840
    %v2888 = vadd.f32 %v2674, %v2842
    %v2889 = vadd.f32 %v2675, %v2881
    %v2890 = vadd.f32 %v2676, %v2883
    %2891 = vrot.lane.b32.xlu0 %v1541, 100
    %v2892 = vpop.permute.xlu0 %2891
    %v2894 = vsel %vm150, %v2892, 0
    %2896 = vmatprep.subr.bf16.mxu0 0
    %2897 = vmatpush1.bf16.msra.mxu0 0
    %2898 = vmatprep.subr.bf16.mxu0 0
    %2899 = vmatpush1.bf16.msra.mxu0 0
    %2900 = vmatprep.subr.bf16.mxu0 0
    %2901 = vmatpush1.bf16.msra.mxu0 0
    %2902 = vmatprep.subr.bf16.mxu0 0
    %2903 = vmatpush1.bf16.msra.mxu0 0
    %2904 = vmatprep.subr.bf16.mxu0 0
    %2905 = vmatpush1.bf16.msra.mxu0 0
    %2906 = vmatprep.subr.bf16.mxu0 0
    %2907 = vmatpush1.bf16.msra.mxu0 0
    %2908 = vmatprep.subr.bf16.mxu0 0
    %2909 = vmatpush1.bf16.msra.mxu0 0
    %2910 = vmatprep.subr.bf16.mxu0 %v2797
    %2911 = vmatpush1.bf16.msra.mxu0 %v2794
    %2912 = vmatprep.subr.bf16.mxu0 0
    %2913 = vmatpush2.bf16.msra.mxu0 0
    %2914 = vmatprep.subr.bf16.mxu0 0
    %2915 = vmatpush2.bf16.msra.mxu0 0
    %2916 = vmatprep.subr.bf16.mxu0 0
    %2917 = vmatpush2.bf16.msra.mxu0 0
    %2918 = vmatprep.subr.bf16.mxu0 0
    %2919 = vmatpush2.bf16.msra.mxu0 0
    %2920 = vmatprep.subr.bf16.mxu0 0
    %2921 = vmatpush2.bf16.msra.mxu0 0
    %2922 = vmatprep.subr.bf16.mxu0 0
    %2923 = vmatpush2.bf16.msra.mxu0 0
    %2924 = vmatprep.subr.bf16.mxu0 0
    %2925 = vmatpush2.bf16.msra.mxu0 0
    %2926 = vmatprep.subr.bf16.mxu0 0
    %2927 = vmatpush2.bf16.msra.mxu0 0
    %2928 = vmatprep.mubr.bf16.mxu0 0
    %2929 = vmatmul.mubr.bf16.gmra.mxu0 %v2894
    %v2930 = vpop.f32.mrf.mxu0
    %v2931 = vadd.f32 0.0, %v2930
    %v2932 = vpop.f32.mrf.mxu0
    %v2933 = vadd.f32 0.0, %v2932
    %v2934 = vpop.f32.mrf.mxu0
    %v2935 = vpop.f32.mrf.mxu0
    %2936 = vdwg.mxu0
    %2937 = vmatprep.subr.bf16.mxu0 0
    %2938 = vmatpush1.bf16.msra.mxu0 0
    %2939 = vmatprep.subr.bf16.mxu0 0
    %2940 = vmatpush1.bf16.msra.mxu0 0
    %2941 = vmatprep.subr.bf16.mxu0 0
    %2942 = vmatpush1.bf16.msra.mxu0 0
    %2943 = vmatprep.subr.bf16.mxu0 0
    %2944 = vmatpush1.bf16.msra.mxu0 0
    %2945 = vmatprep.subr.bf16.mxu0 0
    %2946 = vmatpush1.bf16.msra.mxu0 0
    %2947 = vmatprep.subr.bf16.mxu0 0
    %2948 = vmatpush1.bf16.msra.mxu0 0
    %2949 = vmatprep.subr.bf16.mxu0 0
    %2950 = vmatpush1.bf16.msra.mxu0 0
    %2951 = vmatprep.subr.bf16.mxu0 %v2803
    %2952 = vmatpush1.bf16.msra.mxu0 %v2800
    %2953 = vmatprep.subr.bf16.mxu0 0
    %2954 = vmatpush2.bf16.msra.mxu0 0
    %2955 = vmatprep.subr.bf16.mxu0 0
    %2956 = vmatpush2.bf16.msra.mxu0 0
    %2957 = vmatprep.subr.bf16.mxu0 0
    %2958 = vmatpush2.bf16.msra.mxu0 0
    %2959 = vmatprep.subr.bf16.mxu0 0
    %2960 = vmatpush2.bf16.msra.mxu0 0
    %2961 = vmatprep.subr.bf16.mxu0 0
    %2962 = vmatpush2.bf16.msra.mxu0 0
    %2963 = vmatprep.subr.bf16.mxu0 0
    %2964 = vmatpush2.bf16.msra.mxu0 0
    %2965 = vmatprep.subr.bf16.mxu0 0
    %2966 = vmatpush2.bf16.msra.mxu0 0
    %2967 = vmatprep.subr.bf16.mxu0 0
    %2968 = vmatpush2.bf16.msra.mxu0 0
    %2969 = vmatprep.mubr.bf16.mxu0 0
    %2970 = vmatmul.mubr.bf16.gmra.mxu0 %v2894
    %v2971 = vpop.f32.mrf.mxu0
    %v2972 = vadd.f32 0.0, %v2971
    %v2973 = vpop.f32.mrf.mxu0
    %v2974 = vadd.f32 0.0, %v2973
    %v2975 = vpop.f32.mrf.mxu0
    %v2976 = vpop.f32.mrf.mxu0
    %2977 = vdwg.mxu0
    %v2978 = vadd.f32 %v2764, %v2931
    %v2979 = vadd.f32 %v2765, %v2933
    %v2980 = vadd.f32 %v2766, %v2972
    %v2981 = vadd.f32 %v2767, %v2974
    %2982 = vrot.lane.b32.xlu0 %v1298, 111
    %v2983 = vpop.permute.xlu0 %2982
    %2984 = vrot.lane.b32.xlu0 %v1299, 111
    %v2985 = vpop.permute.xlu0 %2984
    %2986 = vrot.lane.b32.xlu0 %v1300, 111
    %v2987 = vpop.permute.xlu0 %2986
    %2988 = vrot.lane.b32.xlu0 %v1301, 111
    %v2989 = vpop.permute.xlu0 %2988
    %v2990 = vsel %vm1121, %v2987, %v2989
    %v2991 = vsel %vm1121, %v2985, %v2987
    %v2992 = vsel %vm1121, %v2983, %v2985
    %v2993 = vsel %vm1121, %v2989, %v2983
    %v2994 = vsel %vm1130, %v2992, 0.0
    %v2995 = vsel %vm1131, %v2991, 0.0
    %v2996 = vsel %vm1132, %v2990, 0.0
    %v2997 = vsel %vm1133, %v2993, 0.0
    %v2998 = vpack.c.bf16 %v2994, %v2994
    %v2999 = vpack.c.bf16 %v2995, %v2995
    %v3000 = vpack.c.bf16 %v2996, %v2996
    %v3001 = vpack.c.bf16 %v2997, %v2997
    %3002 = vrot.lane.b32.xlu0 %v1342, 96
    %v3003 = vpop.permute.xlu0 %3002
    %v3005 = vsel %vm150, %v3003, 0
    %v3008 = vsel %vm154, %v2998, 0
    %v3011 = vsel %vm154, %v2999, 0
    %v3014 = vsel %vm154, %v3000, 0
    %v3017 = vsel %vm154, %v3001, 0
    %3019 = vmatprep.subr.bf16.mxu0 0
    %3020 = vmatpush1.bf16.msra.mxu0 0
    %3021 = vmatprep.subr.bf16.mxu0 0
    %3022 = vmatpush1.bf16.msra.mxu0 0
    %3023 = vmatprep.subr.bf16.mxu0 0
    %3024 = vmatpush1.bf16.msra.mxu0 0
    %3025 = vmatprep.subr.bf16.mxu0 0
    %3026 = vmatpush1.bf16.msra.mxu0 0
    %3027 = vmatprep.subr.bf16.mxu0 0
    %3028 = vmatpush1.bf16.msra.mxu0 0
    %3029 = vmatprep.subr.bf16.mxu0 0
    %3030 = vmatpush1.bf16.msra.mxu0 0
    %3031 = vmatprep.subr.bf16.mxu0 0
    %3032 = vmatpush1.bf16.msra.mxu0 0
    %3033 = vmatprep.subr.bf16.mxu0 %v3011
    %3034 = vmatpush1.bf16.msra.mxu0 %v3008
    %3035 = vmatprep.subr.bf16.mxu0 0
    %3036 = vmatpush2.bf16.msra.mxu0 0
    %3037 = vmatprep.subr.bf16.mxu0 0
    %3038 = vmatpush2.bf16.msra.mxu0 0
    %3039 = vmatprep.subr.bf16.mxu0 0
    %3040 = vmatpush2.bf16.msra.mxu0 0
    %3041 = vmatprep.subr.bf16.mxu0 0
    %3042 = vmatpush2.bf16.msra.mxu0 0
    %3043 = vmatprep.subr.bf16.mxu0 0
    %3044 = vmatpush2.bf16.msra.mxu0 0
    %3045 = vmatprep.subr.bf16.mxu0 0
    %3046 = vmatpush2.bf16.msra.mxu0 0
    %3047 = vmatprep.subr.bf16.mxu0 0
    %3048 = vmatpush2.bf16.msra.mxu0 0
    %3049 = vmatprep.subr.bf16.mxu0 0
    %3050 = vmatpush2.bf16.msra.mxu0 0
    %3051 = vmatprep.mubr.bf16.mxu0 0
    %3052 = vmatmul.mubr.bf16.gmra.mxu0 %v3005
    %v3053 = vpop.f32.mrf.mxu0
    %v3054 = vadd.f32 0.0, %v3053
    %v3055 = vpop.f32.mrf.mxu0
    %v3056 = vadd.f32 0.0, %v3055
    %v3057 = vpop.f32.mrf.mxu0
    %v3058 = vpop.f32.mrf.mxu0
    %3059 = vdwg.mxu0
    %3060 = vmatprep.subr.bf16.mxu0 0
    %3061 = vmatpush1.bf16.msra.mxu0 0
    %3062 = vmatprep.subr.bf16.mxu0 0
    %3063 = vmatpush1.bf16.msra.mxu0 0
    %3064 = vmatprep.subr.bf16.mxu0 0
    %3065 = vmatpush1.bf16.msra.mxu0 0
    %3066 = vmatprep.subr.bf16.mxu0 0
    %3067 = vmatpush1.bf16.msra.mxu0 0
    %3068 = vmatprep.subr.bf16.mxu0 0
    %3069 = vmatpush1.bf16.msra.mxu0 0
    %3070 = vmatprep.subr.bf16.mxu0 0
    %3071 = vmatpush1.bf16.msra.mxu0 0
    %3072 = vmatprep.subr.bf16.mxu0 0
    %3073 = vmatpush1.bf16.msra.mxu0 0
    %3074 = vmatprep.subr.bf16.mxu0 %v3017
    %3075 = vmatpush1.bf16.msra.mxu0 %v3014
    %3076 = vmatprep.subr.bf16.mxu0 0
    %3077 = vmatpush2.bf16.msra.mxu0 0
    %3078 = vmatprep.subr.bf16.mxu0 0
    %3079 = vmatpush2.bf16.msra.mxu0 0
    %3080 = vmatprep.subr.bf16.mxu0 0
    %3081 = vmatpush2.bf16.msra.mxu0 0
    %3082 = vmatprep.subr.bf16.mxu0 0
    %3083 = vmatpush2.bf16.msra.mxu0 0
    %3084 = vmatprep.subr.bf16.mxu0 0
    %3085 = vmatpush2.bf16.msra.mxu0 0
    %3086 = vmatprep.subr.bf16.mxu0 0
    %3087 = vmatpush2.bf16.msra.mxu0 0
    %3088 = vmatprep.subr.bf16.mxu0 0
    %3089 = vmatpush2.bf16.msra.mxu0 0
    %3090 = vmatprep.subr.bf16.mxu0 0
    %3091 = vmatpush2.bf16.msra.mxu0 0
    %3092 = vmatprep.mubr.bf16.mxu0 0
    %3093 = vmatmul.mubr.bf16.gmra.mxu0 %v3005
    %v3094 = vpop.f32.mrf.mxu0
    %v3095 = vadd.f32 0.0, %v3094
    %v3096 = vpop.f32.mrf.mxu0
    %v3097 = vadd.f32 0.0, %v3096
    %v3098 = vpop.f32.mrf.mxu0
    %v3099 = vpop.f32.mrf.mxu0
    %3100 = vdwg.mxu0
    %v3101 = vadd.f32 %v2887, %v3054
    %v3102 = vadd.f32 %v2888, %v3056
    %v3103 = vadd.f32 %v2889, %v3095
    %v3104 = vadd.f32 %v2890, %v3097
    %3105 = vrot.lane.b32.xlu0 %v1541, 96
    %v3106 = vpop.permute.xlu0 %3105
    %v3108 = vsel %vm150, %v3106, 0
    %3110 = vmatprep.subr.bf16.mxu0 0
    %3111 = vmatpush1.bf16.msra.mxu0 0
    %3112 = vmatprep.subr.bf16.mxu0 0
    %3113 = vmatpush1.bf16.msra.mxu0 0
    %3114 = vmatprep.subr.bf16.mxu0 0
    %3115 = vmatpush1.bf16.msra.mxu0 0
    %3116 = vmatprep.subr.bf16.mxu0 0
    %3117 = vmatpush1.bf16.msra.mxu0 0
    %3118 = vmatprep.subr.bf16.mxu0 0
    %3119 = vmatpush1.bf16.msra.mxu0 0
    %3120 = vmatprep.subr.bf16.mxu0 0
    %3121 = vmatpush1.bf16.msra.mxu0 0
    %3122 = vmatprep.subr.bf16.mxu0 0
    %3123 = vmatpush1.bf16.msra.mxu0 0
    %3124 = vmatprep.subr.bf16.mxu0 %v3011
    %3125 = vmatpush1.bf16.msra.mxu0 %v3008
    %3126 = vmatprep.subr.bf16.mxu0 0
    %3127 = vmatpush2.bf16.msra.mxu0 0
    %3128 = vmatprep.subr.bf16.mxu0 0
    %3129 = vmatpush2.bf16.msra.mxu0 0
    %3130 = vmatprep.subr.bf16.mxu0 0
    %3131 = vmatpush2.bf16.msra.mxu0 0
    %3132 = vmatprep.subr.bf16.mxu0 0
    %3133 = vmatpush2.bf16.msra.mxu0 0
    %3134 = vmatprep.subr.bf16.mxu0 0
    %3135 = vmatpush2.bf16.msra.mxu0 0
    %3136 = vmatprep.subr.bf16.mxu0 0
    %3137 = vmatpush2.bf16.msra.mxu0 0
    %3138 = vmatprep.subr.bf16.mxu0 0
    %3139 = vmatpush2.bf16.msra.mxu0 0
    %3140 = vmatprep.subr.bf16.mxu0 0
    %3141 = vmatpush2.bf16.msra.mxu0 0
    %3142 = vmatprep.mubr.bf16.mxu0 0
    %3143 = vmatmul.mubr.bf16.gmra.mxu0 %v3108
    %v3144 = vpop.f32.mrf.mxu0
    %v3145 = vadd.f32 0.0, %v3144
    %v3146 = vpop.f32.mrf.mxu0
    %v3147 = vadd.f32 0.0, %v3146
    %v3148 = vpop.f32.mrf.mxu0
    %v3149 = vpop.f32.mrf.mxu0
    %3150 = vdwg.mxu0
    %3151 = vmatprep.subr.bf16.mxu0 0
    %3152 = vmatpush1.bf16.msra.mxu0 0
    %3153 = vmatprep.subr.bf16.mxu0 0
    %3154 = vmatpush1.bf16.msra.mxu0 0
    %3155 = vmatprep.subr.bf16.mxu0 0
    %3156 = vmatpush1.bf16.msra.mxu0 0
    %3157 = vmatprep.subr.bf16.mxu0 0
    %3158 = vmatpush1.bf16.msra.mxu0 0
    %3159 = vmatprep.subr.bf16.mxu0 0
    %3160 = vmatpush1.bf16.msra.mxu0 0
    %3161 = vmatprep.subr.bf16.mxu0 0
    %3162 = vmatpush1.bf16.msra.mxu0 0
    %3163 = vmatprep.subr.bf16.mxu0 0
    %3164 = vmatpush1.bf16.msra.mxu0 0
    %3165 = vmatprep.subr.bf16.mxu0 %v3017
    %3166 = vmatpush1.bf16.msra.mxu0 %v3014
    %3167 = vmatprep.subr.bf16.mxu0 0
    %3168 = vmatpush2.bf16.msra.mxu0 0
    %3169 = vmatprep.subr.bf16.mxu0 0
    %3170 = vmatpush2.bf16.msra.mxu0 0
    %3171 = vmatprep.subr.bf16.mxu0 0
    %3172 = vmatpush2.bf16.msra.mxu0 0
    %3173 = vmatprep.subr.bf16.mxu0 0
    %3174 = vmatpush2.bf16.msra.mxu0 0
    %3175 = vmatprep.subr.bf16.mxu0 0
    %3176 = vmatpush2.bf16.msra.mxu0 0
    %3177 = vmatprep.subr.bf16.mxu0 0
    %3178 = vmatpush2.bf16.msra.mxu0 0
    %3179 = vmatprep.subr.bf16.mxu0 0
    %3180 = vmatpush2.bf16.msra.mxu0 0
    %3181 = vmatprep.subr.bf16.mxu0 0
    %3182 = vmatpush2.bf16.msra.mxu0 0
    %3183 = vmatprep.mubr.bf16.mxu0 0
    %3184 = vmatmul.mubr.bf16.gmra.mxu0 %v3108
    %v3185 = vpop.f32.mrf.mxu0
    %v3186 = vadd.f32 0.0, %v3185
    %v3187 = vpop.f32.mrf.mxu0
    %v3188 = vadd.f32 0.0, %v3187
    %v3189 = vpop.f32.mrf.mxu0
    %v3190 = vpop.f32.mrf.mxu0
    %3191 = vdwg.mxu0
    %v3192 = vadd.f32 %v2978, %v3145
    %v3193 = vadd.f32 %v2979, %v3147
    %v3194 = vadd.f32 %v2980, %v3186
    %v3195 = vadd.f32 %v2981, %v3188
    %v3196 = vld [vmem:[%s2 + $0x4] sm:$0xf]
    %3197 = vset.pattern.permute.xlu0 2
    %3198 = vperm.xlu0 %3197, %v1272
    %v3199 = vpop.permute.xlu0 %3198
    %v3201 = vadd.f32 %v3101, %v3199
    %v3202 = vadd.f32 %v3102, %v3199
    %v3203 = vadd.f32 %v3103, %v3199
    %v3204 = vadd.f32 %v3104, %v3199
    %v3205 = vmul.f32 %v3201, %v1298
    %v3206 = vmul.f32 %v3202, %v1299
    %v3207 = vmul.f32 %v3203, %v1300
    %v3208 = vmul.f32 %v3204, %v1301
    %3210 = vset.pattern.permute.xlu0 2
    %3211 = vperm.xlu0 %3210, %v3196
    %v3212 = vpop.permute.xlu0 %3211
    %v3214 = vadd.f32 %v3192, %v3212
    %v3215 = vadd.f32 %v3193, %v3212
    %v3216 = vadd.f32 %v3194, %v3212
    %v3217 = vadd.f32 %v3195, %v3212
    %v3218 = vadd.f32 %v3205, %v3214
    %v3219 = vadd.f32 %v3206, %v3215
    %v3220 = vadd.f32 %v3207, %v3216
    %v3221 = vadd.f32 %v3208, %v3217
    %v3222 = vmax.f32 %v3218, 0.0
    %v3223 = vmax.f32 %v3219, 0.0
    %v3224 = vmax.f32 %v3220, 0.0
    %v3225 = vmax.f32 %v3221, 0.0
    %3226 = vst [vmem:[#allocation5] sm:$0xf] %v3222
    %3227 = vst [vmem:[#allocation5 + $0x8] sm:$0xf] %v3223
    %v3230 = vrot.slane %v3224, 4
    %v3231 = vrot.slane %v3225, 4
    %3234 = vst [vmem:[#allocation5] sm:$0xf0] %v3230
    %3235 = vst [vmem:[#allocation5 + $0x8] sm:$0xf0] %v3231
    // Predicated region
    $region18: #{tpu_custom_call.1} parent=1 // pred_check
      _
    $region19: #{tpu_custom_call.1} parent=1 // pred_check_branch
      %3237 = sbr.rel (0) target = $region21
    $region20: #{tpu_custom_call.1} parent=1 // pred_region
      %s3239 = ssub.s32 256, 256
      %3240 = vsyncadd [#allocation4], %s3239
      %s3242 = sshll.u32 [#allocation5], 4
      %s3243 = int_to_ptr.vmem [resolvable:$true] %s3242
      %3245 = dma.vmem_to_hbm [thread:$0]  %s3243, 256, %s3, [#allocation4]
    $region21: #{tpu_custom_call.1} parent=1 // pred_fallthru
      _
    // Predicated region
    $region22: #{tpu_custom_call.1} parent=1 // pred_check
      _
    $region23: #{tpu_custom_call.1} parent=1 // pred_check_branch
      %3247 = sbr.rel (0) target = $region25
    $region24: #{tpu_custom_call.1} parent=1 // pred_region
      %3248 = dma.done [#allocation4], 256
    $region25: #{tpu_custom_call.1} parent=1 // pred_fallthru
      _
    %3249 = vsyncpa [#allocation3], 1
    %3250 = vsyncpa [#allocation4], 1

</llo_original>
